<compile_context>
chip_gen: v7x
topology: tpu7x:2x2x1
jax: 0.10.0
libtpu: 0.0.40
codegen_flags: <defaults>
</compile_context>

<pallas_src>
import functools

import numpy as np

import jax
import jax.numpy as jnp
from jax.experimental import pallas as pl
from jax.experimental.pallas import tpu as pltpu


# ----------------------------- fused Pallas kernel ---------------------------

def _net_kernel(x_ref, w1_ref, b1_ref, s16_ref, sa1_ref, sb1_ref,
                w2_ref, b2_ref, s6_ref, sa2_ref, sb2_ref,
                wfc1_ref, bfc1_ref, wfc2_ref, bfc2_ref, wfc3_ref, bfc3_ref,
                out_ref):
    f32 = jnp.float32
    x = x_ref[0]                                            # (36, 36)

    # ---- conv1 (5x5, 1->6) + bias + ReLU -> (32, 192), cols = oc*32 + ow ----
    c1 = jnp.dot(x[0:32, :], w1_ref[0], preferred_element_type=f32)
    for kh in range(1, 5):
        c1 = c1 + jnp.dot(x[kh:kh + 32, :], w1_ref[kh],
                          preferred_element_type=f32)
    c1 = jnp.maximum(c1 + b1_ref[...], 0.0)

    # ---- maxpool1 2x2 -> (16, 96), cols = ic*16 + w ----
    v1 = jnp.maximum(c1[0:31, :], c1[1:32, :])              # vertical pair max
    r1 = jnp.dot(s16_ref[...], v1, preferred_element_type=f32)   # take even rows
    p1 = jnp.maximum(jnp.dot(r1, sa1_ref[...], preferred_element_type=f32),
                     jnp.dot(r1, sb1_ref[...], preferred_element_type=f32))

    # ---- conv2 (5x5, 6->16) + bias + ReLU -> (12, 192), cols = oc*12 + ow ----
    c2 = jnp.dot(p1[0:12, :], w2_ref[0], preferred_element_type=f32)
    for kh in range(1, 5):
        c2 = c2 + jnp.dot(p1[kh:kh + 12, :], w2_ref[kh],
                          preferred_element_type=f32)
    c2 = jnp.maximum(c2 + b2_ref[...], 0.0)

    # ---- maxpool2 2x2 -> (6, 96), cols = oc*6 + pw ----
    v2 = jnp.maximum(c2[0:11, :], c2[1:12, :])
    r2 = jnp.dot(s6_ref[...], v2, preferred_element_type=f32)
    p2 = jnp.maximum(jnp.dot(r2, sa2_ref[...], preferred_element_type=f32),
                     jnp.dot(r2, sb2_ref[...], preferred_element_type=f32))

    # ---- fc1 + ReLU -> (1, 120)  (contract the 6 pooled rows) ----
    y = bfc1_ref[...]
    for ph in range(6):
        y = y + jnp.dot(p2[ph:ph + 1, :], wfc1_ref[ph],
                        preferred_element_type=f32)
    y = jnp.maximum(y, 0.0)

    # ---- fc2 + ReLU -> (1, 128) (zero-padded, lane-dense) ----
    y = jnp.maximum(jnp.dot(y, wfc2_ref[...], preferred_element_type=f32)
                    + bfc2_ref[...], 0.0)
    # ---- fc3 -> (1, 128); lanes 0..1 are the logits ----
    y = jnp.dot(y, wfc3_ref[...], preferred_element_type=f32) + bfc3_ref[...]

    out_ref[0] = y


def _zero_index_map(ndim):
    return lambda b, _n=ndim: (0,) * _n


def net_forward(prep, x):
    """x: (B, 1, 36, 36) f32 -> logits (B, 2) f32."""
    (w1l, b1row, s16, sa1, sb1, w2l, b2row, s6, sa2, sb2,
     wf1l, bf1row, wf2p, bf2row, wf3p, bf3row) = prep
    B = x.shape[0]
    x2 = x.reshape(B, 36, 36)

    weight_args = (w1l, b1row, s16, sa1, sb1, w2l, b2row, s6, sa2, sb2,
                   wf1l, bf1row, wf2p, bf2row, wf3p, bf3row)
    w_specs = [pl.BlockSpec(a.shape, _zero_index_map(a.ndim))
               for a in weight_args]

    per_img_flops = 2 * (5 * 32 * 36 * 192                    # conv1
                         + 16 * 31 * 192 + 2 * 16 * 192 * 96  # pool1
                         + 5 * 12 * 96 * 192                  # conv2
                         + 6 * 11 * 192 + 2 * 6 * 192 * 96    # pool2
                         + 6 * 96 * 120 + 120 * 128 + 128 * 128)  # fcs
    weight_bytes = sum(int(np.prod(a.shape)) * 4 for a in weight_args)

    out = pl.pallas_call(
        _net_kernel,
        out_shape=jax.ShapeDtypeStruct((B, 1, 128), jnp.float32),
        grid=(B,),
        in_specs=[pl.BlockSpec((1, 36, 36), lambda b: (b, 0, 0))] + w_specs,
        out_specs=pl.BlockSpec((1, 1, 128), lambda b: (b, 0, 0)),
        compiler_params=pltpu.CompilerParams(
            dimension_semantics=("parallel",),
            vmem_limit_bytes=32 * 1024 * 1024),
        cost_estimate=pl.CostEstimate(
            flops=B * per_img_flops, transcendentals=0,
            bytes_accessed=weight_bytes + B * (36 * 36 * 4 + 128 * 4)),
    )(x2, *weight_args)

    return out.reshape(B, 128)[:, :2]


# ----------------------- init-time weight preprocessing -----------------------

def init_params(key):
    """Deterministic params, PyTorch-default-like uniform(-1/sqrt(fan_in), ...)."""
    def uni(k, shape, fan_in):
        bound = 1.0 / jnp.sqrt(jnp.float32(fan_in))
        return jax.random.uniform(k, shape, jnp.float32, -bound, bound)

    ks = jax.random.split(key, 10)
    p = {}
    p["w_conv1"] = uni(ks[0], (6, 1, 5, 5), 1 * 5 * 5)
    p["b_conv1"] = uni(ks[1], (6,), 1 * 5 * 5)
    p["w_conv2"] = uni(ks[2], (16, 6, 5, 5), 6 * 5 * 5)
    p["b_conv2"] = uni(ks[3], (16,), 6 * 5 * 5)
    p["w_fc1"] = uni(ks[4], (120, 576), 576)
    p["b_fc1"] = uni(ks[5], (120,), 576)
    p["w_fc2"] = uni(ks[6], (84, 120), 120)
    p["b_fc2"] = uni(ks[7], (84,), 120)
    p["w_fc3"] = uni(ks[8], (2, 84), 84)
    p["b_fc3"] = uni(ks[9], (2,), 84)
    return p


def prepare_params(params):
    """Lower torch-layout weights into matmul-friendly matrices (host, once)."""
    w1 = np.asarray(params["w_conv1"], np.float32)    # (6,1,5,5)
    b1 = np.asarray(params["b_conv1"], np.float32)    # (6,)
    w2 = np.asarray(params["w_conv2"], np.float32)    # (16,6,5,5)
    b2 = np.asarray(params["b_conv2"], np.float32)    # (16,)
    wf1 = np.asarray(params["w_fc1"], np.float32)     # (120,576)
    bf1 = np.asarray(params["b_fc1"], np.float32)
    wf2 = np.asarray(params["w_fc2"], np.float32)     # (84,120)
    bf2 = np.asarray(params["b_fc2"], np.float32)
    wf3 = np.asarray(params["w_fc3"], np.float32)     # (2,84)
    bf3 = np.asarray(params["b_fc3"], np.float32)

    # conv1 lowered: out[oh, oc*32+ow] = sum_kh x[oh+kh, :] @ w1l[kh]
    w1l = np.zeros((5, 36, 6 * 32), np.float32)
    for kh in range(5):
        for oc in range(6):
            for ow in range(32):
                for kw in range(5):
                    w1l[kh, ow + kw, oc * 32 + ow] = w1[oc, 0, kh, kw]
    b1row = np.repeat(b1, 32)[None, :]                 # (1, 192)

    # pool1 selectors
    s16 = np.zeros((16, 31), np.float32)
    for p in range(16):
        s16[p, 2 * p] = 1.0
    sa1 = np.zeros((192, 96), np.float32)
    sb1 = np.zeros((192, 96), np.float32)
    for c in range(6):
        for pw in range(16):
            sa1[c * 32 + 2 * pw, c * 16 + pw] = 1.0
            sb1[c * 32 + 2 * pw + 1, c * 16 + pw] = 1.0

    # conv2 lowered: out[oh, oc*12+ow] = sum_kh p1[oh+kh, :] @ w2l[kh]
    w2l = np.zeros((5, 96, 16 * 12), np.float32)
    for kh in range(5):
        for oc in range(16):
            for ic in range(6):
                for ow in range(12):
                    for kw in range(5):
                        w2l[kh, ic * 16 + ow + kw, oc * 12 + ow] = w2[oc, ic, kh, kw]
    b2row = np.repeat(b2, 12)[None, :]                 # (1, 192)

    # pool2 selectors
    s6 = np.zeros((6, 11), np.float32)
    for p in range(6):
        s6[p, 2 * p] = 1.0
    sa2 = np.zeros((192, 96), np.float32)
    sb2 = np.zeros((192, 96), np.float32)
    for c in range(16):
        for pw in range(6):
            sa2[c * 12 + 2 * pw, c * 6 + pw] = 1.0
            sb2[c * 12 + 2 * pw + 1, c * 6 + pw] = 1.0

    # fc1 lowered over pooled rows: y = sum_ph p2[ph,:] @ wf1l[ph]
    # torch flatten order of (16,6,6) is c*36 + h*6 + w; p2 cols are c*6 + w.
    wf1l = np.zeros((6, 96, 120), np.float32)
    for ph in range(6):
        for oc in range(16):
            for pw in range(6):
                wf1l[ph, oc * 6 + pw, :] = wf1[:, oc * 36 + ph * 6 + pw]
    bf1row = bf1[None, :]                              # (1, 120)

    # fc2 / fc3 zero-padded to lane-dense N=128
    wf2p = np.zeros((120, 128), np.float32)
    wf2p[:, :84] = wf2.T
    bf2row = np.zeros((1, 128), np.float32)
    bf2row[0, :84] = bf2
    wf3p = np.zeros((128, 128), np.float32)
    wf3p[:84, :2] = wf3.T
    bf3row = np.zeros((1, 128), np.float32)
    bf3row[0, :2] = bf3

    arrs = (w1l, b1row, s16, sa1, sb1, w2l, b2row, s6, sa2, sb2,
            wf1l, bf1row, wf2p, bf2row, wf3p, bf3row)
    return tuple(jnp.asarray(a) for a in arrs)


# ------------------------- pure-JAX reference (check) -------------------------

def net_reference(params, x):
    hp = jax.lax.Precision.HIGHEST
    dn1 = jax.lax.conv_dimension_numbers(x.shape, params["w_conv1"].shape,
                                         ("NCHW", "OIHW", "NCHW"))
    y = jax.lax.conv_general_dilated(x, params["w_conv1"], (1, 1), "VALID",
                                     dimension_numbers=dn1, precision=hp)
    y = jax.nn.relu(y + params["b_conv1"][None, :, None, None])
    y = jax.lax.reduce_window(y, -jnp.inf, jax.lax.max,
                              (1, 1, 2, 2), (1, 1, 2, 2), "VALID")
    dn2 = jax.lax.conv_dimension_numbers(y.shape, params["w_conv2"].shape,
                                         ("NCHW", "OIHW", "NCHW"))
    y = jax.lax.conv_general_dilated(y, params["w_conv2"], (1, 1), "VALID",
                                     dimension_numbers=dn2, precision=hp)
    y = jax.nn.relu(y + params["b_conv2"][None, :, None, None])
    y = jax.lax.reduce_window(y, -jnp.inf, jax.lax.max,
                              (1, 1, 2, 2), (1, 1, 2, 2), "VALID")
    B = y.shape[0]
    y = y.reshape(B, 16 * 6 * 6)
    y = jax.nn.relu(jnp.dot(y, params["w_fc1"].T, precision=hp) + params["b_fc1"])
    y = jax.nn.relu(jnp.dot(y, params["w_fc2"].T, precision=hp) + params["b_fc2"])
    return jnp.dot(y, params["w_fc3"].T, precision=hp) + params["b_fc3"]


# ----------------------------------- main --------------------------------------

if __name__ == "__main__":
    key = jax.random.PRNGKey(0)
    k_params, k_x = jax.random.split(key)
    params = init_params(k_params)
    prep = prepare_params(params)

    # Input spatial size 36x36 is implied by fc1's 16*6*6 input features.
    x = jax.random.normal(k_x, (2, 1, 36, 36), dtype=jnp.float32)

    out = jax.block_until_ready(jax.jit(net_forward)(prep, x))
    assert out.shape == (2, 2) and out.dtype == jnp.float32
    assert bool(jnp.all(jnp.isfinite(out)))

    ref = jax.block_until_ready(jax.jit(net_reference)(params, x))
    max_err = float(jnp.max(jnp.abs(out - ref)))
    scale = 1.0 + float(jnp.max(jnp.abs(ref)))
    assert max_err < 5e-2 * scale, (max_err, out, ref)

    print("KERNEL_OK")
</pallas_src>

<mosaic_0001>
module attributes {stable_mosaic.version = 11 : i64} {
  func.func @_net_kernel(%arg0: i32, %arg1: memref<1x36x36xf32, #tpu.memory_space<vmem>>, %arg2: memref<5x36x192xf32, #tpu.memory_space<vmem>>, %arg3: memref<1x192xf32, #tpu.memory_space<vmem>>, %arg4: memref<16x31xf32, #tpu.memory_space<vmem>>, %arg5: memref<192x96xf32, #tpu.memory_space<vmem>>, %arg6: memref<192x96xf32, #tpu.memory_space<vmem>>, %arg7: memref<5x96x192xf32, #tpu.memory_space<vmem>>, %arg8: memref<1x192xf32, #tpu.memory_space<vmem>>, %arg9: memref<6x11xf32, #tpu.memory_space<vmem>>, %arg10: memref<192x96xf32, #tpu.memory_space<vmem>>, %arg11: memref<192x96xf32, #tpu.memory_space<vmem>>, %arg12: memref<6x96x120xf32, #tpu.memory_space<vmem>>, %arg13: memref<1x120xf32, #tpu.memory_space<vmem>>, %arg14: memref<120x128xf32, #tpu.memory_space<vmem>>, %arg15: memref<1x128xf32, #tpu.memory_space<vmem>>, %arg16: memref<128x128xf32, #tpu.memory_space<vmem>>, %arg17: memref<1x128xf32, #tpu.memory_space<vmem>>, %arg18: memref<1x1x128xf32, #tpu.memory_space<vmem>>) attributes {dimension_semantics = [#tpu.dimension_semantics<parallel>], iteration_bounds = array<i64: 2>, scalar_prefetch = 0 : i64, scratch_operands = 0 : i64, tpu.core_type = #tpu.core_type<tc>, window_params = [{transform_indices = @transform_0, window_bounds = array<i64: 1, 36, 36>}, {pipeline_mode = #tpu.pipeline_mode<synchronous>, transform_indices = @transform_1, window_bounds = array<i64: 5, 36, 192>}, {pipeline_mode = #tpu.pipeline_mode<synchronous>, transform_indices = @transform_2, window_bounds = array<i64: 1, 192>}, {pipeline_mode = #tpu.pipeline_mode<synchronous>, transform_indices = @transform_3, window_bounds = array<i64: 16, 31>}, {pipeline_mode = #tpu.pipeline_mode<synchronous>, transform_indices = @transform_4, window_bounds = array<i64: 192, 96>}, {pipeline_mode = #tpu.pipeline_mode<synchronous>, transform_indices = @transform_5, window_bounds = array<i64: 192, 96>}, {pipeline_mode = #tpu.pipeline_mode<synchronous>, transform_indices = @transform_6, window_bounds = array<i64: 5, 96, 192>}, {pipeline_mode = #tpu.pipeline_mode<synchronous>, transform_indices = @transform_7, window_bounds = array<i64: 1, 192>}, {pipeline_mode = #tpu.pipeline_mode<synchronous>, transform_indices = @transform_8, window_bounds = array<i64: 6, 11>}, {pipeline_mode = #tpu.pipeline_mode<synchronous>, transform_indices = @transform_9, window_bounds = array<i64: 192, 96>}, {pipeline_mode = #tpu.pipeline_mode<synchronous>, transform_indices = @transform_10, window_bounds = array<i64: 192, 96>}, {pipeline_mode = #tpu.pipeline_mode<synchronous>, transform_indices = @transform_11, window_bounds = array<i64: 6, 96, 120>}, {pipeline_mode = #tpu.pipeline_mode<synchronous>, transform_indices = @transform_12, window_bounds = array<i64: 1, 120>}, {pipeline_mode = #tpu.pipeline_mode<synchronous>, transform_indices = @transform_13, window_bounds = array<i64: 120, 128>}, {pipeline_mode = #tpu.pipeline_mode<synchronous>, transform_indices = @transform_14, window_bounds = array<i64: 1, 128>}, {pipeline_mode = #tpu.pipeline_mode<synchronous>, transform_indices = @transform_15, window_bounds = array<i64: 128, 128>}, {pipeline_mode = #tpu.pipeline_mode<synchronous>, transform_indices = @transform_16, window_bounds = array<i64: 1, 128>}, {transform_indices = @transform_17, window_bounds = array<i64: 1, 1, 128>}]} {
    %c0 = arith.constant 0 : index
    %c0_0 = arith.constant 0 : index
    %c0_1 = arith.constant 0 : index
    %0 = vector.load %arg1[%c0, %c0_0, %c0_1] : memref<1x36x36xf32, #tpu.memory_space<vmem>>, vector<1x36x36xf32>
    %1 = vector.shape_cast %0 : vector<1x36x36xf32> to vector<36x36xf32>
    %2 = vector.extract_strided_slice %1 {offsets = [0, 0], sizes = [32, 36], strides = [1, 1]} : vector<36x36xf32> to vector<32x36xf32>
    %c0_2 = arith.constant 0 : index
    %c0_3 = arith.constant 0 : index
    %c0_4 = arith.constant 0 : index
    %3 = vector.load %arg2[%c0_2, %c0_3, %c0_4] : memref<5x36x192xf32, #tpu.memory_space<vmem>>, vector<1x36x192xf32>
    %4 = vector.shape_cast %3 : vector<1x36x192xf32> to vector<36x192xf32>
    %cst = arith.constant dense<0.000000e+00> : vector<32x192xf32>
    %5 = tpu.matmul %2, %4, %cst {dimension_numbers = #tpu.dot_dimension_numbers<[1], [0], [0], [1], [0, 0, 1, 1], [], []>} : vector<32x36xf32>, vector<36x192xf32>, vector<32x192xf32> -> vector<32x192xf32>
    %6 = vector.extract_strided_slice %1 {offsets = [1, 0], sizes = [32, 36], strides = [1, 1]} : vector<36x36xf32> to vector<32x36xf32>
    %c1 = arith.constant 1 : index
    %c0_5 = arith.constant 0 : index
    %c0_6 = arith.constant 0 : index
    %7 = vector.load %arg2[%c1, %c0_5, %c0_6] : memref<5x36x192xf32, #tpu.memory_space<vmem>>, vector<1x36x192xf32>
    %8 = vector.shape_cast %7 : vector<1x36x192xf32> to vector<36x192xf32>
    %cst_7 = arith.constant dense<0.000000e+00> : vector<32x192xf32>
    %9 = tpu.matmul %6, %8, %cst_7 {dimension_numbers = #tpu.dot_dimension_numbers<[1], [0], [0], [1], [0, 0, 1, 1], [], []>} : vector<32x36xf32>, vector<36x192xf32>, vector<32x192xf32> -> vector<32x192xf32>
    %10 = arith.addf %5, %9 : vector<32x192xf32>
    %11 = vector.extract_strided_slice %1 {offsets = [2, 0], sizes = [32, 36], strides = [1, 1]} : vector<36x36xf32> to vector<32x36xf32>
    %c2 = arith.constant 2 : index
    %c0_8 = arith.constant 0 : index
    %c0_9 = arith.constant 0 : index
    %12 = vector.load %arg2[%c2, %c0_8, %c0_9] : memref<5x36x192xf32, #tpu.memory_space<vmem>>, vector<1x36x192xf32>
    %13 = vector.shape_cast %12 : vector<1x36x192xf32> to vector<36x192xf32>
    %cst_10 = arith.constant dense<0.000000e+00> : vector<32x192xf32>
    %14 = tpu.matmul %11, %13, %cst_10 {dimension_numbers = #tpu.dot_dimension_numbers<[1], [0], [0], [1], [0, 0, 1, 1], [], []>} : vector<32x36xf32>, vector<36x192xf32>, vector<32x192xf32> -> vector<32x192xf32>
    %15 = arith.addf %10, %14 : vector<32x192xf32>
    %16 = vector.extract_strided_slice %1 {offsets = [3, 0], sizes = [32, 36], strides = [1, 1]} : vector<36x36xf32> to vector<32x36xf32>
    %c3 = arith.constant 3 : index
    %c0_11 = arith.constant 0 : index
    %c0_12 = arith.constant 0 : index
    %17 = vector.load %arg2[%c3, %c0_11, %c0_12] : memref<5x36x192xf32, #tpu.memory_space<vmem>>, vector<1x36x192xf32>
    %18 = vector.shape_cast %17 : vector<1x36x192xf32> to vector<36x192xf32>
    %cst_13 = arith.constant dense<0.000000e+00> : vector<32x192xf32>
    %19 = tpu.matmul %16, %18, %cst_13 {dimension_numbers = #tpu.dot_dimension_numbers<[1], [0], [0], [1], [0, 0, 1, 1], [], []>} : vector<32x36xf32>, vector<36x192xf32>, vector<32x192xf32> -> vector<32x192xf32>
    %20 = arith.addf %15, %19 : vector<32x192xf32>
    %21 = vector.extract_strided_slice %1 {offsets = [4, 0], sizes = [32, 36], strides = [1, 1]} : vector<36x36xf32> to vector<32x36xf32>
    %c4 = arith.constant 4 : index
    %c0_14 = arith.constant 0 : index
    %c0_15 = arith.constant 0 : index
    %22 = vector.load %arg2[%c4, %c0_14, %c0_15] : memref<5x36x192xf32, #tpu.memory_space<vmem>>, vector<1x36x192xf32>
    %23 = vector.shape_cast %22 : vector<1x36x192xf32> to vector<36x192xf32>
    %cst_16 = arith.constant dense<0.000000e+00> : vector<32x192xf32>
    %24 = tpu.matmul %21, %23, %cst_16 {dimension_numbers = #tpu.dot_dimension_numbers<[1], [0], [0], [1], [0, 0, 1, 1], [], []>} : vector<32x36xf32>, vector<36x192xf32>, vector<32x192xf32> -> vector<32x192xf32>
    %25 = arith.addf %20, %24 : vector<32x192xf32>
    %c0_17 = arith.constant 0 : index
    %c0_18 = arith.constant 0 : index
    %26 = vector.load %arg3[%c0_17, %c0_18] : memref<1x192xf32, #tpu.memory_space<vmem>>, vector<1x192xf32>
    %27 = vector.broadcast %26 : vector<1x192xf32> to vector<32x192xf32>
    %28 = arith.addf %25, %27 : vector<32x192xf32>
    %cst_19 = arith.constant 0.000000e+00 : f32
    %29 = vector.broadcast %cst_19 : f32 to vector<32x192xf32>
    %30 = arith.maximumf %28, %29 : vector<32x192xf32>
    %31 = vector.extract_strided_slice %30 {offsets = [0, 0], sizes = [31, 192], strides = [1, 1]} : vector<32x192xf32> to vector<31x192xf32>
    %32 = vector.extract_strided_slice %30 {offsets = [1, 0], sizes = [31, 192], strides = [1, 1]} : vector<32x192xf32> to vector<31x192xf32>
    %33 = arith.maximumf %31, %32 : vector<31x192xf32>
    %c0_20 = arith.constant 0 : index
    %c0_21 = arith.constant 0 : index
    %34 = vector.load %arg4[%c0_20, %c0_21] : memref<16x31xf32, #tpu.memory_space<vmem>>, vector<16x31xf32>
    %cst_22 = arith.constant dense<0.000000e+00> : vector<16x192xf32>
    %35 = tpu.matmul %34, %33, %cst_22 {dimension_numbers = #tpu.dot_dimension_numbers<[1], [0], [0], [1], [0, 0, 1, 1], [], []>} : vector<16x31xf32>, vector<31x192xf32>, vector<16x192xf32> -> vector<16x192xf32>
    %c0_23 = arith.constant 0 : index
    %c0_24 = arith.constant 0 : index
    %36 = vector.load %arg5[%c0_23, %c0_24] : memref<192x96xf32, #tpu.memory_space<vmem>>, vector<192x96xf32>
    %cst_25 = arith.constant dense<0.000000e+00> : vector<16x96xf32>
    %37 = tpu.matmul %35, %36, %cst_25 {dimension_numbers = #tpu.dot_dimension_numbers<[1], [0], [0], [1], [0, 0, 1, 1], [], []>} : vector<16x192xf32>, vector<192x96xf32>, vector<16x96xf32> -> vector<16x96xf32>
    %c0_26 = arith.constant 0 : index
    %c0_27 = arith.constant 0 : index
    %38 = vector.load %arg6[%c0_26, %c0_27] : memref<192x96xf32, #tpu.memory_space<vmem>>, vector<192x96xf32>
    %cst_28 = arith.constant dense<0.000000e+00> : vector<16x96xf32>
    %39 = tpu.matmul %35, %38, %cst_28 {dimension_numbers = #tpu.dot_dimension_numbers<[1], [0], [0], [1], [0, 0, 1, 1], [], []>} : vector<16x192xf32>, vector<192x96xf32>, vector<16x96xf32> -> vector<16x96xf32>
    %40 = arith.maximumf %37, %39 : vector<16x96xf32>
    %41 = vector.extract_strided_slice %40 {offsets = [0, 0], sizes = [12, 96], strides = [1, 1]} : vector<16x96xf32> to vector<12x96xf32>
    %c0_29 = arith.constant 0 : index
    %c0_30 = arith.constant 0 : index
    %c0_31 = arith.constant 0 : index
    %42 = vector.load %arg7[%c0_29, %c0_30, %c0_31] : memref<5x96x192xf32, #tpu.memory_space<vmem>>, vector<1x96x192xf32>
    %43 = vector.shape_cast %42 : vector<1x96x192xf32> to vector<96x192xf32>
    %cst_32 = arith.constant dense<0.000000e+00> : vector<12x192xf32>
    %44 = tpu.matmul %41, %43, %cst_32 {dimension_numbers = #tpu.dot_dimension_numbers<[1], [0], [0], [1], [0, 0, 1, 1], [], []>} : vector<12x96xf32>, vector<96x192xf32>, vector<12x192xf32> -> vector<12x192xf32>
    %45 = vector.extract_strided_slice %40 {offsets = [1, 0], sizes = [12, 96], strides = [1, 1]} : vector<16x96xf32> to vector<12x96xf32>
    %c1_33 = arith.constant 1 : index
    %c0_34 = arith.constant 0 : index
    %c0_35 = arith.constant 0 : index
    %46 = vector.load %arg7[%c1_33, %c0_34, %c0_35] : memref<5x96x192xf32, #tpu.memory_space<vmem>>, vector<1x96x192xf32>
    %47 = vector.shape_cast %46 : vector<1x96x192xf32> to vector<96x192xf32>
    %cst_36 = arith.constant dense<0.000000e+00> : vector<12x192xf32>
    %48 = tpu.matmul %45, %47, %cst_36 {dimension_numbers = #tpu.dot_dimension_numbers<[1], [0], [0], [1], [0, 0, 1, 1], [], []>} : vector<12x96xf32>, vector<96x192xf32>, vector<12x192xf32> -> vector<12x192xf32>
    %49 = arith.addf %44, %48 : vector<12x192xf32>
    %50 = vector.extract_strided_slice %40 {offsets = [2, 0], sizes = [12, 96], strides = [1, 1]} : vector<16x96xf32> to vector<12x96xf32>
    %c2_37 = arith.constant 2 : index
    %c0_38 = arith.constant 0 : index
    %c0_39 = arith.constant 0 : index
    %51 = vector.load %arg7[%c2_37, %c0_38, %c0_39] : memref<5x96x192xf32, #tpu.memory_space<vmem>>, vector<1x96x192xf32>
    %52 = vector.shape_cast %51 : vector<1x96x192xf32> to vector<96x192xf32>
    %cst_40 = arith.constant dense<0.000000e+00> : vector<12x192xf32>
    %53 = tpu.matmul %50, %52, %cst_40 {dimension_numbers = #tpu.dot_dimension_numbers<[1], [0], [0], [1], [0, 0, 1, 1], [], []>} : vector<12x96xf32>, vector<96x192xf32>, vector<12x192xf32> -> vector<12x192xf32>
    %54 = arith.addf %49, %53 : vector<12x192xf32>
    %55 = vector.extract_strided_slice %40 {offsets = [3, 0], sizes = [12, 96], strides = [1, 1]} : vector<16x96xf32> to vector<12x96xf32>
    %c3_41 = arith.constant 3 : index
    %c0_42 = arith.constant 0 : index
    %c0_43 = arith.constant 0 : index
    %56 = vector.load %arg7[%c3_41, %c0_42, %c0_43] : memref<5x96x192xf32, #tpu.memory_space<vmem>>, vector<1x96x192xf32>
    %57 = vector.shape_cast %56 : vector<1x96x192xf32> to vector<96x192xf32>
    %cst_44 = arith.constant dense<0.000000e+00> : vector<12x192xf32>
    %58 = tpu.matmul %55, %57, %cst_44 {dimension_numbers = #tpu.dot_dimension_numbers<[1], [0], [0], [1], [0, 0, 1, 1], [], []>} : vector<12x96xf32>, vector<96x192xf32>, vector<12x192xf32> -> vector<12x192xf32>
    %59 = arith.addf %54, %58 : vector<12x192xf32>
    %60 = vector.extract_strided_slice %40 {offsets = [4, 0], sizes = [12, 96], strides = [1, 1]} : vector<16x96xf32> to vector<12x96xf32>
    %c4_45 = arith.constant 4 : index
    %c0_46 = arith.constant 0 : index
    %c0_47 = arith.constant 0 : index
    %61 = vector.load %arg7[%c4_45, %c0_46, %c0_47] : memref<5x96x192xf32, #tpu.memory_space<vmem>>, vector<1x96x192xf32>
    %62 = vector.shape_cast %61 : vector<1x96x192xf32> to vector<96x192xf32>
    %cst_48 = arith.constant dense<0.000000e+00> : vector<12x192xf32>
    %63 = tpu.matmul %60, %62, %cst_48 {dimension_numbers = #tpu.dot_dimension_numbers<[1], [0], [0], [1], [0, 0, 1, 1], [], []>} : vector<12x96xf32>, vector<96x192xf32>, vector<12x192xf32> -> vector<12x192xf32>
    %64 = arith.addf %59, %63 : vector<12x192xf32>
    %c0_49 = arith.constant 0 : index
    %c0_50 = arith.constant 0 : index
    %65 = vector.load %arg8[%c0_49, %c0_50] : memref<1x192xf32, #tpu.memory_space<vmem>>, vector<1x192xf32>
    %66 = vector.broadcast %65 : vector<1x192xf32> to vector<12x192xf32>
    %67 = arith.addf %64, %66 : vector<12x192xf32>
    %cst_51 = arith.constant 0.000000e+00 : f32
    %68 = vector.broadcast %cst_51 : f32 to vector<12x192xf32>
    %69 = arith.maximumf %67, %68 : vector<12x192xf32>
    %70 = vector.extract_strided_slice %69 {offsets = [0, 0], sizes = [11, 192], strides = [1, 1]} : vector<12x192xf32> to vector<11x192xf32>
    %71 = vector.extract_strided_slice %69 {offsets = [1, 0], sizes = [11, 192], strides = [1, 1]} : vector<12x192xf32> to vector<11x192xf32>
    %72 = arith.maximumf %70, %71 : vector<11x192xf32>
    %c0_52 = arith.constant 0 : index
    %c0_53 = arith.constant 0 : index
    %73 = vector.load %arg9[%c0_52, %c0_53] : memref<6x11xf32, #tpu.memory_space<vmem>>, vector<6x11xf32>
    %cst_54 = arith.constant dense<0.000000e+00> : vector<6x192xf32>
    %74 = tpu.matmul %73, %72, %cst_54 {dimension_numbers = #tpu.dot_dimension_numbers<[1], [0], [0], [1], [0, 0, 1, 1], [], []>} : vector<6x11xf32>, vector<11x192xf32>, vector<6x192xf32> -> vector<6x192xf32>
    %c0_55 = arith.constant 0 : index
    %c0_56 = arith.constant 0 : index
    %75 = vector.load %arg10[%c0_55, %c0_56] : memref<192x96xf32, #tpu.memory_space<vmem>>, vector<192x96xf32>
    %cst_57 = arith.constant dense<0.000000e+00> : vector<6x96xf32>
    %76 = tpu.matmul %74, %75, %cst_57 {dimension_numbers = #tpu.dot_dimension_numbers<[1], [0], [0], [1], [0, 0, 1, 1], [], []>} : vector<6x192xf32>, vector<192x96xf32>, vector<6x96xf32> -> vector<6x96xf32>
    %c0_58 = arith.constant 0 : index
    %c0_59 = arith.constant 0 : index
    %77 = vector.load %arg11[%c0_58, %c0_59] : memref<192x96xf32, #tpu.memory_space<vmem>>, vector<192x96xf32>
    %cst_60 = arith.constant dense<0.000000e+00> : vector<6x96xf32>
    %78 = tpu.matmul %74, %77, %cst_60 {dimension_numbers = #tpu.dot_dimension_numbers<[1], [0], [0], [1], [0, 0, 1, 1], [], []>} : vector<6x192xf32>, vector<192x96xf32>, vector<6x96xf32> -> vector<6x96xf32>
    %79 = arith.maximumf %76, %78 : vector<6x96xf32>
    %c0_61 = arith.constant 0 : index
    %c0_62 = arith.constant 0 : index
    %80 = vector.load %arg13[%c0_61, %c0_62] : memref<1x120xf32, #tpu.memory_space<vmem>>, vector<1x120xf32>
    %81 = vector.extract_strided_slice %79 {offsets = [0, 0], sizes = [1, 96], strides = [1, 1]} : vector<6x96xf32> to vector<1x96xf32>
    %c0_63 = arith.constant 0 : index
    %c0_64 = arith.constant 0 : index
    %c0_65 = arith.constant 0 : index
    %82 = vector.load %arg12[%c0_63, %c0_64, %c0_65] : memref<6x96x120xf32, #tpu.memory_space<vmem>>, vector<1x96x120xf32>
    %83 = vector.shape_cast %82 : vector<1x96x120xf32> to vector<96x120xf32>
    %cst_66 = arith.constant dense<0.000000e+00> : vector<1x120xf32>
    %84 = tpu.matmul %81, %83, %cst_66 {dimension_numbers = #tpu.dot_dimension_numbers<[1], [0], [0], [1], [0, 0, 1, 1], [], []>} : vector<1x96xf32>, vector<96x120xf32>, vector<1x120xf32> -> vector<1x120xf32>
    %85 = arith.addf %80, %84 : vector<1x120xf32>
    %86 = vector.extract_strided_slice %79 {offsets = [1, 0], sizes = [1, 96], strides = [1, 1]} : vector<6x96xf32> to vector<1x96xf32>
    %c1_67 = arith.constant 1 : index
    %c0_68 = arith.constant 0 : index
    %c0_69 = arith.constant 0 : index
    %87 = vector.load %arg12[%c1_67, %c0_68, %c0_69] : memref<6x96x120xf32, #tpu.memory_space<vmem>>, vector<1x96x120xf32>
    %88 = vector.shape_cast %87 : vector<1x96x120xf32> to vector<96x120xf32>
    %cst_70 = arith.constant dense<0.000000e+00> : vector<1x120xf32>
    %89 = tpu.matmul %86, %88, %cst_70 {dimension_numbers = #tpu.dot_dimension_numbers<[1], [0], [0], [1], [0, 0, 1, 1], [], []>} : vector<1x96xf32>, vector<96x120xf32>, vector<1x120xf32> -> vector<1x120xf32>
    %90 = arith.addf %85, %89 : vector<1x120xf32>
    %91 = vector.extract_strided_slice %79 {offsets = [2, 0], sizes = [1, 96], strides = [1, 1]} : vector<6x96xf32> to vector<1x96xf32>
    %c2_71 = arith.constant 2 : index
    %c0_72 = arith.constant 0 : index
    %c0_73 = arith.constant 0 : index
    %92 = vector.load %arg12[%c2_71, %c0_72, %c0_73] : memref<6x96x120xf32, #tpu.memory_space<vmem>>, vector<1x96x120xf32>
    %93 = vector.shape_cast %92 : vector<1x96x120xf32> to vector<96x120xf32>
    %cst_74 = arith.constant dense<0.000000e+00> : vector<1x120xf32>
    %94 = tpu.matmul %91, %93, %cst_74 {dimension_numbers = #tpu.dot_dimension_numbers<[1], [0], [0], [1], [0, 0, 1, 1], [], []>} : vector<1x96xf32>, vector<96x120xf32>, vector<1x120xf32> -> vector<1x120xf32>
    %95 = arith.addf %90, %94 : vector<1x120xf32>
    %96 = vector.extract_strided_slice %79 {offsets = [3, 0], sizes = [1, 96], strides = [1, 1]} : vector<6x96xf32> to vector<1x96xf32>
    %c3_75 = arith.constant 3 : index
    %c0_76 = arith.constant 0 : index
    %c0_77 = arith.constant 0 : index
    %97 = vector.load %arg12[%c3_75, %c0_76, %c0_77] : memref<6x96x120xf32, #tpu.memory_space<vmem>>, vector<1x96x120xf32>
    %98 = vector.shape_cast %97 : vector<1x96x120xf32> to vector<96x120xf32>
    %cst_78 = arith.constant dense<0.000000e+00> : vector<1x120xf32>
    %99 = tpu.matmul %96, %98, %cst_78 {dimension_numbers = #tpu.dot_dimension_numbers<[1], [0], [0], [1], [0, 0, 1, 1], [], []>} : vector<1x96xf32>, vector<96x120xf32>, vector<1x120xf32> -> vector<1x120xf32>
    %100 = arith.addf %95, %99 : vector<1x120xf32>
    %101 = vector.extract_strided_slice %79 {offsets = [4, 0], sizes = [1, 96], strides = [1, 1]} : vector<6x96xf32> to vector<1x96xf32>
    %c4_79 = arith.constant 4 : index
    %c0_80 = arith.constant 0 : index
    %c0_81 = arith.constant 0 : index
    %102 = vector.load %arg12[%c4_79, %c0_80, %c0_81] : memref<6x96x120xf32, #tpu.memory_space<vmem>>, vector<1x96x120xf32>
    %103 = vector.shape_cast %102 : vector<1x96x120xf32> to vector<96x120xf32>
    %cst_82 = arith.constant dense<0.000000e+00> : vector<1x120xf32>
    %104 = tpu.matmul %101, %103, %cst_82 {dimension_numbers = #tpu.dot_dimension_numbers<[1], [0], [0], [1], [0, 0, 1, 1], [], []>} : vector<1x96xf32>, vector<96x120xf32>, vector<1x120xf32> -> vector<1x120xf32>
    %105 = arith.addf %100, %104 : vector<1x120xf32>
    %106 = vector.extract_strided_slice %79 {offsets = [5, 0], sizes = [1, 96], strides = [1, 1]} : vector<6x96xf32> to vector<1x96xf32>
    %c5 = arith.constant 5 : index
    %c0_83 = arith.constant 0 : index
    %c0_84 = arith.constant 0 : index
    %107 = vector.load %arg12[%c5, %c0_83, %c0_84] : memref<6x96x120xf32, #tpu.memory_space<vmem>>, vector<1x96x120xf32>
    %108 = vector.shape_cast %107 : vector<1x96x120xf32> to vector<96x120xf32>
    %cst_85 = arith.constant dense<0.000000e+00> : vector<1x120xf32>
    %109 = tpu.matmul %106, %108, %cst_85 {dimension_numbers = #tpu.dot_dimension_numbers<[1], [0], [0], [1], [0, 0, 1, 1], [], []>} : vector<1x96xf32>, vector<96x120xf32>, vector<1x120xf32> -> vector<1x120xf32>
    %110 = arith.addf %105, %109 : vector<1x120xf32>
    %cst_86 = arith.constant 0.000000e+00 : f32
    %111 = vector.broadcast %cst_86 : f32 to vector<1x120xf32>
    %112 = arith.maximumf %110, %111 : vector<1x120xf32>
    %c0_87 = arith.constant 0 : index
    %c0_88 = arith.constant 0 : index
    %113 = vector.load %arg14[%c0_87, %c0_88] : memref<120x128xf32, #tpu.memory_space<vmem>>, vector<120x128xf32>
    %cst_89 = arith.constant dense<0.000000e+00> : vector<1x128xf32>
    %114 = tpu.matmul %112, %113, %cst_89 {dimension_numbers = #tpu.dot_dimension_numbers<[1], [0], [0], [1], [0, 0, 1, 1], [], []>} : vector<1x120xf32>, vector<120x128xf32>, vector<1x128xf32> -> vector<1x128xf32>
    %c0_90 = arith.constant 0 : index
    %c0_91 = arith.constant 0 : index
    %115 = vector.load %arg15[%c0_90, %c0_91] : memref<1x128xf32, #tpu.memory_space<vmem>>, vector<1x128xf32>
    %116 = arith.addf %114, %115 : vector<1x128xf32>
    %cst_92 = arith.constant 0.000000e+00 : f32
    %117 = vector.broadcast %cst_92 : f32 to vector<1x128xf32>
    %118 = arith.maximumf %116, %117 : vector<1x128xf32>
    %c0_93 = arith.constant 0 : index
    %c0_94 = arith.constant 0 : index
    %119 = vector.load %arg16[%c0_93, %c0_94] : memref<128x128xf32, #tpu.memory_space<vmem>>, vector<128x128xf32>
    %cst_95 = arith.constant dense<0.000000e+00> : vector<1x128xf32>
    %120 = tpu.matmul %118, %119, %cst_95 {dimension_numbers = #tpu.dot_dimension_numbers<[1], [0], [0], [1], [0, 0, 1, 1], [], []>} : vector<1x128xf32>, vector<128x128xf32>, vector<1x128xf32> -> vector<1x128xf32>
    %c0_96 = arith.constant 0 : index
    %c0_97 = arith.constant 0 : index
    %121 = vector.load %arg17[%c0_96, %c0_97] : memref<1x128xf32, #tpu.memory_space<vmem>>, vector<1x128xf32>
    %122 = arith.addf %120, %121 : vector<1x128xf32>
    %c0_98 = arith.constant 0 : index
    %c0_99 = arith.constant 0 : index
    %c0_100 = arith.constant 0 : index
    %123 = vector.load %arg18[%c0_98, %c0_99, %c0_100] : memref<1x1x128xf32, #tpu.memory_space<vmem>>, vector<1x1x128xf32>
    %124 = vector.shape_cast %123 : vector<1x1x128xf32> to vector<1x128xf32>
    %125 = vector.shape_cast %122 : vector<1x128xf32> to vector<1x1x128xf32>
    tpu.vector_store %arg18[%c0_98, %c0_99, %c0_100], %125 {strides = array<i32>} : memref<1x1x128xf32, #tpu.memory_space<vmem>>, vector<1x1x128xf32>,
    return
  }
  func.func @transform_0(%arg0: i32) -> (i32, i32, i32) {
    %c0_i32 = arith.constant 0 : i32
    %c0_i32_0 = arith.constant 0 : i32
    %c0_i32_1 = arith.constant 0 : i32
    return %arg0, %c0_i32, %c0_i32_0 : i32, i32, i32
  }
  func.func @transform_1(%arg0: i32) -> (i32, i32, i32) {
    %c0_i32 = arith.constant 0 : i32
    %c0_i32_0 = arith.constant 0 : i32
    %c0_i32_1 = arith.constant 0 : i32
    %c0_i32_2 = arith.constant 0 : i32
    return %c0_i32, %c0_i32_0, %c0_i32_1 : i32, i32, i32
  }
  func.func @transform_2(%arg0: i32) -> (i32, i32) {
    %c0_i32 = arith.constant 0 : i32
    %c0_i32_0 = arith.constant 0 : i32
    %c0_i32_1 = arith.constant 0 : i32
    return %c0_i32, %c0_i32_0 : i32, i32
  }
  func.func @transform_3(%arg0: i32) -> (i32, i32) {
    %c0_i32 = arith.constant 0 : i32
    %c0_i32_0 = arith.constant 0 : i32
    %c0_i32_1 = arith.constant 0 : i32
    return %c0_i32, %c0_i32_0 : i32, i32
  }
  func.func @transform_4(%arg0: i32) -> (i32, i32) {
    %c0_i32 = arith.constant 0 : i32
    %c0_i32_0 = arith.constant 0 : i32
    %c0_i32_1 = arith.constant 0 : i32
    return %c0_i32, %c0_i32_0 : i32, i32
  }
  func.func @transform_5(%arg0: i32) -> (i32, i32) {
    %c0_i32 = arith.constant 0 : i32
    %c0_i32_0 = arith.constant 0 : i32
    %c0_i32_1 = arith.constant 0 : i32
    return %c0_i32, %c0_i32_0 : i32, i32
  }
  func.func @transform_6(%arg0: i32) -> (i32, i32, i32) {
    %c0_i32 = arith.constant 0 : i32
    %c0_i32_0 = arith.constant 0 : i32
    %c0_i32_1 = arith.constant 0 : i32
    %c0_i32_2 = arith.constant 0 : i32
    return %c0_i32, %c0_i32_0, %c0_i32_1 : i32, i32, i32
  }
  func.func @transform_7(%arg0: i32) -> (i32, i32) {
    %c0_i32 = arith.constant 0 : i32
    %c0_i32_0 = arith.constant 0 : i32
    %c0_i32_1 = arith.constant 0 : i32
    return %c0_i32, %c0_i32_0 : i32, i32
  }
  func.func @transform_8(%arg0: i32) -> (i32, i32) {
    %c0_i32 = arith.constant 0 : i32
    %c0_i32_0 = arith.constant 0 : i32
    %c0_i32_1 = arith.constant 0 : i32
    return %c0_i32, %c0_i32_0 : i32, i32
  }
  func.func @transform_9(%arg0: i32) -> (i32, i32) {
    %c0_i32 = arith.constant 0 : i32
    %c0_i32_0 = arith.constant 0 : i32
    %c0_i32_1 = arith.constant 0 : i32
    return %c0_i32, %c0_i32_0 : i32, i32
  }
  func.func @transform_10(%arg0: i32) -> (i32, i32) {
    %c0_i32 = arith.constant 0 : i32
    %c0_i32_0 = arith.constant 0 : i32
    %c0_i32_1 = arith.constant 0 : i32
    return %c0_i32, %c0_i32_0 : i32, i32
  }
  func.func @transform_11(%arg0: i32) -> (i32, i32, i32) {
    %c0_i32 = arith.constant 0 : i32
    %c0_i32_0 = arith.constant 0 : i32
    %c0_i32_1 = arith.constant 0 : i32
    %c0_i32_2 = arith.constant 0 : i32
    return %c0_i32, %c0_i32_0, %c0_i32_1 : i32, i32, i32
  }
  func.func @transform_12(%arg0: i32) -> (i32, i32) {
    %c0_i32 = arith.constant 0 : i32
    %c0_i32_0 = arith.constant 0 : i32
    %c0_i32_1 = arith.constant 0 : i32
    return %c0_i32, %c0_i32_0 : i32, i32
  }
  func.func @transform_13(%arg0: i32) -> (i32, i32) {
    %c0_i32 = arith.constant 0 : i32
    %c0_i32_0 = arith.constant 0 : i32
    %c0_i32_1 = arith.constant 0 : i32
    return %c0_i32, %c0_i32_0 : i32, i32
  }
  func.func @transform_14(%arg0: i32) -> (i32, i32) {
    %c0_i32 = arith.constant 0 : i32
    %c0_i32_0 = arith.constant 0 : i32
    %c0_i32_1 = arith.constant 0 : i32
    return %c0_i32, %c0_i32_0 : i32, i32
  }
  func.func @transform_15(%arg0: i32) -> (i32, i32) {
    %c0_i32 = arith.constant 0 : i32
    %c0_i32_0 = arith.constant 0 : i32
    %c0_i32_1 = arith.constant 0 : i32
    return %c0_i32, %c0_i32_0 : i32, i32
  }
  func.func @transform_16(%arg0: i32) -> (i32, i32) {
    %c0_i32 = arith.constant 0 : i32
    %c0_i32_0 = arith.constant 0 : i32
    %c0_i32_1 = arith.constant 0 : i32
    return %c0_i32, %c0_i32_0 : i32, i32
  }
  func.func @transform_17(%arg0: i32) -> (i32, i32, i32) {
    %c0_i32 = arith.constant 0 : i32
    %c0_i32_0 = arith.constant 0 : i32
    %c0_i32_1 = arith.constant 0 : i32
    return %arg0, %c0_i32, %c0_i32_0 : i32, i32, i32
  }
}

</mosaic_0001>

<llo_original>
// kernel: net_forward.1
$region0: #{net_forward.1}
  #allocation0 [shape = 'u32[]', space=smem, size = 0x4, offset = 0x4, fixed_abs, tag = 'smem constant byte address 0x4 - core index']
  #allocation1 [shape = 'u32[144,128]{1,0:T(1,128)}', space=vmem, size = 0x12000, scoped, tag = 'internal scratch']
  %s0 = inlined_call_operand.vmem [shape: f32[2,36,36], index: 0, kind: input, shape index: {}]
  %s1 = inlined_call_operand.hbm [shape: f32[5,36,192], index: 1, kind: input, shape index: {}]
  %s2 = inlined_call_operand.vmem [shape: f32[1,192], index: 2, kind: input, shape index: {}]
  %s3 = inlined_call_operand.hbm [shape: f32[16,31], index: 3, kind: input, shape index: {}]
  %s4 = inlined_call_operand.vmem [shape: f32[192,96], index: 4, kind: input, shape index: {}]
  %s5 = inlined_call_operand.hbm [shape: f32[192,96], index: 5, kind: input, shape index: {}]
  %s6 = inlined_call_operand.hbm [shape: f32[5,96,192], index: 6, kind: input, shape index: {}]
  %s7 = inlined_call_operand.hbm [shape: f32[1,192], index: 7, kind: input, shape index: {}]
  %s8 = inlined_call_operand.hbm [shape: f32[6,11], index: 8, kind: input, shape index: {}]
  %s9 = inlined_call_operand.hbm [shape: f32[192,96], index: 9, kind: input, shape index: {}]
  %s10 = inlined_call_operand.hbm [shape: f32[192,96], index: 10, kind: input, shape index: {}]
  %s11 = inlined_call_operand.hbm [shape: f32[6,96,120], index: 11, kind: input, shape index: {}]
  %s12 = inlined_call_operand.vmem [shape: f32[1,120], index: 12, kind: input, shape index: {}]
  %s13 = inlined_call_operand.hbm [shape: f32[120,128], index: 13, kind: input, shape index: {}]
  %s14 = inlined_call_operand.vmem [shape: f32[1,128], index: 14, kind: input, shape index: {}]
  %s15 = inlined_call_operand.vmem [shape: f32[128,128], index: 15, kind: input, shape index: {}]
  %s16 = inlined_call_operand.vmem [shape: f32[1,128], index: 16, kind: input, shape index: {}]
  %s17 = inlined_call_operand.hbm [shape: f32[2,1,128], index: 17, kind: output, shape index: {}]
  %s18 = sld [smem:[#allocation0]]
  $region141: #{net_forward.1} parent=0
    _
  %s20 = ssub.s32 1, %s18
  %s21 = scalar_select 0, %s20, %s18
  $region1: #{net_forward.1} parent=0
    #allocation2 [shape = 'u8[204800]{0}', space=vmem, size = 0x32000, scoped, tag = 'input window, operand 1, single buffered']
    #allocation3 [shape = 's32[2]{0}', space=sflag, size = 0x8, scoped, tag = 'scoped memory for net_forward.1']
    #allocation4 [shape = 's32[2]{0}', space=sflag, size = 0x8, scoped, tag = 'scoped memory for net_forward.1']
    #allocation5 [shape = 'u8[8192]{0}', space=vmem, size = 0x2000, scoped, tag = 'input window, operand 3, single buffered']
    #allocation6 [shape = 's32[1]{0}', space=sflag, size = 0x4, scoped, tag = 'scoped memory for net_forward.1']
    #allocation7 [shape = 'u8[98304]{0}', space=vmem, size = 0x18000, scoped, tag = 'input window, operand 5, single buffered']
    #allocation8 [shape = 'u8[491520]{0}', space=vmem, size = 0x78000, scoped, tag = 'input window, operand 6, single buffered']
    #allocation9 [shape = 's32[1]{0}', space=sflag, size = 0x4, scoped, tag = 'scoped memory for net_forward.1']
    #allocation10 [shape = 'u8[1024]{0}', space=vmem, size = 0x400, scoped, tag = 'input window, operand 7, single buffered']
    #allocation11 [shape = 'u8[4096]{0}', space=vmem, size = 0x1000, scoped, tag = 'input window, operand 8, single buffered']
    #allocation12 [shape = 's32[1]{0}', space=sflag, size = 0x4, scoped, tag = 'scoped memory for net_forward.1']
    #allocation13 [shape = 'u8[98304]{0}', space=vmem, size = 0x18000, scoped, tag = 'input window, operand 9, single buffered']
    #allocation14 [shape = 'u8[98304]{0}', space=vmem, size = 0x18000, scoped, tag = 'input window, operand 10, single buffered']
    #allocation15 [shape = 's32[1]{0}', space=sflag, size = 0x4, scoped, tag = 'scoped memory for net_forward.1']
    #allocation16 [shape = 'u8[294912]{0}', space=vmem, size = 0x48000, scoped, tag = 'input window, operand 11, single buffered']
    #allocation17 [shape = 'u8[61440]{0}', space=vmem, size = 0xf000, scoped, tag = 'input window, operand 13, single buffered']
    #allocation18 [shape = 's32[1]{0}', space=sflag, size = 0x4, scoped, tag = 'scoped memory for net_forward.1']
    #allocation19 [shape = 'u8[1024]{0}', space=vmem, size = 0x400, scoped, tag = 'output window, operand 0']
    %22 = vsyncpa [#allocation3], 0
    %23 = vsyncpa [#allocation6], 0
    %24 = vsyncpa [#allocation9], 0
    %25 = vsyncpa [#allocation12], 0
    %26 = vsyncpa [#allocation15], 0
    %27 = vsyncpa [#allocation18], 0
    %28 = vsyncpa [#allocation4], 0
    %s29 = scalar_lea.sflag [#allocation4], 1
    %30 = vsyncpa %s29, 0
    loop: start=0, step=1, limit=4
    $region2: #{net_forward.1} parent=1 // loop_pre_header
      _
    $region3: #{net_forward.1} parent=1 // loop_header
      %s32 = sphi 0, %s36
      %p33 = scmp.ge.s32.totalorder %s32, 4
      %s42 = sphi 0, %s44
      %s45 = sphi 0, %s42
      %s46 = sphi 0, %s45
      %s62 = sphi 0, %s46
      %s66 = sphi 0, %s66
      %s68 = sphi 0, %s66
      %s69 = sphi 0, %s68
      %s83 = sphi 0, %s69
      %s87 = sphi 0, %s87
      %s89 = sphi 0, %s87
      %s90 = sphi 0, %s89
      %s104 = sphi 0, %s90
      %s108 = sphi 0, %s108
      %s110 = sphi 0, %s108
      %s111 = sphi 0, %s110
      %s125 = sphi 0, %s111
      %s129 = sphi 0, %s129
      %s131 = sphi 0, %s129
      %s132 = sphi 0, %s131
      %s146 = sphi 0, %s132
      %s150 = sphi 0, %s150
      %s152 = sphi 0, %s150
      %s153 = sphi 0, %s152
      %s167 = sphi 0, %s153
      %s171 = sphi 0, %s171
      %s173 = sphi 0, %s171
      %s174 = sphi 0, %s173
      %s188 = sphi 0, %s174
      %s192 = sphi 0, %s192
      %s194 = sphi 0, %s192
      %s195 = sphi 0, %s194
      %s209 = sphi 0, %s195
      %s213 = sphi 0, %s213
      %s215 = sphi 0, %s213
      %s216 = sphi 0, %s215
      %s230 = sphi 0, %s216
      %s234 = sphi 0, %s234
      %s236 = sphi 0, %s234
      %s237 = sphi 0, %s236
      %s251 = sphi 0, %s237
      %s255 = sphi 0, %s255
      %s257 = sphi 0, %s255
      %s258 = sphi 0, %s257
      %s272 = sphi 0, %s258
      %s276 = sphi 0, %s276
      %s278 = sphi 0, %s276
      %s279 = sphi 0, %s278
      %s293 = sphi 0, %s279
      %s297 = sphi 0, %s297
      %s299 = sphi 0, %s297
      %s300 = sphi 0, %s299
      %s314 = sphi 0, %s300
      %s318 = sphi 0, %s318
      %s320 = sphi 0, %s318
      %s321 = sphi 0, %s320
      %s335 = sphi 0, %s321
      %s339 = sphi 0, %s339
      %s341 = sphi 0, %s339
      %s342 = sphi 0, %s341
      %s356 = sphi 0, %s342
      %s360 = sphi 0, %s360
      %s362 = sphi 0, %s360
      %s363 = sphi 0, %s362
      %s377 = sphi 0, %s363
      %s381 = sphi 0, %s381
      %s383 = sphi 0, %s381
      %s384 = sphi 0, %s383
      %s398 = sphi 0, %s384
      %s404 = sphi 0, %s406
      %s407 = sphi 0, %s404
      %s408 = sphi 0, %s407
      %s424 = sphi 0, %s408
    $region4: #{net_forward.1} parent=1 // loop_header_branch
      %35 = sbr.rel (%p33) target = $region8
    $region5: #{net_forward.1} parent=1 // loop_body
      %s37 = ssub.s32 %s32, 1
      %s38 = ssub.s32 %s32, 2
      %s39 = sadd.s32 %s32, 1
      %s40 = ssub.s32 %s32, %s39
      %p41 = scmp.eq.s32.totalorder %s40, 0
      %s43 = sadd.s32 %s42, 1
      %s44 = scalar_select %p41, %s42, %s43
      %p47 = pneg %p41
      %p48 = scmp.eq.s32.totalorder %s32, 1
      %p49 = por %p47, %p48
      %p50 = scmp.ne.s32.totalorder %s42, %s45
      %p51 = scmp.eq.s32.totalorder %s32, 0
      %p52 = por %p50, %p51
      %p53 = scmp.ne.s32.totalorder %s42, %s45
      %p54 = scmp.eq.s32.totalorder %s37, 1
      %p55 = por %p53, %p54
      %p56 = scmp.ne.s32.totalorder %s45, %s46
      %p57 = scmp.eq.s32.totalorder %s37, 0
      %p58 = por %p56, %p57
      %p59 = scmp.ne.s32.totalorder %s45, %s46
      %p60 = scmp.eq.s32.totalorder %s38, 1
      %p61 = por %p59, %p60
      %p63 = scmp.ne.s32.totalorder %s46, %s62
      %p64 = scmp.eq.s32.totalorder %s38, 0
      %p65 = por %p63, %p64
      %s67 = sadd.s32 %s66, 1
      %p70 = scmp.eq.s32.totalorder %s32, 1
      %p71 = scmp.ne.s32.totalorder %s66, %s68
      %p72 = scmp.eq.s32.totalorder %s32, 0
      %p73 = por %p71, %p72
      %p74 = scmp.ne.s32.totalorder %s66, %s68
      %p75 = scmp.eq.s32.totalorder %s37, 1
      %p76 = por %p74, %p75
      %p77 = scmp.ne.s32.totalorder %s68, %s69
      %p78 = scmp.eq.s32.totalorder %s37, 0
      %p79 = por %p77, %p78
      %p80 = scmp.ne.s32.totalorder %s68, %s69
      %p81 = scmp.eq.s32.totalorder %s38, 1
      %p82 = por %p80, %p81
      %p84 = scmp.ne.s32.totalorder %s69, %s83
      %p85 = scmp.eq.s32.totalorder %s38, 0
      %p86 = por %p84, %p85
      %s88 = sadd.s32 %s87, 1
      %p91 = scmp.eq.s32.totalorder %s32, 1
      %p92 = scmp.ne.s32.totalorder %s87, %s89
      %p93 = scmp.eq.s32.totalorder %s32, 0
      %p94 = por %p92, %p93
      %p95 = scmp.ne.s32.totalorder %s87, %s89
      %p96 = scmp.eq.s32.totalorder %s37, 1
      %p97 = por %p95, %p96
      %p98 = scmp.ne.s32.totalorder %s89, %s90
      %p99 = scmp.eq.s32.totalorder %s37, 0
      %p100 = por %p98, %p99
      %p101 = scmp.ne.s32.totalorder %s89, %s90
      %p102 = scmp.eq.s32.totalorder %s38, 1
      %p103 = por %p101, %p102
      %p105 = scmp.ne.s32.totalorder %s90, %s104
      %p106 = scmp.eq.s32.totalorder %s38, 0
      %p107 = por %p105, %p106
      %s109 = sadd.s32 %s108, 1
      %p112 = scmp.eq.s32.totalorder %s32, 1
      %p113 = scmp.ne.s32.totalorder %s108, %s110
      %p114 = scmp.eq.s32.totalorder %s32, 0
      %p115 = por %p113, %p114
      %p116 = scmp.ne.s32.totalorder %s108, %s110
      %p117 = scmp.eq.s32.totalorder %s37, 1
      %p118 = por %p116, %p117
      %p119 = scmp.ne.s32.totalorder %s110, %s111
      %p120 = scmp.eq.s32.totalorder %s37, 0
      %p121 = por %p119, %p120
      %p122 = scmp.ne.s32.totalorder %s110, %s111
      %p123 = scmp.eq.s32.totalorder %s38, 1
      %p124 = por %p122, %p123
      %p126 = scmp.ne.s32.totalorder %s111, %s125
      %p127 = scmp.eq.s32.totalorder %s38, 0
      %p128 = por %p126, %p127
      %s130 = sadd.s32 %s129, 1
      %p133 = scmp.eq.s32.totalorder %s32, 1
      %p134 = scmp.ne.s32.totalorder %s129, %s131
      %p135 = scmp.eq.s32.totalorder %s32, 0
      %p136 = por %p134, %p135
      %p137 = scmp.ne.s32.totalorder %s129, %s131
      %p138 = scmp.eq.s32.totalorder %s37, 1
      %p139 = por %p137, %p138
      %p140 = scmp.ne.s32.totalorder %s131, %s132
      %p141 = scmp.eq.s32.totalorder %s37, 0
      %p142 = por %p140, %p141
      %p143 = scmp.ne.s32.totalorder %s131, %s132
      %p144 = scmp.eq.s32.totalorder %s38, 1
      %p145 = por %p143, %p144
      %p147 = scmp.ne.s32.totalorder %s132, %s146
      %p148 = scmp.eq.s32.totalorder %s38, 0
      %p149 = por %p147, %p148
      %s151 = sadd.s32 %s150, 1
      %p154 = scmp.eq.s32.totalorder %s32, 1
      %p155 = scmp.ne.s32.totalorder %s150, %s152
      %p156 = scmp.eq.s32.totalorder %s32, 0
      %p157 = por %p155, %p156
      %p158 = scmp.ne.s32.totalorder %s150, %s152
      %p159 = scmp.eq.s32.totalorder %s37, 1
      %p160 = por %p158, %p159
      %p161 = scmp.ne.s32.totalorder %s152, %s153
      %p162 = scmp.eq.s32.totalorder %s37, 0
      %p163 = por %p161, %p162
      %p164 = scmp.ne.s32.totalorder %s152, %s153
      %p165 = scmp.eq.s32.totalorder %s38, 1
      %p166 = por %p164, %p165
      %p168 = scmp.ne.s32.totalorder %s153, %s167
      %p169 = scmp.eq.s32.totalorder %s38, 0
      %p170 = por %p168, %p169
      %s172 = sadd.s32 %s171, 1
      %p175 = scmp.eq.s32.totalorder %s32, 1
      %p176 = scmp.ne.s32.totalorder %s171, %s173
      %p177 = scmp.eq.s32.totalorder %s32, 0
      %p178 = por %p176, %p177
      %p179 = scmp.ne.s32.totalorder %s171, %s173
      %p180 = scmp.eq.s32.totalorder %s37, 1
      %p181 = por %p179, %p180
      %p182 = scmp.ne.s32.totalorder %s173, %s174
      %p183 = scmp.eq.s32.totalorder %s37, 0
      %p184 = por %p182, %p183
      %p185 = scmp.ne.s32.totalorder %s173, %s174
      %p186 = scmp.eq.s32.totalorder %s38, 1
      %p187 = por %p185, %p186
      %p189 = scmp.ne.s32.totalorder %s174, %s188
      %p190 = scmp.eq.s32.totalorder %s38, 0
      %p191 = por %p189, %p190
      %s193 = sadd.s32 %s192, 1
      %p196 = scmp.eq.s32.totalorder %s32, 1
      %p197 = scmp.ne.s32.totalorder %s192, %s194
      %p198 = scmp.eq.s32.totalorder %s32, 0
      %p199 = por %p197, %p198
      %p200 = scmp.ne.s32.totalorder %s192, %s194
      %p201 = scmp.eq.s32.totalorder %s37, 1
      %p202 = por %p200, %p201
      %p203 = scmp.ne.s32.totalorder %s194, %s195
      %p204 = scmp.eq.s32.totalorder %s37, 0
      %p205 = por %p203, %p204
      %p206 = scmp.ne.s32.totalorder %s194, %s195
      %p207 = scmp.eq.s32.totalorder %s38, 1
      %p208 = por %p206, %p207
      %p210 = scmp.ne.s32.totalorder %s195, %s209
      %p211 = scmp.eq.s32.totalorder %s38, 0
      %p212 = por %p210, %p211
      %s214 = sadd.s32 %s213, 1
      %p217 = scmp.eq.s32.totalorder %s32, 1
      %p218 = scmp.ne.s32.totalorder %s213, %s215
      %p219 = scmp.eq.s32.totalorder %s32, 0
      %p220 = por %p218, %p219
      %p221 = scmp.ne.s32.totalorder %s213, %s215
      %p222 = scmp.eq.s32.totalorder %s37, 1
      %p223 = por %p221, %p222
      %p224 = scmp.ne.s32.totalorder %s215, %s216
      %p225 = scmp.eq.s32.totalorder %s37, 0
      %p226 = por %p224, %p225
      %p227 = scmp.ne.s32.totalorder %s215, %s216
      %p228 = scmp.eq.s32.totalorder %s38, 1
      %p229 = por %p227, %p228
      %p231 = scmp.ne.s32.totalorder %s216, %s230
      %p232 = scmp.eq.s32.totalorder %s38, 0
      %p233 = por %p231, %p232
      %s235 = sadd.s32 %s234, 1
      %p238 = scmp.eq.s32.totalorder %s32, 1
      %p239 = scmp.ne.s32.totalorder %s234, %s236
      %p240 = scmp.eq.s32.totalorder %s32, 0
      %p241 = por %p239, %p240
      %p242 = scmp.ne.s32.totalorder %s234, %s236
      %p243 = scmp.eq.s32.totalorder %s37, 1
      %p244 = por %p242, %p243
      %p245 = scmp.ne.s32.totalorder %s236, %s237
      %p246 = scmp.eq.s32.totalorder %s37, 0
      %p247 = por %p245, %p246
      %p248 = scmp.ne.s32.totalorder %s236, %s237
      %p249 = scmp.eq.s32.totalorder %s38, 1
      %p250 = por %p248, %p249
      %p252 = scmp.ne.s32.totalorder %s237, %s251
      %p253 = scmp.eq.s32.totalorder %s38, 0
      %p254 = por %p252, %p253
      %s256 = sadd.s32 %s255, 1
      %p259 = scmp.eq.s32.totalorder %s32, 1
      %p260 = scmp.ne.s32.totalorder %s255, %s257
      %p261 = scmp.eq.s32.totalorder %s32, 0
      %p262 = por %p260, %p261
      %p263 = scmp.ne.s32.totalorder %s255, %s257
      %p264 = scmp.eq.s32.totalorder %s37, 1
      %p265 = por %p263, %p264
      %p266 = scmp.ne.s32.totalorder %s257, %s258
      %p267 = scmp.eq.s32.totalorder %s37, 0
      %p268 = por %p266, %p267
      %p269 = scmp.ne.s32.totalorder %s257, %s258
      %p270 = scmp.eq.s32.totalorder %s38, 1
      %p271 = por %p269, %p270
      %p273 = scmp.ne.s32.totalorder %s258, %s272
      %p274 = scmp.eq.s32.totalorder %s38, 0
      %p275 = por %p273, %p274
      %s277 = sadd.s32 %s276, 1
      %p280 = scmp.eq.s32.totalorder %s32, 1
      %p281 = scmp.ne.s32.totalorder %s276, %s278
      %p282 = scmp.eq.s32.totalorder %s32, 0
      %p283 = por %p281, %p282
      %p284 = scmp.ne.s32.totalorder %s276, %s278
      %p285 = scmp.eq.s32.totalorder %s37, 1
      %p286 = por %p284, %p285
      %p287 = scmp.ne.s32.totalorder %s278, %s279
      %p288 = scmp.eq.s32.totalorder %s37, 0
      %p289 = por %p287, %p288
      %p290 = scmp.ne.s32.totalorder %s278, %s279
      %p291 = scmp.eq.s32.totalorder %s38, 1
      %p292 = por %p290, %p291
      %p294 = scmp.ne.s32.totalorder %s279, %s293
      %p295 = scmp.eq.s32.totalorder %s38, 0
      %p296 = por %p294, %p295
      %s298 = sadd.s32 %s297, 1
      %p301 = scmp.eq.s32.totalorder %s32, 1
      %p302 = scmp.ne.s32.totalorder %s297, %s299
      %p303 = scmp.eq.s32.totalorder %s32, 0
      %p304 = por %p302, %p303
      %p305 = scmp.ne.s32.totalorder %s297, %s299
      %p306 = scmp.eq.s32.totalorder %s37, 1
      %p307 = por %p305, %p306
      %p308 = scmp.ne.s32.totalorder %s299, %s300
      %p309 = scmp.eq.s32.totalorder %s37, 0
      %p310 = por %p308, %p309
      %p311 = scmp.ne.s32.totalorder %s299, %s300
      %p312 = scmp.eq.s32.totalorder %s38, 1
      %p313 = por %p311, %p312
      %p315 = scmp.ne.s32.totalorder %s300, %s314
      %p316 = scmp.eq.s32.totalorder %s38, 0
      %p317 = por %p315, %p316
      %s319 = sadd.s32 %s318, 1
      %p322 = scmp.eq.s32.totalorder %s32, 1
      %p323 = scmp.ne.s32.totalorder %s318, %s320
      %p324 = scmp.eq.s32.totalorder %s32, 0
      %p325 = por %p323, %p324
      %p326 = scmp.ne.s32.totalorder %s318, %s320
      %p327 = scmp.eq.s32.totalorder %s37, 1
      %p328 = por %p326, %p327
      %p329 = scmp.ne.s32.totalorder %s320, %s321
      %p330 = scmp.eq.s32.totalorder %s37, 0
      %p331 = por %p329, %p330
      %p332 = scmp.ne.s32.totalorder %s320, %s321
      %p333 = scmp.eq.s32.totalorder %s38, 1
      %p334 = por %p332, %p333
      %p336 = scmp.ne.s32.totalorder %s321, %s335
      %p337 = scmp.eq.s32.totalorder %s38, 0
      %p338 = por %p336, %p337
      %s340 = sadd.s32 %s339, 1
      %p343 = scmp.eq.s32.totalorder %s32, 1
      %p344 = scmp.ne.s32.totalorder %s339, %s341
      %p345 = scmp.eq.s32.totalorder %s32, 0
      %p346 = por %p344, %p345
      %p347 = scmp.ne.s32.totalorder %s339, %s341
      %p348 = scmp.eq.s32.totalorder %s37, 1
      %p349 = por %p347, %p348
      %p350 = scmp.ne.s32.totalorder %s341, %s342
      %p351 = scmp.eq.s32.totalorder %s37, 0
      %p352 = por %p350, %p351
      %p353 = scmp.ne.s32.totalorder %s341, %s342
      %p354 = scmp.eq.s32.totalorder %s38, 1
      %p355 = por %p353, %p354
      %p357 = scmp.ne.s32.totalorder %s342, %s356
      %p358 = scmp.eq.s32.totalorder %s38, 0
      %p359 = por %p357, %p358
      %s361 = sadd.s32 %s360, 1
      %p364 = scmp.eq.s32.totalorder %s32, 1
      %p365 = scmp.ne.s32.totalorder %s360, %s362
      %p366 = scmp.eq.s32.totalorder %s32, 0
      %p367 = por %p365, %p366
      %p368 = scmp.ne.s32.totalorder %s360, %s362
      %p369 = scmp.eq.s32.totalorder %s37, 1
      %p370 = por %p368, %p369
      %p371 = scmp.ne.s32.totalorder %s362, %s363
      %p372 = scmp.eq.s32.totalorder %s37, 0
      %p373 = por %p371, %p372
      %p374 = scmp.ne.s32.totalorder %s362, %s363
      %p375 = scmp.eq.s32.totalorder %s38, 1
      %p376 = por %p374, %p375
      %p378 = scmp.ne.s32.totalorder %s363, %s377
      %p379 = scmp.eq.s32.totalorder %s38, 0
      %p380 = por %p378, %p379
      %s382 = sadd.s32 %s381, 1
      %p385 = scmp.eq.s32.totalorder %s32, 1
      %p386 = scmp.ne.s32.totalorder %s381, %s383
      %p387 = scmp.eq.s32.totalorder %s32, 0
      %p388 = por %p386, %p387
      %p389 = scmp.ne.s32.totalorder %s381, %s383
      %p390 = scmp.eq.s32.totalorder %s37, 1
      %p391 = por %p389, %p390
      %p392 = scmp.ne.s32.totalorder %s383, %s384
      %p393 = scmp.eq.s32.totalorder %s37, 0
      %p394 = por %p392, %p393
      %p395 = scmp.ne.s32.totalorder %s383, %s384
      %p396 = scmp.eq.s32.totalorder %s38, 1
      %p397 = por %p395, %p396
      %p399 = scmp.ne.s32.totalorder %s384, %s398
      %p400 = scmp.eq.s32.totalorder %s38, 0
      %p401 = por %p399, %p400
      %s402 = ssub.s32 %s32, %s39
      %p403 = scmp.eq.s32.totalorder %s402, 0
      %s405 = sadd.s32 %s404, 1
      %s406 = scalar_select %p403, %s404, %s405
      %p409 = pneg %p403
      %p410 = scmp.eq.s32.totalorder %s32, 1
      %p411 = por %p409, %p410
      %p412 = scmp.ne.s32.totalorder %s404, %s407
      %p413 = scmp.eq.s32.totalorder %s32, 0
      %p414 = por %p412, %p413
      %p415 = scmp.ne.s32.totalorder %s404, %s407
      %p416 = scmp.eq.s32.totalorder %s37, 1
      %p417 = por %p415, %p416
      %p418 = scmp.ne.s32.totalorder %s407, %s408
      %p419 = scmp.eq.s32.totalorder %s37, 0
      %p420 = por %p418, %p419
      %p421 = scmp.ne.s32.totalorder %s407, %s408
      %p422 = scmp.eq.s32.totalorder %s38, 1
      %p423 = por %p421, %p422
      %p425 = scmp.ne.s32.totalorder %s408, %s424
      %p426 = scmp.eq.s32.totalorder %s38, 0
      %p427 = por %p425, %p426
      %p428 = scmp.le.s32.totalorder 1, %s32
      %p429 = scmp.lt.s32.totalorder %s32, 3
      %p430 = pnand %p428, %p429
      %p431 = pneg %p430
      // Predicated region
      $region9: #{net_forward.1} parent=5 // pred_check
        _
      $region10: #{net_forward.1} parent=5 // pred_check_branch
        %433 = sbr.rel (%p430) target = $region12
      $region11: #{net_forward.1} parent=5 // pred_region
        %s434 = ssub.s32 %s32, 1
        // Predicated region
        $region13: #{net_forward.1} parent=11 // pred_check
          %p435 = pneg %p79
        $region14: #{net_forward.1} parent=11 // pred_check_branch
          %437 = sbr.rel (%p435) target = $region16
        $region15: #{net_forward.1} parent=11 // pred_region
          %s439 = ssub.s32 6400, 6400
          %440 = vsyncadd [#allocation3], %s439
          %s441 = sshll.u32 [#allocation2], 4
          %s442 = int_to_ptr.vmem [resolvable:$true] %s441
          %447 = dma.hbm_to_vmem [thread:$0]  %s1, 6400, %s442, [#allocation3], 256, 256, 16
        $region16: #{net_forward.1} parent=11 // pred_fallthru
          _
        // Predicated region
        $region17: #{net_forward.1} parent=11 // pred_check
          %p448 = pneg %p100
        $region18: #{net_forward.1} parent=11 // pred_check_branch
          %450 = sbr.rel (%p448) target = $region20
        $region19: #{net_forward.1} parent=11 // pred_region
          _
        $region20: #{net_forward.1} parent=11 // pred_fallthru
          _
        // Predicated region
        $region21: #{net_forward.1} parent=11 // pred_check
          %p451 = pneg %p121
        $region22: #{net_forward.1} parent=11 // pred_check_branch
          %453 = sbr.rel (%p451) target = $region24
        $region23: #{net_forward.1} parent=11 // pred_region
          %s455 = ssub.s32 256, 256
          %456 = vsyncadd [#allocation6], %s455
          %s457 = sshll.u32 [#allocation5], 4
          %s458 = int_to_ptr.vmem [resolvable:$true] %s457
          %463 = dma.hbm_to_vmem [thread:$0]  %s3, 256, %s458, [#allocation6], 128, 128, 8
        $region24: #{net_forward.1} parent=11 // pred_fallthru
          _
        // Predicated region
        $region25: #{net_forward.1} parent=11 // pred_check
          %p464 = pneg %p142
        $region26: #{net_forward.1} parent=11 // pred_check_branch
          %466 = sbr.rel (%p464) target = $region28
        $region27: #{net_forward.1} parent=11 // pred_region
          _
        $region28: #{net_forward.1} parent=11 // pred_fallthru
          _
        // Predicated region
        $region29: #{net_forward.1} parent=11 // pred_check
          %p467 = pneg %p163
        $region30: #{net_forward.1} parent=11 // pred_check_branch
          %469 = sbr.rel (%p467) target = $region32
        $region31: #{net_forward.1} parent=11 // pred_region
          %s471 = ssub.s32 3072, 3072
          %472 = vsyncadd [#allocation6], %s471
          %s473 = sshll.u32 [#allocation7], 4
          %s474 = int_to_ptr.vmem [resolvable:$true] %s473
          %479 = dma.hbm_to_vmem [thread:$0]  %s5, 3072, %s474, [#allocation6], 128, 128, 8
        $region32: #{net_forward.1} parent=11 // pred_fallthru
          _
        // Predicated region
        $region33: #{net_forward.1} parent=11 // pred_check
          %p480 = pneg %p184
        $region34: #{net_forward.1} parent=11 // pred_check_branch
          %482 = sbr.rel (%p480) target = $region36
        $region35: #{net_forward.1} parent=11 // pred_region
          %s484 = ssub.s32 15360, 15360
          %485 = vsyncadd [#allocation9], %s484
          %s486 = sshll.u32 [#allocation8], 4
          %s487 = int_to_ptr.vmem [resolvable:$true] %s486
          %492 = dma.hbm_to_vmem [thread:$0]  %s6, 15360, %s487, [#allocation9], 256, 256, 16
        $region36: #{net_forward.1} parent=11 // pred_fallthru
          _
        // Predicated region
        $region37: #{net_forward.1} parent=11 // pred_check
          %p493 = pneg %p205
        $region38: #{net_forward.1} parent=11 // pred_check_branch
          %495 = sbr.rel (%p493) target = $region40
        $region39: #{net_forward.1} parent=11 // pred_region
          %s497 = ssub.s32 32, 32
          %498 = vsyncadd [#allocation9], %s497
          %s500 = sshll.u32 [#allocation10], 4
          %s501 = int_to_ptr.vmem [resolvable:$true] %s500
          %503 = dma.hbm_to_vmem [thread:$0]  %s7, 32, %s501, [#allocation9]
        $region40: #{net_forward.1} parent=11 // pred_fallthru
          _
        // Predicated region
        $region41: #{net_forward.1} parent=11 // pred_check
          %p504 = pneg %p226
        $region42: #{net_forward.1} parent=11 // pred_check_branch
          %506 = sbr.rel (%p504) target = $region44
        $region43: #{net_forward.1} parent=11 // pred_region
          %s508 = ssub.s32 128, 128
          %509 = vsyncadd [#allocation12], %s508
          %s511 = sshll.u32 [#allocation11], 4
          %s512 = int_to_ptr.vmem [resolvable:$true] %s511
          %514 = dma.hbm_to_vmem [thread:$0]  %s8, 128, %s512, [#allocation12]
        $region44: #{net_forward.1} parent=11 // pred_fallthru
          _
        // Predicated region
        $region45: #{net_forward.1} parent=11 // pred_check
          %p515 = pneg %p247
        $region46: #{net_forward.1} parent=11 // pred_check_branch
          %517 = sbr.rel (%p515) target = $region48
        $region47: #{net_forward.1} parent=11 // pred_region
          %s519 = ssub.s32 3072, 3072
          %520 = vsyncadd [#allocation12], %s519
          %s521 = sshll.u32 [#allocation13], 4
          %s522 = int_to_ptr.vmem [resolvable:$true] %s521
          %527 = dma.hbm_to_vmem [thread:$0]  %s9, 3072, %s522, [#allocation12], 128, 128, 8
        $region48: #{net_forward.1} parent=11 // pred_fallthru
          _
        // Predicated region
        $region49: #{net_forward.1} parent=11 // pred_check
          %p528 = pneg %p268
        $region50: #{net_forward.1} parent=11 // pred_check_branch
          %530 = sbr.rel (%p528) target = $region52
        $region51: #{net_forward.1} parent=11 // pred_region
          %s532 = ssub.s32 3072, 3072
          %533 = vsyncadd [#allocation15], %s532
          %s534 = sshll.u32 [#allocation14], 4
          %s535 = int_to_ptr.vmem [resolvable:$true] %s534
          %540 = dma.hbm_to_vmem [thread:$0]  %s10, 3072, %s535, [#allocation15], 128, 128, 8
        $region52: #{net_forward.1} parent=11 // pred_fallthru
          _
        // Predicated region
        $region53: #{net_forward.1} parent=11 // pred_check
          %p541 = pneg %p289
        $region54: #{net_forward.1} parent=11 // pred_check_branch
          %543 = sbr.rel (%p541) target = $region56
        $region55: #{net_forward.1} parent=11 // pred_region
          %s545 = ssub.s32 9216, 9216
          %546 = vsyncadd [#allocation15], %s545
          %s547 = sshll.u32 [#allocation16], 4
          %s548 = int_to_ptr.vmem [resolvable:$true] %s547
          %553 = dma.hbm_to_vmem [thread:$0]  %s11, 9216, %s548, [#allocation15], 128, 128, 8
        $region56: #{net_forward.1} parent=11 // pred_fallthru
          _
        // Predicated region
        $region57: #{net_forward.1} parent=11 // pred_check
          %p554 = pneg %p310
        $region58: #{net_forward.1} parent=11 // pred_check_branch
          %556 = sbr.rel (%p554) target = $region60
        $region59: #{net_forward.1} parent=11 // pred_region
          _
        $region60: #{net_forward.1} parent=11 // pred_fallthru
          _
        // Predicated region
        $region61: #{net_forward.1} parent=11 // pred_check
          %p557 = pneg %p331
        $region62: #{net_forward.1} parent=11 // pred_check_branch
          %559 = sbr.rel (%p557) target = $region64
        $region63: #{net_forward.1} parent=11 // pred_region
          %s561 = ssub.s32 1920, 1920
          %562 = vsyncadd [#allocation18], %s561
          %s563 = sshll.u32 [#allocation17], 4
          %s564 = int_to_ptr.vmem [resolvable:$true] %s563
          %569 = dma.hbm_to_vmem [thread:$0]  %s13, 1920, %s564, [#allocation18], 128, 128, 8
        $region64: #{net_forward.1} parent=11 // pred_fallthru
          _
        // Predicated region
        $region65: #{net_forward.1} parent=11 // pred_check
          %p570 = pneg %p352
        $region66: #{net_forward.1} parent=11 // pred_check_branch
          %572 = sbr.rel (%p570) target = $region68
        $region67: #{net_forward.1} parent=11 // pred_region
          _
        $region68: #{net_forward.1} parent=11 // pred_fallthru
          _
        // Predicated region
        $region69: #{net_forward.1} parent=11 // pred_check
          %p573 = pneg %p373
        $region70: #{net_forward.1} parent=11 // pred_check_branch
          %575 = sbr.rel (%p573) target = $region72
        $region71: #{net_forward.1} parent=11 // pred_region
          _
        $region72: #{net_forward.1} parent=11 // pred_fallthru
          _
        // Predicated region
        $region73: #{net_forward.1} parent=11 // pred_check
          %p576 = pneg %p394
        $region74: #{net_forward.1} parent=11 // pred_check_branch
          %578 = sbr.rel (%p576) target = $region76
        $region75: #{net_forward.1} parent=11 // pred_region
          _
        $region76: #{net_forward.1} parent=11 // pred_fallthru
          _
      $region12: #{net_forward.1} parent=5 // pred_fallthru
        _
      %p579 = scmp.lt.s32.totalorder %s32, 2
      // Predicated region
      $region77: #{net_forward.1} parent=5 // pred_check
        %p580 = pneg %p579
      $region78: #{net_forward.1} parent=5 // pred_check_branch
        %582 = sbr.rel (%p580) target = $region80
      $region79: #{net_forward.1} parent=5 // pred_region
        // Predicated region
        $region81: #{net_forward.1} parent=79 // pred_check
          %p583 = pneg %p52
        $region82: #{net_forward.1} parent=79 // pred_check_branch
          %585 = sbr.rel (%p583) target = $region84
        $region83: #{net_forward.1} parent=79 // pred_region
          %p586 = scmp.lt.s32.totalorder %s32, 1
          %s587 = scalar_select %p586, %s32, 1
          %s588 = smul.addr %s587, 5
          %s589 = smul.addr %s588, 8
          %s590 = scalar_lea.vmem %s0, %s589
        $region84: #{net_forward.1} parent=79 // pred_fallthru
          _
      $region80: #{net_forward.1} parent=5 // pred_fallthru
        _
      %p591 = scmp.le.s32.totalorder 1, %s32
      %p592 = scmp.lt.s32.totalorder %s32, 3
      %p593 = pnand %p591, %p592
      %p594 = pneg %p593
      // Predicated region
      $region85: #{net_forward.1} parent=5 // pred_check
        _
      $region86: #{net_forward.1} parent=5 // pred_check_branch
        %596 = sbr.rel (%p593) target = $region88
      $region87: #{net_forward.1} parent=5 // pred_region
        %s597 = ssub.s32 %s32, 1
        // Predicated region
        $region89: #{net_forward.1} parent=87 // pred_check
          %p598 = pneg %p79
        $region90: #{net_forward.1} parent=87 // pred_check_branch
          %600 = sbr.rel (%p598) target = $region92
        $region91: #{net_forward.1} parent=87 // pred_region
          %601 = dma.done [#allocation3], 6400
        $region92: #{net_forward.1} parent=87 // pred_fallthru
          _
        // Predicated region
        $region93: #{net_forward.1} parent=87 // pred_check
          %p602 = pneg %p121
        $region94: #{net_forward.1} parent=87 // pred_check_branch
          %604 = sbr.rel (%p602) target = $region96
        $region95: #{net_forward.1} parent=87 // pred_region
          %605 = dma.done [#allocation6], 256
        $region96: #{net_forward.1} parent=87 // pred_fallthru
          _
        // Predicated region
        $region97: #{net_forward.1} parent=87 // pred_check
          %p606 = pneg %p163
        $region98: #{net_forward.1} parent=87 // pred_check_branch
          %608 = sbr.rel (%p606) target = $region100
        $region99: #{net_forward.1} parent=87 // pred_region
          %609 = dma.done [#allocation6], 3072
        $region100: #{net_forward.1} parent=87 // pred_fallthru
          _
        // Predicated region
        $region101: #{net_forward.1} parent=87 // pred_check
          %p610 = pneg %p184
        $region102: #{net_forward.1} parent=87 // pred_check_branch
          %612 = sbr.rel (%p610) target = $region104
        $region103: #{net_forward.1} parent=87 // pred_region
          %613 = dma.done [#allocation9], 15360
        $region104: #{net_forward.1} parent=87 // pred_fallthru
          _
        // Predicated region
        $region105: #{net_forward.1} parent=87 // pred_check
          %p614 = pneg %p205
        $region106: #{net_forward.1} parent=87 // pred_check_branch
          %616 = sbr.rel (%p614) target = $region108
        $region107: #{net_forward.1} parent=87 // pred_region
          %617 = dma.done [#allocation9], 32
        $region108: #{net_forward.1} parent=87 // pred_fallthru
          _
        // Predicated region
        $region109: #{net_forward.1} parent=87 // pred_check
          %p618 = pneg %p226
        $region110: #{net_forward.1} parent=87 // pred_check_branch
          %620 = sbr.rel (%p618) target = $region112
        $region111: #{net_forward.1} parent=87 // pred_region
          %621 = dma.done [#allocation12], 128
        $region112: #{net_forward.1} parent=87 // pred_fallthru
          _
        // Predicated region
        $region113: #{net_forward.1} parent=87 // pred_check
          %p622 = pneg %p247
        $region114: #{net_forward.1} parent=87 // pred_check_branch
          %624 = sbr.rel (%p622) target = $region116
        $region115: #{net_forward.1} parent=87 // pred_region
          %625 = dma.done [#allocation12], 3072
        $region116: #{net_forward.1} parent=87 // pred_fallthru
          _
        // Predicated region
        $region117: #{net_forward.1} parent=87 // pred_check
          %p626 = pneg %p268
        $region118: #{net_forward.1} parent=87 // pred_check_branch
          %628 = sbr.rel (%p626) target = $region120
        $region119: #{net_forward.1} parent=87 // pred_region
          %629 = dma.done [#allocation15], 3072
        $region120: #{net_forward.1} parent=87 // pred_fallthru
          _
        // Predicated region
        $region121: #{net_forward.1} parent=87 // pred_check
          %p630 = pneg %p289
        $region122: #{net_forward.1} parent=87 // pred_check_branch
          %632 = sbr.rel (%p630) target = $region124
        $region123: #{net_forward.1} parent=87 // pred_region
          %633 = dma.done [#allocation15], 9216
        $region124: #{net_forward.1} parent=87 // pred_fallthru
          _
        // Predicated region
        $region125: #{net_forward.1} parent=87 // pred_check
          %p634 = pneg %p331
        $region126: #{net_forward.1} parent=87 // pred_check_branch
          %636 = sbr.rel (%p634) target = $region128
        $region127: #{net_forward.1} parent=87 // pred_region
          %637 = dma.done [#allocation18], 1920
        $region128: #{net_forward.1} parent=87 // pred_fallthru
          _
        %p638 = scmp.lt.s32.totalorder %s37, 1
        %s639 = scalar_select %p638, %s37, 1
        %s640 = smul.addr %s639, 5
        %s641 = smul.addr %s640, 8
        %s642 = scalar_lea.vmem %s0, %s641
        %p643 = pneg %p58
        %p644 = pneg %p55
        %p645 = pneg %p79
        %p646 = pneg %p76
        %p647 = pneg %p100
        %p648 = pneg %p97
        %p649 = pneg %p121
        %p650 = pneg %p118
        %p651 = pneg %p142
        %p652 = pneg %p139
        %p653 = pneg %p163
        %p654 = pneg %p160
        %p655 = pneg %p184
        %p656 = pneg %p181
        %p657 = pneg %p205
        %p658 = pneg %p202
        %p659 = pneg %p226
        %p660 = pneg %p223
        %p661 = pneg %p247
        %p662 = pneg %p244
        %p663 = pneg %p268
        %p664 = pneg %p265
        %p665 = pneg %p289
        %p666 = pneg %p286
        %p667 = pneg %p310
        %p668 = pneg %p307
        %p669 = pneg %p331
        %p670 = pneg %p328
        %p671 = pneg %p352
        %p672 = pneg %p349
        %p673 = pneg %p373
        %p674 = pneg %p370
        %p675 = pneg %p394
        %p676 = pneg %p391
        %p677 = pneg %p420
        %p678 = pneg %p417
        %s679 = sand.u32 %s407, 1
        %s680 = scalar_lea.sflag [#allocation4], %s679
        %s681 = sand.u32 %s407, 1
        %s682 = scalar_lea.vmem [#allocation19], %s681
        %p683 = scmp.lt.s32.totalorder %s37, 1
        %s684 = scalar_select %p683, %s37, 1
        %s685 = smul.addr %s684, 5
        %s686 = smul.addr %s685, 8
        %s687 = scalar_lea.vmem %s0, %s686
        %v688 = vld [vmem:[%s687] sm:$0xff]
        %v689 = vld [vmem:[%s687 + $0x8] sm:$0xff]
        %v690 = vld [vmem:[%s687 + $0x10] sm:$0xff]
        %v691 = vld [vmem:[%s687 + $0x18] sm:$0xff]
        %v692 = vld [vmem:[%s687 + $0x20] sm:$0xf]
        %v693 = vld [vmem:[#allocation2] sm:$0xff]
        %v694 = vld [vmem:[#allocation2 + $0x8] sm:$0xff]
        %v695 = vld [vmem:[#allocation2 + $0x10] sm:$0xff]
        %v696 = vld [vmem:[#allocation2 + $0x18] sm:$0xff]
        %v697 = vld [vmem:[#allocation2 + $0x20] sm:$0xff]
        %v698 = vld [vmem:[#allocation2 + $0x28] sm:$0xff]
        %v699 = vld [vmem:[#allocation2 + $0x30] sm:$0xff]
        %v700 = vld [vmem:[#allocation2 + $0x38] sm:$0xff]
        %v701 = vld [vmem:[#allocation2 + $0x40] sm:$0xf]
        %v702 = vld [vmem:[#allocation2 + $0x48] sm:$0xf]
        %s703 = scalar_lea.vmem [#allocation2], 80
        %v704 = vld [vmem:[%s703] sm:$0xff]
        %v705 = vld [vmem:[%s703 + $0x8] sm:$0xff]
        %v706 = vld [vmem:[%s703 + $0x10] sm:$0xff]
        %v707 = vld [vmem:[%s703 + $0x18] sm:$0xff]
        %v708 = vld [vmem:[%s703 + $0x20] sm:$0xff]
        %v709 = vld [vmem:[%s703 + $0x28] sm:$0xff]
        %v710 = vld [vmem:[%s703 + $0x30] sm:$0xff]
        %v711 = vld [vmem:[%s703 + $0x38] sm:$0xff]
        %v712 = vld [vmem:[%s703 + $0x40] sm:$0xf]
        %v713 = vld [vmem:[%s703 + $0x48] sm:$0xf]
        %vm719 = vcmask 1046528
        %v720 = vrot.slane %v688, 1
        %v721 = vrot.slane %v689, 1
        %v722 = vsel %vm719, %v720, %v721
        %v723 = vrot.slane %v690, 1
        %v724 = vsel %vm719, %v721, %v723
        %v725 = vrot.slane %v691, 1
        %v726 = vsel %vm719, %v723, %v725
        %v727 = vrot.slane %v692, 1
        %v728 = vsel %vm719, %v725, %v727
        %vm729 = vcmask 293888
        %v730 = vsel %vm729, %v722, 0
        %v732 = vsel %vm729, %v724, 0
        %v734 = vsel %vm729, %v726, 0
        %v736 = vsel %vm729, %v728, 0
        %vm738 = vcmask 1043456
        %v740 = vsel %vm738, %v712, 0
        %v743 = vsel %vm738, %v713, 0
        %745 = vmatprep.subr.mxu0 %v705
        %746 = vmatpush1.msra.mxu0 %v704
        %747 = vmatprep.subr.mxu0 %v707
        %748 = vmatpush1.msra.mxu0 %v706
        %749 = vmatprep.subr.mxu0 %v709
        %750 = vmatpush1.msra.mxu0 %v708
        %751 = vmatprep.subr.mxu0 %v711
        %752 = vmatpush1.msra.mxu0 %v710
        %753 = vmatprep.subr.mxu0 %v743
        %754 = vmatpush1.msra.mxu0 %v740
        %755 = vmatprep.subr.mxu0 0.0
        %756 = vmatpush1.msra.mxu0 0.0
        %757 = vmatprep.subr.mxu0 0.0
        %758 = vmatpush1.msra.mxu0 0.0
        %759 = vmatprep.subr.mxu0 0.0
        %760 = vmatpush1.msra.mxu0 0.0
        %761 = vmatprep.subr.mxu0 0.0
        %762 = vmatpush1.msra.mxu0 0.0
        %763 = vmatprep.subr.mxu0 0.0
        %764 = vmatpush1.msra.mxu0 0.0
        %765 = vmatprep.subr.mxu0 0.0
        %766 = vmatpush1.msra.mxu0 0.0
        %767 = vmatprep.subr.mxu0 0.0
        %768 = vmatpush1.msra.mxu0 0.0
        %769 = vmatprep.subr.mxu0 0.0
        %770 = vmatpush1.msra.mxu0 0.0
        %771 = vmatprep.subr.mxu0 0.0
        %772 = vmatpush1.msra.mxu0 0.0
        %773 = vmatprep.subr.mxu0 0.0
        %774 = vmatpush1.msra.mxu0 0.0
        %775 = vmatprep.subr.mxu0 0.0
        %776 = vmatpush1.msra.mxu0 0.0
        %777 = vmatprep.subr.mxu0 0.0
        %778 = vmatpush1.msra.mxu0 0.0
        %779 = vmatprep.subr.mxu0 0.0
        %780 = vmatpush1.msra.mxu0 0.0
        %781 = vmatprep.subr.mxu0 0.0
        %782 = vmatpush1.msra.mxu0 0.0
        %783 = vmatprep.subr.mxu0 0.0
        %784 = vmatpush1.msra.mxu0 0.0
        %785 = vmatprep.subr.mxu0 0.0
        %786 = vmatpush1.msra.mxu0 0.0
        %787 = vmatprep.subr.mxu0 0.0
        %788 = vmatpush1.msra.mxu0 0.0
        %789 = vmatprep.subr.mxu0 0.0
        %790 = vmatpush1.msra.mxu0 0.0
        %791 = vmatprep.subr.mxu0 0.0
        %792 = vmatpush1.msra.mxu0 0.0
        %793 = vmatprep.subr.mxu0 0.0
        %794 = vmatpush1.msra.mxu0 0.0
        %795 = vmatprep.subr.mxu0 0.0
        %796 = vmatpush1.msra.mxu0 0.0
        %797 = vmatprep.subr.mxu0 0.0
        %798 = vmatpush1.msra.mxu0 0.0
        %799 = vmatprep.subr.mxu0 0.0
        %800 = vmatpush1.msra.mxu0 0.0
        %801 = vmatprep.subr.mxu0 0.0
        %802 = vmatpush1.msra.mxu0 0.0
        %803 = vmatprep.subr.mxu0 0.0
        %804 = vmatpush1.msra.mxu0 0.0
        %805 = vmatprep.subr.mxu0 0.0
        %806 = vmatpush1.msra.mxu0 0.0
        %807 = vmatprep.subr.mxu0 0.0
        %808 = vmatpush1.msra.mxu0 0.0
        %809 = vmatprep.mubr.f32.mxu0 0.0
        %810 = vmatmul.mubr.f32.gmra.mrb[0].mxu0 %v730
        %v811 = vpop.f32.mrb[0].mxu0
        %v812 = vadd.f32 0.0, %v811
        %v813 = vpop.f32.mrb[0].mxu0
        %v814 = vadd.f32 0.0, %v813
        %815 = vmatprep.mubr.f32.mxu0 0.0
        %816 = vmatmul.mubr.f32.gmra.mrb[0].mxu0 %v732
        %v817 = vpop.f32.mrb[0].mxu0
        %v818 = vadd.f32 0.0, %v817
        %v819 = vpop.f32.mrb[0].mxu0
        %v820 = vadd.f32 0.0, %v819
        %821 = vmatprep.mubr.f32.mxu0 0.0
        %822 = vmatmul.mubr.f32.gmra.mrb[0].mxu0 %v734
        %v823 = vpop.f32.mrb[0].mxu0
        %v824 = vadd.f32 0.0, %v823
        %v825 = vpop.f32.mrb[0].mxu0
        %v826 = vadd.f32 0.0, %v825
        %827 = vmatprep.mubr.f32.mxu0 0.0
        %828 = vmatmul.mubr.f32.gmra.mrb[0].mxu0 %v736
        %v829 = vpop.f32.mrb[0].mxu0
        %v830 = vadd.f32 0.0, %v829
        %v831 = vpop.f32.mrb[0].mxu0
        %v832 = vadd.f32 0.0, %v831
        %833 = vdwg.mxu0
        %v834 = vsel %vm729, %v688, 0
        %v836 = vsel %vm729, %v689, 0
        %v838 = vsel %vm729, %v690, 0
        %v840 = vsel %vm729, %v691, 0
        %v843 = vsel %vm738, %v701, 0
        %v846 = vsel %vm738, %v702, 0
        %848 = vmatprep.subr.mxu0 %v694
        %849 = vmatpush1.msra.mxu0 %v693
        %850 = vmatprep.subr.mxu0 %v696
        %851 = vmatpush1.msra.mxu0 %v695
        %852 = vmatprep.subr.mxu0 %v698
        %853 = vmatpush1.msra.mxu0 %v697
        %854 = vmatprep.subr.mxu0 %v700
        %855 = vmatpush1.msra.mxu0 %v699
        %856 = vmatprep.subr.mxu0 %v846
        %857 = vmatpush1.msra.mxu0 %v843
        %858 = vmatprep.subr.mxu0 0.0
        %859 = vmatpush1.msra.mxu0 0.0
        %860 = vmatprep.subr.mxu0 0.0
        %861 = vmatpush1.msra.mxu0 0.0
        %862 = vmatprep.subr.mxu0 0.0
        %863 = vmatpush1.msra.mxu0 0.0
        %864 = vmatprep.subr.mxu0 0.0
        %865 = vmatpush1.msra.mxu0 0.0
        %866 = vmatprep.subr.mxu0 0.0
        %867 = vmatpush1.msra.mxu0 0.0
        %868 = vmatprep.subr.mxu0 0.0
        %869 = vmatpush1.msra.mxu0 0.0
        %870 = vmatprep.subr.mxu0 0.0
        %871 = vmatpush1.msra.mxu0 0.0
        %872 = vmatprep.subr.mxu0 0.0
        %873 = vmatpush1.msra.mxu0 0.0
        %874 = vmatprep.subr.mxu0 0.0
        %875 = vmatpush1.msra.mxu0 0.0
        %876 = vmatprep.subr.mxu0 0.0
        %877 = vmatpush1.msra.mxu0 0.0
        %878 = vmatprep.subr.mxu0 0.0
        %879 = vmatpush1.msra.mxu0 0.0
        %880 = vmatprep.subr.mxu0 0.0
        %881 = vmatpush1.msra.mxu0 0.0
        %882 = vmatprep.subr.mxu0 0.0
        %883 = vmatpush1.msra.mxu0 0.0
        %884 = vmatprep.subr.mxu0 0.0
        %885 = vmatpush1.msra.mxu0 0.0
        %886 = vmatprep.subr.mxu0 0.0
        %887 = vmatpush1.msra.mxu0 0.0
        %888 = vmatprep.subr.mxu0 0.0
        %889 = vmatpush1.msra.mxu0 0.0
        %890 = vmatprep.subr.mxu0 0.0
        %891 = vmatpush1.msra.mxu0 0.0
        %892 = vmatprep.subr.mxu0 0.0
        %893 = vmatpush1.msra.mxu0 0.0
        %894 = vmatprep.subr.mxu0 0.0
        %895 = vmatpush1.msra.mxu0 0.0
        %896 = vmatprep.subr.mxu0 0.0
        %897 = vmatpush1.msra.mxu0 0.0
        %898 = vmatprep.subr.mxu0 0.0
        %899 = vmatpush1.msra.mxu0 0.0
        %900 = vmatprep.subr.mxu0 0.0
        %901 = vmatpush1.msra.mxu0 0.0
        %902 = vmatprep.subr.mxu0 0.0
        %903 = vmatpush1.msra.mxu0 0.0
        %904 = vmatprep.subr.mxu0 0.0
        %905 = vmatpush1.msra.mxu0 0.0
        %906 = vmatprep.subr.mxu0 0.0
        %907 = vmatpush1.msra.mxu0 0.0
        %908 = vmatprep.subr.mxu0 0.0
        %909 = vmatpush1.msra.mxu0 0.0
        %910 = vmatprep.subr.mxu0 0.0
        %911 = vmatpush1.msra.mxu0 0.0
        %912 = vmatprep.mubr.f32.mxu0 0.0
        %913 = vmatmul.mubr.f32.gmra.mrb[0].mxu0 %v834
        %v914 = vpop.f32.mrb[0].mxu0
        %v915 = vadd.f32 %v812, %v914
        %v916 = vpop.f32.mrb[0].mxu0
        %v917 = vadd.f32 %v814, %v916
        %918 = vmatprep.mubr.f32.mxu0 0.0
        %919 = vmatmul.mubr.f32.gmra.mrb[0].mxu0 %v836
        %v920 = vpop.f32.mrb[0].mxu0
        %v921 = vadd.f32 %v818, %v920
        %v922 = vpop.f32.mrb[0].mxu0
        %v923 = vadd.f32 %v820, %v922
        %924 = vmatprep.mubr.f32.mxu0 0.0
        %925 = vmatmul.mubr.f32.gmra.mrb[0].mxu0 %v838
        %v926 = vpop.f32.mrb[0].mxu0
        %v927 = vadd.f32 %v824, %v926
        %v928 = vpop.f32.mrb[0].mxu0
        %v929 = vadd.f32 %v826, %v928
        %930 = vmatprep.mubr.f32.mxu0 0.0
        %931 = vmatmul.mubr.f32.gmra.mrb[0].mxu0 %v840
        %v932 = vpop.f32.mrb[0].mxu0
        %v933 = vadd.f32 %v830, %v932
        %v934 = vpop.f32.mrb[0].mxu0
        %v935 = vadd.f32 %v832, %v934
        %936 = vdwg.mxu0
        %s937 = scalar_lea.vmem [#allocation2], 160
        %v938 = vld [vmem:[%s937] sm:$0xff]
        %v939 = vld [vmem:[%s937 + $0x8] sm:$0xff]
        %v940 = vld [vmem:[%s937 + $0x10] sm:$0xff]
        %v941 = vld [vmem:[%s937 + $0x18] sm:$0xff]
        %v942 = vld [vmem:[%s937 + $0x20] sm:$0xff]
        %v943 = vld [vmem:[%s937 + $0x28] sm:$0xff]
        %v944 = vld [vmem:[%s937 + $0x30] sm:$0xff]
        %v945 = vld [vmem:[%s937 + $0x38] sm:$0xff]
        %v946 = vld [vmem:[%s937 + $0x40] sm:$0xf]
        %v947 = vld [vmem:[%s937 + $0x48] sm:$0xf]
        %vm948 = vcmask 1045504
        %v949 = vrot.slane %v688, 2
        %v950 = vrot.slane %v689, 2
        %v951 = vsel %vm948, %v949, %v950
        %v952 = vrot.slane %v690, 2
        %v953 = vsel %vm948, %v950, %v952
        %v954 = vrot.slane %v691, 2
        %v955 = vsel %vm948, %v952, %v954
        %v956 = vrot.slane %v692, 2
        %v957 = vsel %vm948, %v954, %v956
        %v958 = vsel %vm729, %v951, 0
        %v960 = vsel %vm729, %v953, 0
        %v962 = vsel %vm729, %v955, 0
        %v964 = vsel %vm729, %v957, 0
        %v967 = vsel %vm738, %v946, 0
        %v970 = vsel %vm738, %v947, 0
        %972 = vmatprep.subr.mxu0 %v939
        %973 = vmatpush1.msra.mxu0 %v938
        %974 = vmatprep.subr.mxu0 %v941
        %975 = vmatpush1.msra.mxu0 %v940
        %976 = vmatprep.subr.mxu0 %v943
        %977 = vmatpush1.msra.mxu0 %v942
        %978 = vmatprep.subr.mxu0 %v945
        %979 = vmatpush1.msra.mxu0 %v944
        %980 = vmatprep.subr.mxu0 %v970
        %981 = vmatpush1.msra.mxu0 %v967
        %982 = vmatprep.subr.mxu0 0.0
        %983 = vmatpush1.msra.mxu0 0.0
        %984 = vmatprep.subr.mxu0 0.0
        %985 = vmatpush1.msra.mxu0 0.0
        %986 = vmatprep.subr.mxu0 0.0
        %987 = vmatpush1.msra.mxu0 0.0
        %988 = vmatprep.subr.mxu0 0.0
        %989 = vmatpush1.msra.mxu0 0.0
        %990 = vmatprep.subr.mxu0 0.0
        %991 = vmatpush1.msra.mxu0 0.0
        %992 = vmatprep.subr.mxu0 0.0
        %993 = vmatpush1.msra.mxu0 0.0
        %994 = vmatprep.subr.mxu0 0.0
        %995 = vmatpush1.msra.mxu0 0.0
        %996 = vmatprep.subr.mxu0 0.0
        %997 = vmatpush1.msra.mxu0 0.0
        %998 = vmatprep.subr.mxu0 0.0
        %999 = vmatpush1.msra.mxu0 0.0
        %1000 = vmatprep.subr.mxu0 0.0
        %1001 = vmatpush1.msra.mxu0 0.0
        %1002 = vmatprep.subr.mxu0 0.0
        %1003 = vmatpush1.msra.mxu0 0.0
        %1004 = vmatprep.subr.mxu0 0.0
        %1005 = vmatpush1.msra.mxu0 0.0
        %1006 = vmatprep.subr.mxu0 0.0
        %1007 = vmatpush1.msra.mxu0 0.0
        %1008 = vmatprep.subr.mxu0 0.0
        %1009 = vmatpush1.msra.mxu0 0.0
        %1010 = vmatprep.subr.mxu0 0.0
        %1011 = vmatpush1.msra.mxu0 0.0
        %1012 = vmatprep.subr.mxu0 0.0
        %1013 = vmatpush1.msra.mxu0 0.0
        %1014 = vmatprep.subr.mxu0 0.0
        %1015 = vmatpush1.msra.mxu0 0.0
        %1016 = vmatprep.subr.mxu0 0.0
        %1017 = vmatpush1.msra.mxu0 0.0
        %1018 = vmatprep.subr.mxu0 0.0
        %1019 = vmatpush1.msra.mxu0 0.0
        %1020 = vmatprep.subr.mxu0 0.0
        %1021 = vmatpush1.msra.mxu0 0.0
        %1022 = vmatprep.subr.mxu0 0.0
        %1023 = vmatpush1.msra.mxu0 0.0
        %1024 = vmatprep.subr.mxu0 0.0
        %1025 = vmatpush1.msra.mxu0 0.0
        %1026 = vmatprep.subr.mxu0 0.0
        %1027 = vmatpush1.msra.mxu0 0.0
        %1028 = vmatprep.subr.mxu0 0.0
        %1029 = vmatpush1.msra.mxu0 0.0
        %1030 = vmatprep.subr.mxu0 0.0
        %1031 = vmatpush1.msra.mxu0 0.0
        %1032 = vmatprep.subr.mxu0 0.0
        %1033 = vmatpush1.msra.mxu0 0.0
        %1034 = vmatprep.subr.mxu0 0.0
        %1035 = vmatpush1.msra.mxu0 0.0
        %1036 = vmatprep.mubr.f32.mxu0 0.0
        %1037 = vmatmul.mubr.f32.gmra.mrb[0].mxu0 %v958
        %v1038 = vpop.f32.mrb[0].mxu0
        %v1039 = vadd.f32 0.0, %v1038
        %v1040 = vpop.f32.mrb[0].mxu0
        %v1041 = vadd.f32 0.0, %v1040
        %1042 = vmatprep.mubr.f32.mxu0 0.0
        %1043 = vmatmul.mubr.f32.gmra.mrb[0].mxu0 %v960
        %v1044 = vpop.f32.mrb[0].mxu0
        %v1045 = vadd.f32 0.0, %v1044
        %v1046 = vpop.f32.mrb[0].mxu0
        %v1047 = vadd.f32 0.0, %v1046
        %1048 = vmatprep.mubr.f32.mxu0 0.0
        %1049 = vmatmul.mubr.f32.gmra.mrb[0].mxu0 %v962
        %v1050 = vpop.f32.mrb[0].mxu0
        %v1051 = vadd.f32 0.0, %v1050
        %v1052 = vpop.f32.mrb[0].mxu0
        %v1053 = vadd.f32 0.0, %v1052
        %1054 = vmatprep.mubr.f32.mxu0 0.0
        %1055 = vmatmul.mubr.f32.gmra.mrb[0].mxu0 %v964
        %v1056 = vpop.f32.mrb[0].mxu0
        %v1057 = vadd.f32 0.0, %v1056
        %v1058 = vpop.f32.mrb[0].mxu0
        %v1059 = vadd.f32 0.0, %v1058
        %1060 = vdwg.mxu0
        %v1061 = vadd.f32 %v915, %v1039
        %v1062 = vadd.f32 %v917, %v1041
        %v1063 = vadd.f32 %v921, %v1045
        %v1064 = vadd.f32 %v923, %v1047
        %v1065 = vadd.f32 %v927, %v1051
        %v1066 = vadd.f32 %v929, %v1053
        %v1067 = vadd.f32 %v933, %v1057
        %v1068 = vadd.f32 %v935, %v1059
        %s1069 = scalar_lea.vmem [#allocation2], 240
        %v1070 = vld [vmem:[%s1069] sm:$0xff]
        %v1071 = vld [vmem:[%s1069 + $0x8] sm:$0xff]
        %v1072 = vld [vmem:[%s1069 + $0x10] sm:$0xff]
        %v1073 = vld [vmem:[%s1069 + $0x18] sm:$0xff]
        %v1074 = vld [vmem:[%s1069 + $0x20] sm:$0xff]
        %v1075 = vld [vmem:[%s1069 + $0x28] sm:$0xff]
        %v1076 = vld [vmem:[%s1069 + $0x30] sm:$0xff]
        %v1077 = vld [vmem:[%s1069 + $0x38] sm:$0xff]
        %v1078 = vld [vmem:[%s1069 + $0x40] sm:$0xf]
        %v1079 = vld [vmem:[%s1069 + $0x48] sm:$0xf]
        %vm1080 = vcmask 1044480
        %v1081 = vrot.slane %v688, 3
        %v1082 = vrot.slane %v689, 3
        %v1083 = vsel %vm1080, %v1081, %v1082
        %v1084 = vrot.slane %v690, 3
        %v1085 = vsel %vm1080, %v1082, %v1084
        %v1086 = vrot.slane %v691, 3
        %v1087 = vsel %vm1080, %v1084, %v1086
        %v1088 = vrot.slane %v692, 3
        %v1089 = vsel %vm1080, %v1086, %v1088
        %v1090 = vsel %vm729, %v1083, 0
        %v1092 = vsel %vm729, %v1085, 0
        %v1094 = vsel %vm729, %v1087, 0
        %v1096 = vsel %vm729, %v1089, 0
        %v1099 = vsel %vm738, %v1078, 0
        %v1102 = vsel %vm738, %v1079, 0
        %1104 = vmatprep.subr.mxu0 %v1071
        %1105 = vmatpush1.msra.mxu0 %v1070
        %1106 = vmatprep.subr.mxu0 %v1073
        %1107 = vmatpush1.msra.mxu0 %v1072
        %1108 = vmatprep.subr.mxu0 %v1075
        %1109 = vmatpush1.msra.mxu0 %v1074
        %1110 = vmatprep.subr.mxu0 %v1077
        %1111 = vmatpush1.msra.mxu0 %v1076
        %1112 = vmatprep.subr.mxu0 %v1102
        %1113 = vmatpush1.msra.mxu0 %v1099
        %1114 = vmatprep.subr.mxu0 0.0
        %1115 = vmatpush1.msra.mxu0 0.0
        %1116 = vmatprep.subr.mxu0 0.0
        %1117 = vmatpush1.msra.mxu0 0.0
        %1118 = vmatprep.subr.mxu0 0.0
        %1119 = vmatpush1.msra.mxu0 0.0
        %1120 = vmatprep.subr.mxu0 0.0
        %1121 = vmatpush1.msra.mxu0 0.0
        %1122 = vmatprep.subr.mxu0 0.0
        %1123 = vmatpush1.msra.mxu0 0.0
        %1124 = vmatprep.subr.mxu0 0.0
        %1125 = vmatpush1.msra.mxu0 0.0
        %1126 = vmatprep.subr.mxu0 0.0
        %1127 = vmatpush1.msra.mxu0 0.0
        %1128 = vmatprep.subr.mxu0 0.0
        %1129 = vmatpush1.msra.mxu0 0.0
        %1130 = vmatprep.subr.mxu0 0.0
        %1131 = vmatpush1.msra.mxu0 0.0
        %1132 = vmatprep.subr.mxu0 0.0
        %1133 = vmatpush1.msra.mxu0 0.0
        %1134 = vmatprep.subr.mxu0 0.0
        %1135 = vmatpush1.msra.mxu0 0.0
        %1136 = vmatprep.subr.mxu0 0.0
        %1137 = vmatpush1.msra.mxu0 0.0
        %1138 = vmatprep.subr.mxu0 0.0
        %1139 = vmatpush1.msra.mxu0 0.0
        %1140 = vmatprep.subr.mxu0 0.0
        %1141 = vmatpush1.msra.mxu0 0.0
        %1142 = vmatprep.subr.mxu0 0.0
        %1143 = vmatpush1.msra.mxu0 0.0
        %1144 = vmatprep.subr.mxu0 0.0
        %1145 = vmatpush1.msra.mxu0 0.0
        %1146 = vmatprep.subr.mxu0 0.0
        %1147 = vmatpush1.msra.mxu0 0.0
        %1148 = vmatprep.subr.mxu0 0.0
        %1149 = vmatpush1.msra.mxu0 0.0
        %1150 = vmatprep.subr.mxu0 0.0
        %1151 = vmatpush1.msra.mxu0 0.0
        %1152 = vmatprep.subr.mxu0 0.0
        %1153 = vmatpush1.msra.mxu0 0.0
        %1154 = vmatprep.subr.mxu0 0.0
        %1155 = vmatpush1.msra.mxu0 0.0
        %1156 = vmatprep.subr.mxu0 0.0
        %1157 = vmatpush1.msra.mxu0 0.0
        %1158 = vmatprep.subr.mxu0 0.0
        %1159 = vmatpush1.msra.mxu0 0.0
        %1160 = vmatprep.subr.mxu0 0.0
        %1161 = vmatpush1.msra.mxu0 0.0
        %1162 = vmatprep.subr.mxu0 0.0
        %1163 = vmatpush1.msra.mxu0 0.0
        %1164 = vmatprep.subr.mxu0 0.0
        %1165 = vmatpush1.msra.mxu0 0.0
        %1166 = vmatprep.subr.mxu0 0.0
        %1167 = vmatpush1.msra.mxu0 0.0
        %1168 = vmatprep.mubr.f32.mxu0 0.0
        %1169 = vmatmul.mubr.f32.gmra.mrb[0].mxu0 %v1090
        %v1170 = vpop.f32.mrb[0].mxu0
        %v1171 = vadd.f32 0.0, %v1170
        %v1172 = vpop.f32.mrb[0].mxu0
        %v1173 = vadd.f32 0.0, %v1172
        %1174 = vmatprep.mubr.f32.mxu0 0.0
        %1175 = vmatmul.mubr.f32.gmra.mrb[0].mxu0 %v1092
        %v1176 = vpop.f32.mrb[0].mxu0
        %v1177 = vadd.f32 0.0, %v1176
        %v1178 = vpop.f32.mrb[0].mxu0
        %v1179 = vadd.f32 0.0, %v1178
        %1180 = vmatprep.mubr.f32.mxu0 0.0
        %1181 = vmatmul.mubr.f32.gmra.mrb[0].mxu0 %v1094
        %v1182 = vpop.f32.mrb[0].mxu0
        %v1183 = vadd.f32 0.0, %v1182
        %v1184 = vpop.f32.mrb[0].mxu0
        %v1185 = vadd.f32 0.0, %v1184
        %1186 = vmatprep.mubr.f32.mxu0 0.0
        %1187 = vmatmul.mubr.f32.gmra.mrb[0].mxu0 %v1096
        %v1188 = vpop.f32.mrb[0].mxu0
        %v1189 = vadd.f32 0.0, %v1188
        %v1190 = vpop.f32.mrb[0].mxu0
        %v1191 = vadd.f32 0.0, %v1190
        %1192 = vdwg.mxu0
        %v1193 = vadd.f32 %v1061, %v1171
        %v1194 = vadd.f32 %v1062, %v1173
        %v1195 = vadd.f32 %v1063, %v1177
        %v1196 = vadd.f32 %v1064, %v1179
        %v1197 = vadd.f32 %v1065, %v1183
        %v1198 = vadd.f32 %v1066, %v1185
        %v1199 = vadd.f32 %v1067, %v1189
        %v1200 = vadd.f32 %v1068, %v1191
        %s1201 = scalar_lea.vmem [#allocation2], 320
        %v1202 = vld [vmem:[%s1201] sm:$0xff]
        %v1203 = vld [vmem:[%s1201 + $0x8] sm:$0xff]
        %v1204 = vld [vmem:[%s1201 + $0x10] sm:$0xff]
        %v1205 = vld [vmem:[%s1201 + $0x18] sm:$0xff]
        %v1206 = vld [vmem:[%s1201 + $0x20] sm:$0xff]
        %v1207 = vld [vmem:[%s1201 + $0x28] sm:$0xff]
        %v1208 = vld [vmem:[%s1201 + $0x30] sm:$0xff]
        %v1209 = vld [vmem:[%s1201 + $0x38] sm:$0xff]
        %v1210 = vld [vmem:[%s1201 + $0x40] sm:$0xf]
        %v1211 = vld [vmem:[%s1201 + $0x48] sm:$0xf]
        %v1212 = vrot.slane %v688, 4
        %v1213 = vrot.slane %v689, 4
        %v1214 = vsel %vm738, %v1212, %v1213
        %v1215 = vrot.slane %v690, 4
        %v1216 = vsel %vm738, %v1213, %v1215
        %v1217 = vrot.slane %v691, 4
        %v1218 = vsel %vm738, %v1215, %v1217
        %v1219 = vrot.slane %v692, 4
        %v1220 = vsel %vm738, %v1217, %v1219
        %v1221 = vsel %vm729, %v1214, 0
        %v1223 = vsel %vm729, %v1216, 0
        %v1225 = vsel %vm729, %v1218, 0
        %v1227 = vsel %vm729, %v1220, 0
        %v1230 = vsel %vm738, %v1210, 0
        %v1233 = vsel %vm738, %v1211, 0
        %1235 = vmatprep.subr.mxu0 %v1203
        %1236 = vmatpush1.msra.mxu0 %v1202
        %1237 = vmatprep.subr.mxu0 %v1205
        %1238 = vmatpush1.msra.mxu0 %v1204
        %1239 = vmatprep.subr.mxu0 %v1207
        %1240 = vmatpush1.msra.mxu0 %v1206
        %1241 = vmatprep.subr.mxu0 %v1209
        %1242 = vmatpush1.msra.mxu0 %v1208
        %1243 = vmatprep.subr.mxu0 %v1233
        %1244 = vmatpush1.msra.mxu0 %v1230
        %1245 = vmatprep.subr.mxu0 0.0
        %1246 = vmatpush1.msra.mxu0 0.0
        %1247 = vmatprep.subr.mxu0 0.0
        %1248 = vmatpush1.msra.mxu0 0.0
        %1249 = vmatprep.subr.mxu0 0.0
        %1250 = vmatpush1.msra.mxu0 0.0
        %1251 = vmatprep.subr.mxu0 0.0
        %1252 = vmatpush1.msra.mxu0 0.0
        %1253 = vmatprep.subr.mxu0 0.0
        %1254 = vmatpush1.msra.mxu0 0.0
        %1255 = vmatprep.subr.mxu0 0.0
        %1256 = vmatpush1.msra.mxu0 0.0
        %1257 = vmatprep.subr.mxu0 0.0
        %1258 = vmatpush1.msra.mxu0 0.0
        %1259 = vmatprep.subr.mxu0 0.0
        %1260 = vmatpush1.msra.mxu0 0.0
        %1261 = vmatprep.subr.mxu0 0.0
        %1262 = vmatpush1.msra.mxu0 0.0
        %1263 = vmatprep.subr.mxu0 0.0
        %1264 = vmatpush1.msra.mxu0 0.0
        %1265 = vmatprep.subr.mxu0 0.0
        %1266 = vmatpush1.msra.mxu0 0.0
        %1267 = vmatprep.subr.mxu0 0.0
        %1268 = vmatpush1.msra.mxu0 0.0
        %1269 = vmatprep.subr.mxu0 0.0
        %1270 = vmatpush1.msra.mxu0 0.0
        %1271 = vmatprep.subr.mxu0 0.0
        %1272 = vmatpush1.msra.mxu0 0.0
        %1273 = vmatprep.subr.mxu0 0.0
        %1274 = vmatpush1.msra.mxu0 0.0
        %1275 = vmatprep.subr.mxu0 0.0
        %1276 = vmatpush1.msra.mxu0 0.0
        %1277 = vmatprep.subr.mxu0 0.0
        %1278 = vmatpush1.msra.mxu0 0.0
        %1279 = vmatprep.subr.mxu0 0.0
        %1280 = vmatpush1.msra.mxu0 0.0
        %1281 = vmatprep.subr.mxu0 0.0
        %1282 = vmatpush1.msra.mxu0 0.0
        %1283 = vmatprep.subr.mxu0 0.0
        %1284 = vmatpush1.msra.mxu0 0.0
        %1285 = vmatprep.subr.mxu0 0.0
        %1286 = vmatpush1.msra.mxu0 0.0
        %1287 = vmatprep.subr.mxu0 0.0
        %1288 = vmatpush1.msra.mxu0 0.0
        %1289 = vmatprep.subr.mxu0 0.0
        %1290 = vmatpush1.msra.mxu0 0.0
        %1291 = vmatprep.subr.mxu0 0.0
        %1292 = vmatpush1.msra.mxu0 0.0
        %1293 = vmatprep.subr.mxu0 0.0
        %1294 = vmatpush1.msra.mxu0 0.0
        %1295 = vmatprep.subr.mxu0 0.0
        %1296 = vmatpush1.msra.mxu0 0.0
        %1297 = vmatprep.subr.mxu0 0.0
        %1298 = vmatpush1.msra.mxu0 0.0
        %1299 = vmatprep.mubr.f32.mxu0 0.0
        %1300 = vmatmul.mubr.f32.gmra.mrb[0].mxu0 %v1221
        %v1301 = vpop.f32.mrb[0].mxu0
        %v1302 = vadd.f32 0.0, %v1301
        %v1303 = vpop.f32.mrb[0].mxu0
        %v1304 = vadd.f32 0.0, %v1303
        %1305 = vmatprep.mubr.f32.mxu0 0.0
        %1306 = vmatmul.mubr.f32.gmra.mrb[0].mxu0 %v1223
        %v1307 = vpop.f32.mrb[0].mxu0
        %v1308 = vadd.f32 0.0, %v1307
        %v1309 = vpop.f32.mrb[0].mxu0
        %v1310 = vadd.f32 0.0, %v1309
        %1311 = vmatprep.mubr.f32.mxu0 0.0
        %1312 = vmatmul.mubr.f32.gmra.mrb[0].mxu0 %v1225
        %v1313 = vpop.f32.mrb[0].mxu0
        %v1314 = vadd.f32 0.0, %v1313
        %v1315 = vpop.f32.mrb[0].mxu0
        %v1316 = vadd.f32 0.0, %v1315
        %1317 = vmatprep.mubr.f32.mxu0 0.0
        %1318 = vmatmul.mubr.f32.gmra.mrb[0].mxu0 %v1227
        %v1319 = vpop.f32.mrb[0].mxu0
        %v1320 = vadd.f32 0.0, %v1319
        %v1321 = vpop.f32.mrb[0].mxu0
        %v1322 = vadd.f32 0.0, %v1321
        %1323 = vdwg.mxu0
        %v1324 = vadd.f32 %v1193, %v1302
        %v1325 = vadd.f32 %v1194, %v1304
        %v1326 = vadd.f32 %v1195, %v1308
        %v1327 = vadd.f32 %v1196, %v1310
        %v1328 = vadd.f32 %v1197, %v1314
        %v1329 = vadd.f32 %v1198, %v1316
        %v1330 = vadd.f32 %v1199, %v1320
        %v1331 = vadd.f32 %v1200, %v1322
        %v1332 = vld [vmem:[%s2] sm:$0x3]
        %v1334 = vlaneseq
        %v1335 = vshrl.u32 %v1334, 7
        %v1336 = vsub.s32 0, %v1335
        %v1337 = vrot.slane %v1332, %v1336
        %v1338 = vlaneseq
        %v1339 = vshrl.u32 %v1338, 7
        %v1340 = vsub.s32 1, %v1339
        %v1341 = vrot.slane %v1332, %v1340
        %v1344 = vadd.f32 %v1324, %v1337
        %v1345 = vadd.f32 %v1325, %v1341
        %v1346 = vadd.f32 %v1326, %v1337
        %v1347 = vadd.f32 %v1327, %v1341
        %v1348 = vadd.f32 %v1328, %v1337
        %v1349 = vadd.f32 %v1329, %v1341
        %v1350 = vadd.f32 %v1330, %v1337
        %v1351 = vadd.f32 %v1331, %v1341
        %v1352 = vmax.f32 %v1344, 0.0
        %v1353 = vmax.f32 %v1345, 0.0
        %v1354 = vmax.f32 %v1346, 0.0
        %v1355 = vmax.f32 %v1347, 0.0
        %v1356 = vmax.f32 %v1348, 0.0
        %v1357 = vmax.f32 %v1349, 0.0
        %v1358 = vmax.f32 %v1350, 0.0
        %v1359 = vmax.f32 %v1351, 0.0
        %v1368 = vrot.slane %v1352, 1
        %v1369 = vrot.slane %v1354, 1
        %v1370 = vsel %vm719, %v1368, %v1369
        %v1371 = vrot.slane %v1353, 1
        %v1372 = vrot.slane %v1355, 1
        %v1373 = vsel %vm719, %v1371, %v1372
        %v1374 = vrot.slane %v1356, 1
        %v1375 = vsel %vm719, %v1369, %v1374
        %v1376 = vrot.slane %v1357, 1
        %v1377 = vsel %vm719, %v1372, %v1376
        %v1378 = vrot.slane %v1358, 1
        %v1379 = vsel %vm719, %v1374, %v1378
        %v1380 = vrot.slane %v1359, 1
        %v1381 = vsel %vm719, %v1376, %v1380
        %v1390 = vmax.f32 %v1352, %v1370
        %v1391 = vmax.f32 %v1353, %v1373
        %v1392 = vmax.f32 %v1354, %v1375
        %v1393 = vmax.f32 %v1355, %v1377
        %v1394 = vmax.f32 %v1356, %v1379
        %v1395 = vmax.f32 %v1357, %v1381
        %v1396 = vmax.f32 %v1358, %v1378
        %v1397 = vmax.f32 %v1359, %v1380
        %v1398 = vld [vmem:[#allocation5] sm:$0xff]
        %v1399 = vld [vmem:[#allocation5 + $0x8] sm:$0xff]
        %vm1400 = vcmask 252928
        %v1402 = vsel %vm1400, %v1398, 0
        %v1405 = vsel %vm1400, %v1399, 0
        %v1408 = vsel %vm719, %v1396, 0
        %v1411 = vsel %vm719, %v1397, 0
        %1413 = vmatprep.subr.mxu0 %v1391
        %1414 = vmatpush1.msra.mxu0 %v1390
        %1415 = vmatprep.subr.mxu0 %v1393
        %1416 = vmatpush1.msra.mxu0 %v1392
        %1417 = vmatprep.subr.mxu0 %v1395
        %1418 = vmatpush1.msra.mxu0 %v1394
        %1419 = vmatprep.subr.mxu0 %v1411
        %1420 = vmatpush1.msra.mxu0 %v1408
        %1421 = vmatprep.subr.mxu0 0.0
        %1422 = vmatpush1.msra.mxu0 0.0
        %1423 = vmatprep.subr.mxu0 0.0
        %1424 = vmatpush1.msra.mxu0 0.0
        %1425 = vmatprep.subr.mxu0 0.0
        %1426 = vmatpush1.msra.mxu0 0.0
        %1427 = vmatprep.subr.mxu0 0.0
        %1428 = vmatpush1.msra.mxu0 0.0
        %1429 = vmatprep.subr.mxu0 0.0
        %1430 = vmatpush1.msra.mxu0 0.0
        %1431 = vmatprep.subr.mxu0 0.0
        %1432 = vmatpush1.msra.mxu0 0.0
        %1433 = vmatprep.subr.mxu0 0.0
        %1434 = vmatpush1.msra.mxu0 0.0
        %1435 = vmatprep.subr.mxu0 0.0
        %1436 = vmatpush1.msra.mxu0 0.0
        %1437 = vmatprep.subr.mxu0 0.0
        %1438 = vmatpush1.msra.mxu0 0.0
        %1439 = vmatprep.subr.mxu0 0.0
        %1440 = vmatpush1.msra.mxu0 0.0
        %1441 = vmatprep.subr.mxu0 0.0
        %1442 = vmatpush1.msra.mxu0 0.0
        %1443 = vmatprep.subr.mxu0 0.0
        %1444 = vmatpush1.msra.mxu0 0.0
        %1445 = vmatprep.subr.mxu0 0.0
        %1446 = vmatpush1.msra.mxu0 0.0
        %1447 = vmatprep.subr.mxu0 0.0
        %1448 = vmatpush1.msra.mxu0 0.0
        %1449 = vmatprep.subr.mxu0 0.0
        %1450 = vmatpush1.msra.mxu0 0.0
        %1451 = vmatprep.subr.mxu0 0.0
        %1452 = vmatpush1.msra.mxu0 0.0
        %1453 = vmatprep.subr.mxu0 0.0
        %1454 = vmatpush1.msra.mxu0 0.0
        %1455 = vmatprep.subr.mxu0 0.0
        %1456 = vmatpush1.msra.mxu0 0.0
        %1457 = vmatprep.subr.mxu0 0.0
        %1458 = vmatpush1.msra.mxu0 0.0
        %1459 = vmatprep.subr.mxu0 0.0
        %1460 = vmatpush1.msra.mxu0 0.0
        %1461 = vmatprep.subr.mxu0 0.0
        %1462 = vmatpush1.msra.mxu0 0.0
        %1463 = vmatprep.subr.mxu0 0.0
        %1464 = vmatpush1.msra.mxu0 0.0
        %1465 = vmatprep.subr.mxu0 0.0
        %1466 = vmatpush1.msra.mxu0 0.0
        %1467 = vmatprep.subr.mxu0 0.0
        %1468 = vmatpush1.msra.mxu0 0.0
        %1469 = vmatprep.subr.mxu0 0.0
        %1470 = vmatpush1.msra.mxu0 0.0
        %1471 = vmatprep.subr.mxu0 0.0
        %1472 = vmatpush1.msra.mxu0 0.0
        %1473 = vmatprep.subr.mxu0 0.0
        %1474 = vmatpush1.msra.mxu0 0.0
        %1475 = vmatprep.subr.mxu0 0.0
        %1476 = vmatpush1.msra.mxu0 0.0
        %1477 = vmatprep.mubr.f32.mxu0 0.0
        %1478 = vmatmul.mubr.f32.gmra.mrb[0].mxu0 %v1402
        %v1479 = vpop.f32.mrb[0].mxu0
        %v1480 = vadd.f32 0.0, %v1479
        %v1481 = vpop.f32.mrb[0].mxu0
        %v1482 = vadd.f32 0.0, %v1481
        %1483 = vmatprep.mubr.f32.mxu0 0.0
        %1484 = vmatmul.mubr.f32.gmra.mrb[0].mxu0 %v1405
        %v1485 = vpop.f32.mrb[0].mxu0
        %v1486 = vadd.f32 0.0, %v1485
        %v1487 = vpop.f32.mrb[0].mxu0
        %v1488 = vadd.f32 0.0, %v1487
        %1489 = vdwg.mxu0
        %v1490 = vld [vmem:[%s4] sm:$0xff]
        %v1491 = vld [vmem:[%s4 + $0x8] sm:$0xff]
        %v1492 = vld [vmem:[%s4 + $0x10] sm:$0xff]
        %v1493 = vld [vmem:[%s4 + $0x18] sm:$0xff]
        %v1494 = vld [vmem:[%s4 + $0x20] sm:$0xff]
        %v1495 = vld [vmem:[%s4 + $0x28] sm:$0xff]
        %v1496 = vld [vmem:[%s4 + $0x30] sm:$0xff]
        %v1497 = vld [vmem:[%s4 + $0x38] sm:$0xff]
        %v1498 = vld [vmem:[%s4 + $0x40] sm:$0xff]
        %v1499 = vld [vmem:[%s4 + $0x48] sm:$0xff]
        %v1500 = vld [vmem:[%s4 + $0x50] sm:$0xff]
        %v1501 = vld [vmem:[%s4 + $0x58] sm:$0xff]
        %v1502 = vld [vmem:[%s4 + $0x60] sm:$0xff]
        %v1503 = vld [vmem:[%s4 + $0x68] sm:$0xff]
        %v1504 = vld [vmem:[%s4 + $0x70] sm:$0xff]
        %v1505 = vld [vmem:[%s4 + $0x78] sm:$0xff]
        %v1506 = vld [vmem:[%s4 + $0x80] sm:$0xff]
        %v1507 = vld [vmem:[%s4 + $0x88] sm:$0xff]
        %v1508 = vld [vmem:[%s4 + $0x90] sm:$0xff]
        %v1509 = vld [vmem:[%s4 + $0x98] sm:$0xff]
        %v1510 = vld [vmem:[%s4 + $0xa0] sm:$0xff]
        %v1511 = vld [vmem:[%s4 + $0xa8] sm:$0xff]
        %v1512 = vld [vmem:[%s4 + $0xb0] sm:$0xff]
        %v1513 = vld [vmem:[%s4 + $0xb8] sm:$0xff]
        %vm1514 = vcmask 523264
        %v1516 = vsel %vm1514, %v1482, 0
        %v1519 = vsel %vm1514, %v1488, 0
        %1521 = vmatprep.subr.mxu0 0.0
        %1522 = vmatpush1.msra.mxu0 %v1490
        %1523 = vmatprep.subr.mxu0 0.0
        %1524 = vmatpush1.msra.mxu0 %v1491
        %1525 = vmatprep.subr.mxu0 0.0
        %1526 = vmatpush1.msra.mxu0 %v1492
        %1527 = vmatprep.subr.mxu0 0.0
        %1528 = vmatpush1.msra.mxu0 %v1493
        %1529 = vmatprep.subr.mxu0 0.0
        %1530 = vmatpush1.msra.mxu0 %v1494
        %1531 = vmatprep.subr.mxu0 0.0
        %1532 = vmatpush1.msra.mxu0 %v1495
        %1533 = vmatprep.subr.mxu0 0.0
        %1534 = vmatpush1.msra.mxu0 %v1496
        %1535 = vmatprep.subr.mxu0 0.0
        %1536 = vmatpush1.msra.mxu0 %v1497
        %1537 = vmatprep.subr.mxu0 0.0
        %1538 = vmatpush1.msra.mxu0 %v1498
        %1539 = vmatprep.subr.mxu0 0.0
        %1540 = vmatpush1.msra.mxu0 %v1499
        %1541 = vmatprep.subr.mxu0 0.0
        %1542 = vmatpush1.msra.mxu0 %v1500
        %1543 = vmatprep.subr.mxu0 0.0
        %1544 = vmatpush1.msra.mxu0 %v1501
        %1545 = vmatprep.subr.mxu0 0.0
        %1546 = vmatpush1.msra.mxu0 %v1502
        %1547 = vmatprep.subr.mxu0 0.0
        %1548 = vmatpush1.msra.mxu0 %v1503
        %1549 = vmatprep.subr.mxu0 0.0
        %1550 = vmatpush1.msra.mxu0 %v1504
        %1551 = vmatprep.subr.mxu0 0.0
        %1552 = vmatpush1.msra.mxu0 %v1505
        %1553 = vmatprep.subr.mxu0 0.0
        %1554 = vmatpush1.msra.mxu0 %v1506
        %1555 = vmatprep.subr.mxu0 0.0
        %1556 = vmatpush1.msra.mxu0 %v1507
        %1557 = vmatprep.subr.mxu0 0.0
        %1558 = vmatpush1.msra.mxu0 %v1508
        %1559 = vmatprep.subr.mxu0 0.0
        %1560 = vmatpush1.msra.mxu0 %v1509
        %1561 = vmatprep.subr.mxu0 0.0
        %1562 = vmatpush1.msra.mxu0 %v1510
        %1563 = vmatprep.subr.mxu0 0.0
        %1564 = vmatpush1.msra.mxu0 %v1511
        %1565 = vmatprep.subr.mxu0 0.0
        %1566 = vmatpush1.msra.mxu0 %v1512
        %1567 = vmatprep.subr.mxu0 0.0
        %1568 = vmatpush1.msra.mxu0 %v1513
        %1569 = vmatprep.subr.mxu0 0.0
        %1570 = vmatpush1.msra.mxu0 0.0
        %1571 = vmatprep.subr.mxu0 0.0
        %1572 = vmatpush1.msra.mxu0 0.0
        %1573 = vmatprep.subr.mxu0 0.0
        %1574 = vmatpush1.msra.mxu0 0.0
        %1575 = vmatprep.subr.mxu0 0.0
        %1576 = vmatpush1.msra.mxu0 0.0
        %1577 = vmatprep.subr.mxu0 0.0
        %1578 = vmatpush1.msra.mxu0 0.0
        %1579 = vmatprep.subr.mxu0 0.0
        %1580 = vmatpush1.msra.mxu0 0.0
        %1581 = vmatprep.subr.mxu0 0.0
        %1582 = vmatpush1.msra.mxu0 0.0
        %1583 = vmatprep.subr.mxu0 0.0
        %1584 = vmatpush1.msra.mxu0 0.0
        %1585 = vmatprep.mubr.f32.mxu0 %v1516
        %1586 = vmatmul.mubr.f32.gmra.mrb[0].mxu0 %v1480
        %v1587 = vpop.f32.mrb[0].mxu0
        %v1588 = vadd.f32 0.0, %v1587
        %v1589 = vpop.f32.mrb[0].mxu0
        %1590 = vmatprep.mubr.f32.mxu0 %v1519
        %1591 = vmatmul.mubr.f32.gmra.mrb[0].mxu0 %v1486
        %v1592 = vpop.f32.mrb[0].mxu0
        %v1593 = vadd.f32 0.0, %v1592
        %v1594 = vpop.f32.mrb[0].mxu0
        %1595 = vdwg.mxu0
        %v1596 = vld [vmem:[#allocation7] sm:$0xff]
        %v1597 = vld [vmem:[#allocation7 + $0x8] sm:$0xff]
        %v1598 = vld [vmem:[#allocation7 + $0x10] sm:$0xff]
        %v1599 = vld [vmem:[#allocation7 + $0x18] sm:$0xff]
        %v1600 = vld [vmem:[#allocation7 + $0x20] sm:$0xff]
        %v1601 = vld [vmem:[#allocation7 + $0x28] sm:$0xff]
        %v1602 = vld [vmem:[#allocation7 + $0x30] sm:$0xff]
        %v1603 = vld [vmem:[#allocation7 + $0x38] sm:$0xff]
        %v1604 = vld [vmem:[#allocation7 + $0x40] sm:$0xff]
        %v1605 = vld [vmem:[#allocation7 + $0x48] sm:$0xff]
        %v1606 = vld [vmem:[#allocation7 + $0x50] sm:$0xff]
        %v1607 = vld [vmem:[#allocation7 + $0x58] sm:$0xff]
        %v1608 = vld [vmem:[#allocation7 + $0x60] sm:$0xff]
        %v1609 = vld [vmem:[#allocation7 + $0x68] sm:$0xff]
        %v1610 = vld [vmem:[#allocation7 + $0x70] sm:$0xff]
        %v1611 = vld [vmem:[#allocation7 + $0x78] sm:$0xff]
        %v1612 = vld [vmem:[#allocation7 + $0x80] sm:$0xff]
        %v1613 = vld [vmem:[#allocation7 + $0x88] sm:$0xff]
        %v1614 = vld [vmem:[#allocation7 + $0x90] sm:$0xff]
        %v1615 = vld [vmem:[#allocation7 + $0x98] sm:$0xff]
        %v1616 = vld [vmem:[#allocation7 + $0xa0] sm:$0xff]
        %v1617 = vld [vmem:[#allocation7 + $0xa8] sm:$0xff]
        %v1618 = vld [vmem:[#allocation7 + $0xb0] sm:$0xff]
        %v1619 = vld [vmem:[#allocation7 + $0xb8] sm:$0xff]
        %1620 = vmatprep.subr.mxu0 0.0
        %1621 = vmatpush1.msra.mxu0 %v1596
        %1622 = vmatprep.subr.mxu0 0.0
        %1623 = vmatpush1.msra.mxu0 %v1597
        %1624 = vmatprep.subr.mxu0 0.0
        %1625 = vmatpush1.msra.mxu0 %v1598
        %1626 = vmatprep.subr.mxu0 0.0
        %1627 = vmatpush1.msra.mxu0 %v1599
        %1628 = vmatprep.subr.mxu0 0.0
        %1629 = vmatpush1.msra.mxu0 %v1600
        %1630 = vmatprep.subr.mxu0 0.0
        %1631 = vmatpush1.msra.mxu0 %v1601
        %1632 = vmatprep.subr.mxu0 0.0
        %1633 = vmatpush1.msra.mxu0 %v1602
        %1634 = vmatprep.subr.mxu0 0.0
        %1635 = vmatpush1.msra.mxu0 %v1603
        %1636 = vmatprep.subr.mxu0 0.0
        %1637 = vmatpush1.msra.mxu0 %v1604
        %1638 = vmatprep.subr.mxu0 0.0
        %1639 = vmatpush1.msra.mxu0 %v1605
        %1640 = vmatprep.subr.mxu0 0.0
        %1641 = vmatpush1.msra.mxu0 %v1606
        %1642 = vmatprep.subr.mxu0 0.0
        %1643 = vmatpush1.msra.mxu0 %v1607
        %1644 = vmatprep.subr.mxu0 0.0
        %1645 = vmatpush1.msra.mxu0 %v1608
        %1646 = vmatprep.subr.mxu0 0.0
        %1647 = vmatpush1.msra.mxu0 %v1609
        %1648 = vmatprep.subr.mxu0 0.0
        %1649 = vmatpush1.msra.mxu0 %v1610
        %1650 = vmatprep.subr.mxu0 0.0
        %1651 = vmatpush1.msra.mxu0 %v1611
        %1652 = vmatprep.subr.mxu0 0.0
        %1653 = vmatpush1.msra.mxu0 %v1612
        %1654 = vmatprep.subr.mxu0 0.0
        %1655 = vmatpush1.msra.mxu0 %v1613
        %1656 = vmatprep.subr.mxu0 0.0
        %1657 = vmatpush1.msra.mxu0 %v1614
        %1658 = vmatprep.subr.mxu0 0.0
        %1659 = vmatpush1.msra.mxu0 %v1615
        %1660 = vmatprep.subr.mxu0 0.0
        %1661 = vmatpush1.msra.mxu0 %v1616
        %1662 = vmatprep.subr.mxu0 0.0
        %1663 = vmatpush1.msra.mxu0 %v1617
        %1664 = vmatprep.subr.mxu0 0.0
        %1665 = vmatpush1.msra.mxu0 %v1618
        %1666 = vmatprep.subr.mxu0 0.0
        %1667 = vmatpush1.msra.mxu0 %v1619
        %1668 = vmatprep.subr.mxu0 0.0
        %1669 = vmatpush1.msra.mxu0 0.0
        %1670 = vmatprep.subr.mxu0 0.0
        %1671 = vmatpush1.msra.mxu0 0.0
        %1672 = vmatprep.subr.mxu0 0.0
        %1673 = vmatpush1.msra.mxu0 0.0
        %1674 = vmatprep.subr.mxu0 0.0
        %1675 = vmatpush1.msra.mxu0 0.0
        %1676 = vmatprep.subr.mxu0 0.0
        %1677 = vmatpush1.msra.mxu0 0.0
        %1678 = vmatprep.subr.mxu0 0.0
        %1679 = vmatpush1.msra.mxu0 0.0
        %1680 = vmatprep.subr.mxu0 0.0
        %1681 = vmatpush1.msra.mxu0 0.0
        %1682 = vmatprep.subr.mxu0 0.0
        %1683 = vmatpush1.msra.mxu0 0.0
        %1684 = vmatprep.mubr.f32.mxu0 %v1516
        %1685 = vmatmul.mubr.f32.gmra.mrb[0].mxu0 %v1480
        %v1686 = vpop.f32.mrb[0].mxu0
        %v1687 = vadd.f32 0.0, %v1686
        %v1688 = vpop.f32.mrb[0].mxu0
        %1689 = vmatprep.mubr.f32.mxu0 %v1519
        %1690 = vmatmul.mubr.f32.gmra.mrb[0].mxu0 %v1486
        %v1691 = vpop.f32.mrb[0].mxu0
        %v1692 = vadd.f32 0.0, %v1691
        %v1693 = vpop.f32.mrb[0].mxu0
        %1694 = vdwg.mxu0
        %v1695 = vmax.f32 %v1588, %v1687
        %v1696 = vmax.f32 %v1593, %v1692
        %v1697 = vld [vmem:[#allocation8] sm:$0xff]
        %v1698 = vld [vmem:[#allocation8 + $0x8] sm:$0xff]
        %v1699 = vld [vmem:[#allocation8 + $0x10] sm:$0xff]
        %v1700 = vld [vmem:[#allocation8 + $0x18] sm:$0xff]
        %v1701 = vld [vmem:[#allocation8 + $0x20] sm:$0xff]
        %v1702 = vld [vmem:[#allocation8 + $0x28] sm:$0xff]
        %v1703 = vld [vmem:[#allocation8 + $0x30] sm:$0xff]
        %v1704 = vld [vmem:[#allocation8 + $0x38] sm:$0xff]
        %v1705 = vld [vmem:[#allocation8 + $0x40] sm:$0xff]
        %v1706 = vld [vmem:[#allocation8 + $0x48] sm:$0xff]
        %v1707 = vld [vmem:[#allocation8 + $0x50] sm:$0xff]
        %v1708 = vld [vmem:[#allocation8 + $0x58] sm:$0xff]
        %v1709 = vld [vmem:[#allocation8 + $0x60] sm:$0xff]
        %v1710 = vld [vmem:[#allocation8 + $0x68] sm:$0xff]
        %v1711 = vld [vmem:[#allocation8 + $0x70] sm:$0xff]
        %v1712 = vld [vmem:[#allocation8 + $0x78] sm:$0xff]
        %v1713 = vld [vmem:[#allocation8 + $0x80] sm:$0xff]
        %v1714 = vld [vmem:[#allocation8 + $0x88] sm:$0xff]
        %v1715 = vld [vmem:[#allocation8 + $0x90] sm:$0xff]
        %v1716 = vld [vmem:[#allocation8 + $0x98] sm:$0xff]
        %v1717 = vld [vmem:[#allocation8 + $0xa0] sm:$0xff]
        %v1718 = vld [vmem:[#allocation8 + $0xa8] sm:$0xff]
        %v1719 = vld [vmem:[#allocation8 + $0xb0] sm:$0xff]
        %v1720 = vld [vmem:[#allocation8 + $0xb8] sm:$0xff]
        %s1721 = scalar_lea.vmem [#allocation8], 192
        %v1722 = vld [vmem:[%s1721] sm:$0xff]
        %v1723 = vld [vmem:[%s1721 + $0x8] sm:$0xff]
        %v1724 = vld [vmem:[%s1721 + $0x10] sm:$0xff]
        %v1725 = vld [vmem:[%s1721 + $0x18] sm:$0xff]
        %v1726 = vld [vmem:[%s1721 + $0x20] sm:$0xff]
        %v1727 = vld [vmem:[%s1721 + $0x28] sm:$0xff]
        %v1728 = vld [vmem:[%s1721 + $0x30] sm:$0xff]
        %v1729 = vld [vmem:[%s1721 + $0x38] sm:$0xff]
        %v1730 = vld [vmem:[%s1721 + $0x40] sm:$0xff]
        %v1731 = vld [vmem:[%s1721 + $0x48] sm:$0xff]
        %v1732 = vld [vmem:[%s1721 + $0x50] sm:$0xff]
        %v1733 = vld [vmem:[%s1721 + $0x58] sm:$0xff]
        %v1734 = vld [vmem:[%s1721 + $0x60] sm:$0xff]
        %v1735 = vld [vmem:[%s1721 + $0x68] sm:$0xff]
        %v1736 = vld [vmem:[%s1721 + $0x70] sm:$0xff]
        %v1737 = vld [vmem:[%s1721 + $0x78] sm:$0xff]
        %v1738 = vld [vmem:[%s1721 + $0x80] sm:$0xff]
        %v1739 = vld [vmem:[%s1721 + $0x88] sm:$0xff]
        %v1740 = vld [vmem:[%s1721 + $0x90] sm:$0xff]
        %v1741 = vld [vmem:[%s1721 + $0x98] sm:$0xff]
        %v1742 = vld [vmem:[%s1721 + $0xa0] sm:$0xff]
        %v1743 = vld [vmem:[%s1721 + $0xa8] sm:$0xff]
        %v1744 = vld [vmem:[%s1721 + $0xb0] sm:$0xff]
        %v1745 = vld [vmem:[%s1721 + $0xb8] sm:$0xff]
        %v1748 = vrot.slane %v1695, 1
        %v1749 = vrot.slane %v1696, 1
        %v1750 = vsel %vm719, %v1748, %v1749
        %vm1751 = vcmask 785408
        %v1752 = vsel %vm1751, %v1750, 0
        %v1754 = vsel %vm1751, %v1749, 0
        %1756 = vmatprep.subr.mxu0 %v1723
        %1757 = vmatpush1.msra.mxu0 %v1722
        %1758 = vmatprep.subr.mxu0 %v1725
        %1759 = vmatpush1.msra.mxu0 %v1724
        %1760 = vmatprep.subr.mxu0 %v1727
        %1761 = vmatpush1.msra.mxu0 %v1726
        %1762 = vmatprep.subr.mxu0 %v1729
        %1763 = vmatpush1.msra.mxu0 %v1728
        %1764 = vmatprep.subr.mxu0 %v1731
        %1765 = vmatpush1.msra.mxu0 %v1730
        %1766 = vmatprep.subr.mxu0 %v1733
        %1767 = vmatpush1.msra.mxu0 %v1732
        %1768 = vmatprep.subr.mxu0 %v1735
        %1769 = vmatpush1.msra.mxu0 %v1734
        %1770 = vmatprep.subr.mxu0 %v1737
        %1771 = vmatpush1.msra.mxu0 %v1736
        %1772 = vmatprep.subr.mxu0 %v1739
        %1773 = vmatpush1.msra.mxu0 %v1738
        %1774 = vmatprep.subr.mxu0 %v1741
        %1775 = vmatpush1.msra.mxu0 %v1740
        %1776 = vmatprep.subr.mxu0 %v1743
        %1777 = vmatpush1.msra.mxu0 %v1742
        %1778 = vmatprep.subr.mxu0 %v1745
        %1779 = vmatpush1.msra.mxu0 %v1744
        %1780 = vmatprep.subr.mxu0 0.0
        %1781 = vmatpush1.msra.mxu0 0.0
        %1782 = vmatprep.subr.mxu0 0.0
        %1783 = vmatpush1.msra.mxu0 0.0
        %1784 = vmatprep.subr.mxu0 0.0
        %1785 = vmatpush1.msra.mxu0 0.0
        %1786 = vmatprep.subr.mxu0 0.0
        %1787 = vmatpush1.msra.mxu0 0.0
        %1788 = vmatprep.subr.mxu0 0.0
        %1789 = vmatpush1.msra.mxu0 0.0
        %1790 = vmatprep.subr.mxu0 0.0
        %1791 = vmatpush1.msra.mxu0 0.0
        %1792 = vmatprep.subr.mxu0 0.0
        %1793 = vmatpush1.msra.mxu0 0.0
        %1794 = vmatprep.subr.mxu0 0.0
        %1795 = vmatpush1.msra.mxu0 0.0
        %1796 = vmatprep.subr.mxu0 0.0
        %1797 = vmatpush1.msra.mxu0 0.0
        %1798 = vmatprep.subr.mxu0 0.0
        %1799 = vmatpush1.msra.mxu0 0.0
        %1800 = vmatprep.subr.mxu0 0.0
        %1801 = vmatpush1.msra.mxu0 0.0
        %1802 = vmatprep.subr.mxu0 0.0
        %1803 = vmatpush1.msra.mxu0 0.0
        %1804 = vmatprep.subr.mxu0 0.0
        %1805 = vmatpush1.msra.mxu0 0.0
        %1806 = vmatprep.subr.mxu0 0.0
        %1807 = vmatpush1.msra.mxu0 0.0
        %1808 = vmatprep.subr.mxu0 0.0
        %1809 = vmatpush1.msra.mxu0 0.0
        %1810 = vmatprep.subr.mxu0 0.0
        %1811 = vmatpush1.msra.mxu0 0.0
        %1812 = vmatprep.subr.mxu0 0.0
        %1813 = vmatpush1.msra.mxu0 0.0
        %1814 = vmatprep.subr.mxu0 0.0
        %1815 = vmatpush1.msra.mxu0 0.0
        %1816 = vmatprep.subr.mxu0 0.0
        %1817 = vmatpush1.msra.mxu0 0.0
        %1818 = vmatprep.subr.mxu0 0.0
        %1819 = vmatpush1.msra.mxu0 0.0
        %1820 = vmatprep.mubr.f32.mxu0 0.0
        %1821 = vmatmul.mubr.f32.gmra.mrb[0].mxu0 %v1752
        %v1822 = vpop.f32.mrb[0].mxu0
        %v1823 = vadd.f32 0.0, %v1822
        %v1824 = vpop.f32.mrb[0].mxu0
        %v1825 = vadd.f32 0.0, %v1824
        %1826 = vmatprep.mubr.f32.mxu0 0.0
        %1827 = vmatmul.mubr.f32.gmra.mrb[0].mxu0 %v1754
        %v1828 = vpop.f32.mrb[0].mxu0
        %v1829 = vadd.f32 0.0, %v1828
        %v1830 = vpop.f32.mrb[0].mxu0
        %v1831 = vadd.f32 0.0, %v1830
        %1832 = vdwg.mxu0
        %v1833 = vsel %vm1751, %v1695, 0
        %v1835 = vsel %vm1751, %v1696, 0
        %1837 = vmatprep.subr.mxu0 %v1698
        %1838 = vmatpush1.msra.mxu0 %v1697
        %1839 = vmatprep.subr.mxu0 %v1700
        %1840 = vmatpush1.msra.mxu0 %v1699
        %1841 = vmatprep.subr.mxu0 %v1702
        %1842 = vmatpush1.msra.mxu0 %v1701
        %1843 = vmatprep.subr.mxu0 %v1704
        %1844 = vmatpush1.msra.mxu0 %v1703
        %1845 = vmatprep.subr.mxu0 %v1706
        %1846 = vmatpush1.msra.mxu0 %v1705
        %1847 = vmatprep.subr.mxu0 %v1708
        %1848 = vmatpush1.msra.mxu0 %v1707
        %1849 = vmatprep.subr.mxu0 %v1710
        %1850 = vmatpush1.msra.mxu0 %v1709
        %1851 = vmatprep.subr.mxu0 %v1712
        %1852 = vmatpush1.msra.mxu0 %v1711
        %1853 = vmatprep.subr.mxu0 %v1714
        %1854 = vmatpush1.msra.mxu0 %v1713
        %1855 = vmatprep.subr.mxu0 %v1716
        %1856 = vmatpush1.msra.mxu0 %v1715
        %1857 = vmatprep.subr.mxu0 %v1718
        %1858 = vmatpush1.msra.mxu0 %v1717
        %1859 = vmatprep.subr.mxu0 %v1720
        %1860 = vmatpush1.msra.mxu0 %v1719
        %1861 = vmatprep.subr.mxu0 0.0
        %1862 = vmatpush1.msra.mxu0 0.0
        %1863 = vmatprep.subr.mxu0 0.0
        %1864 = vmatpush1.msra.mxu0 0.0
        %1865 = vmatprep.subr.mxu0 0.0
        %1866 = vmatpush1.msra.mxu0 0.0
        %1867 = vmatprep.subr.mxu0 0.0
        %1868 = vmatpush1.msra.mxu0 0.0
        %1869 = vmatprep.subr.mxu0 0.0
        %1870 = vmatpush1.msra.mxu0 0.0
        %1871 = vmatprep.subr.mxu0 0.0
        %1872 = vmatpush1.msra.mxu0 0.0
        %1873 = vmatprep.subr.mxu0 0.0
        %1874 = vmatpush1.msra.mxu0 0.0
        %1875 = vmatprep.subr.mxu0 0.0
        %1876 = vmatpush1.msra.mxu0 0.0
        %1877 = vmatprep.subr.mxu0 0.0
        %1878 = vmatpush1.msra.mxu0 0.0
        %1879 = vmatprep.subr.mxu0 0.0
        %1880 = vmatpush1.msra.mxu0 0.0
        %1881 = vmatprep.subr.mxu0 0.0
        %1882 = vmatpush1.msra.mxu0 0.0
        %1883 = vmatprep.subr.mxu0 0.0
        %1884 = vmatpush1.msra.mxu0 0.0
        %1885 = vmatprep.subr.mxu0 0.0
        %1886 = vmatpush1.msra.mxu0 0.0
        %1887 = vmatprep.subr.mxu0 0.0
        %1888 = vmatpush1.msra.mxu0 0.0
        %1889 = vmatprep.subr.mxu0 0.0
        %1890 = vmatpush1.msra.mxu0 0.0
        %1891 = vmatprep.subr.mxu0 0.0
        %1892 = vmatpush1.msra.mxu0 0.0
        %1893 = vmatprep.subr.mxu0 0.0
        %1894 = vmatpush1.msra.mxu0 0.0
        %1895 = vmatprep.subr.mxu0 0.0
        %1896 = vmatpush1.msra.mxu0 0.0
        %1897 = vmatprep.subr.mxu0 0.0
        %1898 = vmatpush1.msra.mxu0 0.0
        %1899 = vmatprep.subr.mxu0 0.0
        %1900 = vmatpush1.msra.mxu0 0.0
        %1901 = vmatprep.mubr.f32.mxu0 0.0
        %1902 = vmatmul.mubr.f32.gmra.mrb[0].mxu0 %v1833
        %v1903 = vpop.f32.mrb[0].mxu0
        %v1904 = vadd.f32 %v1823, %v1903
        %v1905 = vpop.f32.mrb[0].mxu0
        %v1906 = vadd.f32 %v1825, %v1905
        %1907 = vmatprep.mubr.f32.mxu0 0.0
        %1908 = vmatmul.mubr.f32.gmra.mrb[0].mxu0 %v1835
        %v1909 = vpop.f32.mrb[0].mxu0
        %v1910 = vadd.f32 %v1829, %v1909
        %v1911 = vpop.f32.mrb[0].mxu0
        %v1912 = vadd.f32 %v1831, %v1911
        %1913 = vdwg.mxu0
        %s1914 = scalar_lea.vmem [#allocation8], 384
        %v1915 = vld [vmem:[%s1914] sm:$0xff]
        %v1916 = vld [vmem:[%s1914 + $0x8] sm:$0xff]
        %v1917 = vld [vmem:[%s1914 + $0x10] sm:$0xff]
        %v1918 = vld [vmem:[%s1914 + $0x18] sm:$0xff]
        %v1919 = vld [vmem:[%s1914 + $0x20] sm:$0xff]
        %v1920 = vld [vmem:[%s1914 + $0x28] sm:$0xff]
        %v1921 = vld [vmem:[%s1914 + $0x30] sm:$0xff]
        %v1922 = vld [vmem:[%s1914 + $0x38] sm:$0xff]
        %v1923 = vld [vmem:[%s1914 + $0x40] sm:$0xff]
        %v1924 = vld [vmem:[%s1914 + $0x48] sm:$0xff]
        %v1925 = vld [vmem:[%s1914 + $0x50] sm:$0xff]
        %v1926 = vld [vmem:[%s1914 + $0x58] sm:$0xff]
        %v1927 = vld [vmem:[%s1914 + $0x60] sm:$0xff]
        %v1928 = vld [vmem:[%s1914 + $0x68] sm:$0xff]
        %v1929 = vld [vmem:[%s1914 + $0x70] sm:$0xff]
        %v1930 = vld [vmem:[%s1914 + $0x78] sm:$0xff]
        %v1931 = vld [vmem:[%s1914 + $0x80] sm:$0xff]
        %v1932 = vld [vmem:[%s1914 + $0x88] sm:$0xff]
        %v1933 = vld [vmem:[%s1914 + $0x90] sm:$0xff]
        %v1934 = vld [vmem:[%s1914 + $0x98] sm:$0xff]
        %v1935 = vld [vmem:[%s1914 + $0xa0] sm:$0xff]
        %v1936 = vld [vmem:[%s1914 + $0xa8] sm:$0xff]
        %v1937 = vld [vmem:[%s1914 + $0xb0] sm:$0xff]
        %v1938 = vld [vmem:[%s1914 + $0xb8] sm:$0xff]
        %v1939 = vrot.slane %v1695, 2
        %v1940 = vrot.slane %v1696, 2
        %v1941 = vsel %vm948, %v1939, %v1940
        %v1942 = vsel %vm1751, %v1941, 0
        %v1944 = vsel %vm1751, %v1940, 0
        %1946 = vmatprep.subr.mxu0 %v1916
        %1947 = vmatpush1.msra.mxu0 %v1915
        %1948 = vmatprep.subr.mxu0 %v1918
        %1949 = vmatpush1.msra.mxu0 %v1917
        %1950 = vmatprep.subr.mxu0 %v1920
        %1951 = vmatpush1.msra.mxu0 %v1919
        %1952 = vmatprep.subr.mxu0 %v1922
        %1953 = vmatpush1.msra.mxu0 %v1921
        %1954 = vmatprep.subr.mxu0 %v1924
        %1955 = vmatpush1.msra.mxu0 %v1923
        %1956 = vmatprep.subr.mxu0 %v1926
        %1957 = vmatpush1.msra.mxu0 %v1925
        %1958 = vmatprep.subr.mxu0 %v1928
        %1959 = vmatpush1.msra.mxu0 %v1927
        %1960 = vmatprep.subr.mxu0 %v1930
        %1961 = vmatpush1.msra.mxu0 %v1929
        %1962 = vmatprep.subr.mxu0 %v1932
        %1963 = vmatpush1.msra.mxu0 %v1931
        %1964 = vmatprep.subr.mxu0 %v1934
        %1965 = vmatpush1.msra.mxu0 %v1933
        %1966 = vmatprep.subr.mxu0 %v1936
        %1967 = vmatpush1.msra.mxu0 %v1935
        %1968 = vmatprep.subr.mxu0 %v1938
        %1969 = vmatpush1.msra.mxu0 %v1937
        %1970 = vmatprep.subr.mxu0 0.0
        %1971 = vmatpush1.msra.mxu0 0.0
        %1972 = vmatprep.subr.mxu0 0.0
        %1973 = vmatpush1.msra.mxu0 0.0
        %1974 = vmatprep.subr.mxu0 0.0
        %1975 = vmatpush1.msra.mxu0 0.0
        %1976 = vmatprep.subr.mxu0 0.0
        %1977 = vmatpush1.msra.mxu0 0.0
        %1978 = vmatprep.subr.mxu0 0.0
        %1979 = vmatpush1.msra.mxu0 0.0
        %1980 = vmatprep.subr.mxu0 0.0
        %1981 = vmatpush1.msra.mxu0 0.0
        %1982 = vmatprep.subr.mxu0 0.0
        %1983 = vmatpush1.msra.mxu0 0.0
        %1984 = vmatprep.subr.mxu0 0.0
        %1985 = vmatpush1.msra.mxu0 0.0
        %1986 = vmatprep.subr.mxu0 0.0
        %1987 = vmatpush1.msra.mxu0 0.0
        %1988 = vmatprep.subr.mxu0 0.0
        %1989 = vmatpush1.msra.mxu0 0.0
        %1990 = vmatprep.subr.mxu0 0.0
        %1991 = vmatpush1.msra.mxu0 0.0
        %1992 = vmatprep.subr.mxu0 0.0
        %1993 = vmatpush1.msra.mxu0 0.0
        %1994 = vmatprep.subr.mxu0 0.0
        %1995 = vmatpush1.msra.mxu0 0.0
        %1996 = vmatprep.subr.mxu0 0.0
        %1997 = vmatpush1.msra.mxu0 0.0
        %1998 = vmatprep.subr.mxu0 0.0
        %1999 = vmatpush1.msra.mxu0 0.0
        %2000 = vmatprep.subr.mxu0 0.0
        %2001 = vmatpush1.msra.mxu0 0.0
        %2002 = vmatprep.subr.mxu0 0.0
        %2003 = vmatpush1.msra.mxu0 0.0
        %2004 = vmatprep.subr.mxu0 0.0
        %2005 = vmatpush1.msra.mxu0 0.0
        %2006 = vmatprep.subr.mxu0 0.0
        %2007 = vmatpush1.msra.mxu0 0.0
        %2008 = vmatprep.subr.mxu0 0.0
        %2009 = vmatpush1.msra.mxu0 0.0
        %2010 = vmatprep.mubr.f32.mxu0 0.0
        %2011 = vmatmul.mubr.f32.gmra.mrb[0].mxu0 %v1942
        %v2012 = vpop.f32.mrb[0].mxu0
        %v2013 = vadd.f32 0.0, %v2012
        %v2014 = vpop.f32.mrb[0].mxu0
        %v2015 = vadd.f32 0.0, %v2014
        %2016 = vmatprep.mubr.f32.mxu0 0.0
        %2017 = vmatmul.mubr.f32.gmra.mrb[0].mxu0 %v1944
        %v2018 = vpop.f32.mrb[0].mxu0
        %v2019 = vadd.f32 0.0, %v2018
        %v2020 = vpop.f32.mrb[0].mxu0
        %v2021 = vadd.f32 0.0, %v2020
        %2022 = vdwg.mxu0
        %v2023 = vadd.f32 %v1904, %v2013
        %v2024 = vadd.f32 %v1906, %v2015
        %v2025 = vadd.f32 %v1910, %v2019
        %v2026 = vadd.f32 %v1912, %v2021
        %s2027 = scalar_lea.vmem [#allocation8], 576
        %v2028 = vld [vmem:[%s2027] sm:$0xff]
        %v2029 = vld [vmem:[%s2027 + $0x8] sm:$0xff]
        %v2030 = vld [vmem:[%s2027 + $0x10] sm:$0xff]
        %v2031 = vld [vmem:[%s2027 + $0x18] sm:$0xff]
        %v2032 = vld [vmem:[%s2027 + $0x20] sm:$0xff]
        %v2033 = vld [vmem:[%s2027 + $0x28] sm:$0xff]
        %v2034 = vld [vmem:[%s2027 + $0x30] sm:$0xff]
        %v2035 = vld [vmem:[%s2027 + $0x38] sm:$0xff]
        %v2036 = vld [vmem:[%s2027 + $0x40] sm:$0xff]
        %v2037 = vld [vmem:[%s2027 + $0x48] sm:$0xff]
        %v2038 = vld [vmem:[%s2027 + $0x50] sm:$0xff]
        %v2039 = vld [vmem:[%s2027 + $0x58] sm:$0xff]
        %v2040 = vld [vmem:[%s2027 + $0x60] sm:$0xff]
        %v2041 = vld [vmem:[%s2027 + $0x68] sm:$0xff]
        %v2042 = vld [vmem:[%s2027 + $0x70] sm:$0xff]
        %v2043 = vld [vmem:[%s2027 + $0x78] sm:$0xff]
        %v2044 = vld [vmem:[%s2027 + $0x80] sm:$0xff]
        %v2045 = vld [vmem:[%s2027 + $0x88] sm:$0xff]
        %v2046 = vld [vmem:[%s2027 + $0x90] sm:$0xff]
        %v2047 = vld [vmem:[%s2027 + $0x98] sm:$0xff]
        %v2048 = vld [vmem:[%s2027 + $0xa0] sm:$0xff]
        %v2049 = vld [vmem:[%s2027 + $0xa8] sm:$0xff]
        %v2050 = vld [vmem:[%s2027 + $0xb0] sm:$0xff]
        %v2051 = vld [vmem:[%s2027 + $0xb8] sm:$0xff]
        %v2052 = vrot.slane %v1695, 3
        %v2053 = vrot.slane %v1696, 3
        %v2054 = vsel %vm1080, %v2052, %v2053
        %v2055 = vsel %vm1751, %v2054, 0
        %v2057 = vsel %vm1751, %v2053, 0
        %2059 = vmatprep.subr.mxu0 %v2029
        %2060 = vmatpush1.msra.mxu0 %v2028
        %2061 = vmatprep.subr.mxu0 %v2031
        %2062 = vmatpush1.msra.mxu0 %v2030
        %2063 = vmatprep.subr.mxu0 %v2033
        %2064 = vmatpush1.msra.mxu0 %v2032
        %2065 = vmatprep.subr.mxu0 %v2035
        %2066 = vmatpush1.msra.mxu0 %v2034
        %2067 = vmatprep.subr.mxu0 %v2037
        %2068 = vmatpush1.msra.mxu0 %v2036
        %2069 = vmatprep.subr.mxu0 %v2039
        %2070 = vmatpush1.msra.mxu0 %v2038
        %2071 = vmatprep.subr.mxu0 %v2041
        %2072 = vmatpush1.msra.mxu0 %v2040
        %2073 = vmatprep.subr.mxu0 %v2043
        %2074 = vmatpush1.msra.mxu0 %v2042
        %2075 = vmatprep.subr.mxu0 %v2045
        %2076 = vmatpush1.msra.mxu0 %v2044
        %2077 = vmatprep.subr.mxu0 %v2047
        %2078 = vmatpush1.msra.mxu0 %v2046
        %2079 = vmatprep.subr.mxu0 %v2049
        %2080 = vmatpush1.msra.mxu0 %v2048
        %2081 = vmatprep.subr.mxu0 %v2051
        %2082 = vmatpush1.msra.mxu0 %v2050
        %2083 = vmatprep.subr.mxu0 0.0
        %2084 = vmatpush1.msra.mxu0 0.0
        %2085 = vmatprep.subr.mxu0 0.0
        %2086 = vmatpush1.msra.mxu0 0.0
        %2087 = vmatprep.subr.mxu0 0.0
        %2088 = vmatpush1.msra.mxu0 0.0
        %2089 = vmatprep.subr.mxu0 0.0
        %2090 = vmatpush1.msra.mxu0 0.0
        %2091 = vmatprep.subr.mxu0 0.0
        %2092 = vmatpush1.msra.mxu0 0.0
        %2093 = vmatprep.subr.mxu0 0.0
        %2094 = vmatpush1.msra.mxu0 0.0
        %2095 = vmatprep.subr.mxu0 0.0
        %2096 = vmatpush1.msra.mxu0 0.0
        %2097 = vmatprep.subr.mxu0 0.0
        %2098 = vmatpush1.msra.mxu0 0.0
        %2099 = vmatprep.subr.mxu0 0.0
        %2100 = vmatpush1.msra.mxu0 0.0
        %2101 = vmatprep.subr.mxu0 0.0
        %2102 = vmatpush1.msra.mxu0 0.0
        %2103 = vmatprep.subr.mxu0 0.0
        %2104 = vmatpush1.msra.mxu0 0.0
        %2105 = vmatprep.subr.mxu0 0.0
        %2106 = vmatpush1.msra.mxu0 0.0
        %2107 = vmatprep.subr.mxu0 0.0
        %2108 = vmatpush1.msra.mxu0 0.0
        %2109 = vmatprep.subr.mxu0 0.0
        %2110 = vmatpush1.msra.mxu0 0.0
        %2111 = vmatprep.subr.mxu0 0.0
        %2112 = vmatpush1.msra.mxu0 0.0
        %2113 = vmatprep.subr.mxu0 0.0
        %2114 = vmatpush1.msra.mxu0 0.0
        %2115 = vmatprep.subr.mxu0 0.0
        %2116 = vmatpush1.msra.mxu0 0.0
        %2117 = vmatprep.subr.mxu0 0.0
        %2118 = vmatpush1.msra.mxu0 0.0
        %2119 = vmatprep.subr.mxu0 0.0
        %2120 = vmatpush1.msra.mxu0 0.0
        %2121 = vmatprep.subr.mxu0 0.0
        %2122 = vmatpush1.msra.mxu0 0.0
        %2123 = vmatprep.mubr.f32.mxu0 0.0
        %2124 = vmatmul.mubr.f32.gmra.mrb[0].mxu0 %v2055
        %v2125 = vpop.f32.mrb[0].mxu0
        %v2126 = vadd.f32 0.0, %v2125
        %v2127 = vpop.f32.mrb[0].mxu0
        %v2128 = vadd.f32 0.0, %v2127
        %2129 = vmatprep.mubr.f32.mxu0 0.0
        %2130 = vmatmul.mubr.f32.gmra.mrb[0].mxu0 %v2057
        %v2131 = vpop.f32.mrb[0].mxu0
        %v2132 = vadd.f32 0.0, %v2131
        %v2133 = vpop.f32.mrb[0].mxu0
        %v2134 = vadd.f32 0.0, %v2133
        %2135 = vdwg.mxu0
        %v2136 = vadd.f32 %v2023, %v2126
        %v2137 = vadd.f32 %v2024, %v2128
        %v2138 = vadd.f32 %v2025, %v2132
        %v2139 = vadd.f32 %v2026, %v2134
        %s2140 = scalar_lea.vmem [#allocation8], 768
        %v2141 = vld [vmem:[%s2140] sm:$0xff]
        %v2142 = vld [vmem:[%s2140 + $0x8] sm:$0xff]
        %v2143 = vld [vmem:[%s2140 + $0x10] sm:$0xff]
        %v2144 = vld [vmem:[%s2140 + $0x18] sm:$0xff]
        %v2145 = vld [vmem:[%s2140 + $0x20] sm:$0xff]
        %v2146 = vld [vmem:[%s2140 + $0x28] sm:$0xff]
        %v2147 = vld [vmem:[%s2140 + $0x30] sm:$0xff]
        %v2148 = vld [vmem:[%s2140 + $0x38] sm:$0xff]
        %v2149 = vld [vmem:[%s2140 + $0x40] sm:$0xff]
        %v2150 = vld [vmem:[%s2140 + $0x48] sm:$0xff]
        %v2151 = vld [vmem:[%s2140 + $0x50] sm:$0xff]
        %v2152 = vld [vmem:[%s2140 + $0x58] sm:$0xff]
        %v2153 = vld [vmem:[%s2140 + $0x60] sm:$0xff]
        %v2154 = vld [vmem:[%s2140 + $0x68] sm:$0xff]
        %v2155 = vld [vmem:[%s2140 + $0x70] sm:$0xff]
        %v2156 = vld [vmem:[%s2140 + $0x78] sm:$0xff]
        %v2157 = vld [vmem:[%s2140 + $0x80] sm:$0xff]
        %v2158 = vld [vmem:[%s2140 + $0x88] sm:$0xff]
        %v2159 = vld [vmem:[%s2140 + $0x90] sm:$0xff]
        %v2160 = vld [vmem:[%s2140 + $0x98] sm:$0xff]
        %v2161 = vld [vmem:[%s2140 + $0xa0] sm:$0xff]
        %v2162 = vld [vmem:[%s2140 + $0xa8] sm:$0xff]
        %v2163 = vld [vmem:[%s2140 + $0xb0] sm:$0xff]
        %v2164 = vld [vmem:[%s2140 + $0xb8] sm:$0xff]
        %v2165 = vrot.slane %v1695, 4
        %v2166 = vrot.slane %v1696, 4
        %v2167 = vsel %vm738, %v2165, %v2166
        %v2168 = vsel %vm1751, %v2167, 0
        %v2170 = vsel %vm1751, %v2166, 0
        %2172 = vmatprep.subr.mxu0 %v2142
        %2173 = vmatpush1.msra.mxu0 %v2141
        %2174 = vmatprep.subr.mxu0 %v2144
        %2175 = vmatpush1.msra.mxu0 %v2143
        %2176 = vmatprep.subr.mxu0 %v2146
        %2177 = vmatpush1.msra.mxu0 %v2145
        %2178 = vmatprep.subr.mxu0 %v2148
        %2179 = vmatpush1.msra.mxu0 %v2147
        %2180 = vmatprep.subr.mxu0 %v2150
        %2181 = vmatpush1.msra.mxu0 %v2149
        %2182 = vmatprep.subr.mxu0 %v2152
        %2183 = vmatpush1.msra.mxu0 %v2151
        %2184 = vmatprep.subr.mxu0 %v2154
        %2185 = vmatpush1.msra.mxu0 %v2153
        %2186 = vmatprep.subr.mxu0 %v2156
        %2187 = vmatpush1.msra.mxu0 %v2155
        %2188 = vmatprep.subr.mxu0 %v2158
        %2189 = vmatpush1.msra.mxu0 %v2157
        %2190 = vmatprep.subr.mxu0 %v2160
        %2191 = vmatpush1.msra.mxu0 %v2159
        %2192 = vmatprep.subr.mxu0 %v2162
        %2193 = vmatpush1.msra.mxu0 %v2161
        %2194 = vmatprep.subr.mxu0 %v2164
        %2195 = vmatpush1.msra.mxu0 %v2163
        %2196 = vmatprep.subr.mxu0 0.0
        %2197 = vmatpush1.msra.mxu0 0.0
        %2198 = vmatprep.subr.mxu0 0.0
        %2199 = vmatpush1.msra.mxu0 0.0
        %2200 = vmatprep.subr.mxu0 0.0
        %2201 = vmatpush1.msra.mxu0 0.0
        %2202 = vmatprep.subr.mxu0 0.0
        %2203 = vmatpush1.msra.mxu0 0.0
        %2204 = vmatprep.subr.mxu0 0.0
        %2205 = vmatpush1.msra.mxu0 0.0
        %2206 = vmatprep.subr.mxu0 0.0
        %2207 = vmatpush1.msra.mxu0 0.0
        %2208 = vmatprep.subr.mxu0 0.0
        %2209 = vmatpush1.msra.mxu0 0.0
        %2210 = vmatprep.subr.mxu0 0.0
        %2211 = vmatpush1.msra.mxu0 0.0
        %2212 = vmatprep.subr.mxu0 0.0
        %2213 = vmatpush1.msra.mxu0 0.0
        %2214 = vmatprep.subr.mxu0 0.0
        %2215 = vmatpush1.msra.mxu0 0.0
        %2216 = vmatprep.subr.mxu0 0.0
        %2217 = vmatpush1.msra.mxu0 0.0
        %2218 = vmatprep.subr.mxu0 0.0
        %2219 = vmatpush1.msra.mxu0 0.0
        %2220 = vmatprep.subr.mxu0 0.0
        %2221 = vmatpush1.msra.mxu0 0.0
        %2222 = vmatprep.subr.mxu0 0.0
        %2223 = vmatpush1.msra.mxu0 0.0
        %2224 = vmatprep.subr.mxu0 0.0
        %2225 = vmatpush1.msra.mxu0 0.0
        %2226 = vmatprep.subr.mxu0 0.0
        %2227 = vmatpush1.msra.mxu0 0.0
        %2228 = vmatprep.subr.mxu0 0.0
        %2229 = vmatpush1.msra.mxu0 0.0
        %2230 = vmatprep.subr.mxu0 0.0
        %2231 = vmatpush1.msra.mxu0 0.0
        %2232 = vmatprep.subr.mxu0 0.0
        %2233 = vmatpush1.msra.mxu0 0.0
        %2234 = vmatprep.subr.mxu0 0.0
        %2235 = vmatpush1.msra.mxu0 0.0
        %2236 = vmatprep.mubr.f32.mxu0 0.0
        %2237 = vmatmul.mubr.f32.gmra.mrb[0].mxu0 %v2168
        %v2238 = vpop.f32.mrb[0].mxu0
        %v2239 = vadd.f32 0.0, %v2238
        %v2240 = vpop.f32.mrb[0].mxu0
        %v2241 = vadd.f32 0.0, %v2240
        %2242 = vmatprep.mubr.f32.mxu0 0.0
        %2243 = vmatmul.mubr.f32.gmra.mrb[0].mxu0 %v2170
        %v2244 = vpop.f32.mrb[0].mxu0
        %v2245 = vadd.f32 0.0, %v2244
        %v2246 = vpop.f32.mrb[0].mxu0
        %v2247 = vadd.f32 0.0, %v2246
        %2248 = vdwg.mxu0
        %v2249 = vadd.f32 %v2136, %v2239
        %v2250 = vadd.f32 %v2137, %v2241
        %v2251 = vadd.f32 %v2138, %v2245
        %v2252 = vadd.f32 %v2139, %v2247
        %v2253 = vld [vmem:[#allocation10] sm:$0x3]
        %v2255 = vlaneseq
        %v2256 = vshrl.u32 %v2255, 7
        %v2257 = vsub.s32 0, %v2256
        %v2258 = vrot.slane %v2253, %v2257
        %v2259 = vlaneseq
        %v2260 = vshrl.u32 %v2259, 7
        %v2261 = vsub.s32 1, %v2260
        %v2262 = vrot.slane %v2253, %v2261
        %v2265 = vadd.f32 %v2249, %v2258
        %v2266 = vadd.f32 %v2250, %v2262
        %v2267 = vadd.f32 %v2251, %v2258
        %v2268 = vadd.f32 %v2252, %v2262
        %v2269 = vmax.f32 %v2265, 0.0
        %v2270 = vmax.f32 %v2266, 0.0
        %v2271 = vmax.f32 %v2267, 0.0
        %v2272 = vmax.f32 %v2268, 0.0
        %v2277 = vrot.slane %v2269, 1
        %v2278 = vrot.slane %v2271, 1
        %v2279 = vsel %vm719, %v2277, %v2278
        %v2280 = vrot.slane %v2270, 1
        %v2281 = vrot.slane %v2272, 1
        %v2282 = vsel %vm719, %v2280, %v2281
        %v2287 = vmax.f32 %v2269, %v2279
        %v2288 = vmax.f32 %v2270, %v2282
        %v2289 = vmax.f32 %v2271, %v2278
        %v2290 = vmax.f32 %v2272, %v2281
        %v2291 = vld [vmem:[#allocation11] sm:$0x3f]
        %vm2292 = vcmask 89088
        %v2294 = vsel %vm2292, %v2291, 0
        %vm2296 = vcmask 1042432
        %v2298 = vsel %vm2296, %v2289, 0
        %v2301 = vsel %vm2296, %v2290, 0
        %2303 = vmatprep.subr.mxu0 %v2288
        %2304 = vmatpush1.msra.mxu0 %v2287
        %2305 = vmatprep.subr.mxu0 %v2301
        %2306 = vmatpush1.msra.mxu0 %v2298
        %2307 = vmatprep.subr.mxu0 0.0
        %2308 = vmatpush1.msra.mxu0 0.0
        %2309 = vmatprep.subr.mxu0 0.0
        %2310 = vmatpush1.msra.mxu0 0.0
        %2311 = vmatprep.subr.mxu0 0.0
        %2312 = vmatpush1.msra.mxu0 0.0
        %2313 = vmatprep.subr.mxu0 0.0
        %2314 = vmatpush1.msra.mxu0 0.0
        %2315 = vmatprep.subr.mxu0 0.0
        %2316 = vmatpush1.msra.mxu0 0.0
        %2317 = vmatprep.subr.mxu0 0.0
        %2318 = vmatpush1.msra.mxu0 0.0
        %2319 = vmatprep.subr.mxu0 0.0
        %2320 = vmatpush1.msra.mxu0 0.0
        %2321 = vmatprep.subr.mxu0 0.0
        %2322 = vmatpush1.msra.mxu0 0.0
        %2323 = vmatprep.subr.mxu0 0.0
        %2324 = vmatpush1.msra.mxu0 0.0
        %2325 = vmatprep.subr.mxu0 0.0
        %2326 = vmatpush1.msra.mxu0 0.0
        %2327 = vmatprep.subr.mxu0 0.0
        %2328 = vmatpush1.msra.mxu0 0.0
        %2329 = vmatprep.subr.mxu0 0.0
        %2330 = vmatpush1.msra.mxu0 0.0
        %2331 = vmatprep.subr.mxu0 0.0
        %2332 = vmatpush1.msra.mxu0 0.0
        %2333 = vmatprep.subr.mxu0 0.0
        %2334 = vmatpush1.msra.mxu0 0.0
        %2335 = vmatprep.subr.mxu0 0.0
        %2336 = vmatpush1.msra.mxu0 0.0
        %2337 = vmatprep.subr.mxu0 0.0
        %2338 = vmatpush1.msra.mxu0 0.0
        %2339 = vmatprep.subr.mxu0 0.0
        %2340 = vmatpush1.msra.mxu0 0.0
        %2341 = vmatprep.subr.mxu0 0.0
        %2342 = vmatpush1.msra.mxu0 0.0
        %2343 = vmatprep.subr.mxu0 0.0
        %2344 = vmatpush1.msra.mxu0 0.0
        %2345 = vmatprep.subr.mxu0 0.0
        %2346 = vmatpush1.msra.mxu0 0.0
        %2347 = vmatprep.subr.mxu0 0.0
        %2348 = vmatpush1.msra.mxu0 0.0
        %2349 = vmatprep.subr.mxu0 0.0
        %2350 = vmatpush1.msra.mxu0 0.0
        %2351 = vmatprep.subr.mxu0 0.0
        %2352 = vmatpush1.msra.mxu0 0.0
        %2353 = vmatprep.subr.mxu0 0.0
        %2354 = vmatpush1.msra.mxu0 0.0
        %2355 = vmatprep.subr.mxu0 0.0
        %2356 = vmatpush1.msra.mxu0 0.0
        %2357 = vmatprep.subr.mxu0 0.0
        %2358 = vmatpush1.msra.mxu0 0.0
        %2359 = vmatprep.subr.mxu0 0.0
        %2360 = vmatpush1.msra.mxu0 0.0
        %2361 = vmatprep.subr.mxu0 0.0
        %2362 = vmatpush1.msra.mxu0 0.0
        %2363 = vmatprep.subr.mxu0 0.0
        %2364 = vmatpush1.msra.mxu0 0.0
        %2365 = vmatprep.subr.mxu0 0.0
        %2366 = vmatpush1.msra.mxu0 0.0
        %2367 = vmatprep.mubr.f32.mxu0 0.0
        %2368 = vmatmul.mubr.f32.gmra.mrb[0].mxu0 %v2294
        %v2369 = vpop.f32.mrb[0].mxu0
        %v2370 = vadd.f32 0.0, %v2369
        %v2371 = vpop.f32.mrb[0].mxu0
        %v2372 = vadd.f32 0.0, %v2371
        %2373 = vdwg.mxu0
        %v2374 = vld [vmem:[#allocation13] sm:$0xff]
        %v2375 = vld [vmem:[#allocation13 + $0x8] sm:$0xff]
        %v2376 = vld [vmem:[#allocation13 + $0x10] sm:$0xff]
        %v2377 = vld [vmem:[#allocation13 + $0x18] sm:$0xff]
        %v2378 = vld [vmem:[#allocation13 + $0x20] sm:$0xff]
        %v2379 = vld [vmem:[#allocation13 + $0x28] sm:$0xff]
        %v2380 = vld [vmem:[#allocation13 + $0x30] sm:$0xff]
        %v2381 = vld [vmem:[#allocation13 + $0x38] sm:$0xff]
        %v2382 = vld [vmem:[#allocation13 + $0x40] sm:$0xff]
        %v2383 = vld [vmem:[#allocation13 + $0x48] sm:$0xff]
        %v2384 = vld [vmem:[#allocation13 + $0x50] sm:$0xff]
        %v2385 = vld [vmem:[#allocation13 + $0x58] sm:$0xff]
        %v2386 = vld [vmem:[#allocation13 + $0x60] sm:$0xff]
        %v2387 = vld [vmem:[#allocation13 + $0x68] sm:$0xff]
        %v2388 = vld [vmem:[#allocation13 + $0x70] sm:$0xff]
        %v2389 = vld [vmem:[#allocation13 + $0x78] sm:$0xff]
        %v2390 = vld [vmem:[#allocation13 + $0x80] sm:$0xff]
        %v2391 = vld [vmem:[#allocation13 + $0x88] sm:$0xff]
        %v2392 = vld [vmem:[#allocation13 + $0x90] sm:$0xff]
        %v2393 = vld [vmem:[#allocation13 + $0x98] sm:$0xff]
        %v2394 = vld [vmem:[#allocation13 + $0xa0] sm:$0xff]
        %v2395 = vld [vmem:[#allocation13 + $0xa8] sm:$0xff]
        %v2396 = vld [vmem:[#allocation13 + $0xb0] sm:$0xff]
        %v2397 = vld [vmem:[#allocation13 + $0xb8] sm:$0xff]
        %v2399 = vsel %vm1514, %v2372, 0
        %2401 = vmatprep.subr.mxu0 0.0
        %2402 = vmatpush1.msra.mxu0 %v2374
        %2403 = vmatprep.subr.mxu0 0.0
        %2404 = vmatpush1.msra.mxu0 %v2375
        %2405 = vmatprep.subr.mxu0 0.0
        %2406 = vmatpush1.msra.mxu0 %v2376
        %2407 = vmatprep.subr.mxu0 0.0
        %2408 = vmatpush1.msra.mxu0 %v2377
        %2409 = vmatprep.subr.mxu0 0.0
        %2410 = vmatpush1.msra.mxu0 %v2378
        %2411 = vmatprep.subr.mxu0 0.0
        %2412 = vmatpush1.msra.mxu0 %v2379
        %2413 = vmatprep.subr.mxu0 0.0
        %2414 = vmatpush1.msra.mxu0 %v2380
        %2415 = vmatprep.subr.mxu0 0.0
        %2416 = vmatpush1.msra.mxu0 %v2381
        %2417 = vmatprep.subr.mxu0 0.0
        %2418 = vmatpush1.msra.mxu0 %v2382
        %2419 = vmatprep.subr.mxu0 0.0
        %2420 = vmatpush1.msra.mxu0 %v2383
        %2421 = vmatprep.subr.mxu0 0.0
        %2422 = vmatpush1.msra.mxu0 %v2384
        %2423 = vmatprep.subr.mxu0 0.0
        %2424 = vmatpush1.msra.mxu0 %v2385
        %2425 = vmatprep.subr.mxu0 0.0
        %2426 = vmatpush1.msra.mxu0 %v2386
        %2427 = vmatprep.subr.mxu0 0.0
        %2428 = vmatpush1.msra.mxu0 %v2387
        %2429 = vmatprep.subr.mxu0 0.0
        %2430 = vmatpush1.msra.mxu0 %v2388
        %2431 = vmatprep.subr.mxu0 0.0
        %2432 = vmatpush1.msra.mxu0 %v2389
        %2433 = vmatprep.subr.mxu0 0.0
        %2434 = vmatpush1.msra.mxu0 %v2390
        %2435 = vmatprep.subr.mxu0 0.0
        %2436 = vmatpush1.msra.mxu0 %v2391
        %2437 = vmatprep.subr.mxu0 0.0
        %2438 = vmatpush1.msra.mxu0 %v2392
        %2439 = vmatprep.subr.mxu0 0.0
        %2440 = vmatpush1.msra.mxu0 %v2393
        %2441 = vmatprep.subr.mxu0 0.0
        %2442 = vmatpush1.msra.mxu0 %v2394
        %2443 = vmatprep.subr.mxu0 0.0
        %2444 = vmatpush1.msra.mxu0 %v2395
        %2445 = vmatprep.subr.mxu0 0.0
        %2446 = vmatpush1.msra.mxu0 %v2396
        %2447 = vmatprep.subr.mxu0 0.0
        %2448 = vmatpush1.msra.mxu0 %v2397
        %2449 = vmatprep.subr.mxu0 0.0
        %2450 = vmatpush1.msra.mxu0 0.0
        %2451 = vmatprep.subr.mxu0 0.0
        %2452 = vmatpush1.msra.mxu0 0.0
        %2453 = vmatprep.subr.mxu0 0.0
        %2454 = vmatpush1.msra.mxu0 0.0
        %2455 = vmatprep.subr.mxu0 0.0
        %2456 = vmatpush1.msra.mxu0 0.0
        %2457 = vmatprep.subr.mxu0 0.0
        %2458 = vmatpush1.msra.mxu0 0.0
        %2459 = vmatprep.subr.mxu0 0.0
        %2460 = vmatpush1.msra.mxu0 0.0
        %2461 = vmatprep.subr.mxu0 0.0
        %2462 = vmatpush1.msra.mxu0 0.0
        %2463 = vmatprep.subr.mxu0 0.0
        %2464 = vmatpush1.msra.mxu0 0.0
        %2465 = vmatprep.mubr.f32.mxu0 %v2399
        %2466 = vmatmul.mubr.f32.gmra.mrb[0].mxu0 %v2370
        %v2467 = vpop.f32.mrb[0].mxu0
        %v2468 = vadd.f32 0.0, %v2467
        %v2469 = vpop.f32.mrb[0].mxu0
        %2470 = vdwg.mxu0
        %v2471 = vld [vmem:[#allocation14] sm:$0xff]
        %v2472 = vld [vmem:[#allocation14 + $0x8] sm:$0xff]
        %v2473 = vld [vmem:[#allocation14 + $0x10] sm:$0xff]
        %v2474 = vld [vmem:[#allocation14 + $0x18] sm:$0xff]
        %v2475 = vld [vmem:[#allocation14 + $0x20] sm:$0xff]
        %v2476 = vld [vmem:[#allocation14 + $0x28] sm:$0xff]
        %v2477 = vld [vmem:[#allocation14 + $0x30] sm:$0xff]
        %v2478 = vld [vmem:[#allocation14 + $0x38] sm:$0xff]
        %v2479 = vld [vmem:[#allocation14 + $0x40] sm:$0xff]
        %v2480 = vld [vmem:[#allocation14 + $0x48] sm:$0xff]
        %v2481 = vld [vmem:[#allocation14 + $0x50] sm:$0xff]
        %v2482 = vld [vmem:[#allocation14 + $0x58] sm:$0xff]
        %v2483 = vld [vmem:[#allocation14 + $0x60] sm:$0xff]
        %v2484 = vld [vmem:[#allocation14 + $0x68] sm:$0xff]
        %v2485 = vld [vmem:[#allocation14 + $0x70] sm:$0xff]
        %v2486 = vld [vmem:[#allocation14 + $0x78] sm:$0xff]
        %v2487 = vld [vmem:[#allocation14 + $0x80] sm:$0xff]
        %v2488 = vld [vmem:[#allocation14 + $0x88] sm:$0xff]
        %v2489 = vld [vmem:[#allocation14 + $0x90] sm:$0xff]
        %v2490 = vld [vmem:[#allocation14 + $0x98] sm:$0xff]
        %v2491 = vld [vmem:[#allocation14 + $0xa0] sm:$0xff]
        %v2492 = vld [vmem:[#allocation14 + $0xa8] sm:$0xff]
        %v2493 = vld [vmem:[#allocation14 + $0xb0] sm:$0xff]
        %v2494 = vld [vmem:[#allocation14 + $0xb8] sm:$0xff]
        %2495 = vmatprep.subr.mxu0 0.0
        %2496 = vmatpush1.msra.mxu0 %v2471
        %2497 = vmatprep.subr.mxu0 0.0
        %2498 = vmatpush1.msra.mxu0 %v2472
        %2499 = vmatprep.subr.mxu0 0.0
        %2500 = vmatpush1.msra.mxu0 %v2473
        %2501 = vmatprep.subr.mxu0 0.0
        %2502 = vmatpush1.msra.mxu0 %v2474
        %2503 = vmatprep.subr.mxu0 0.0
        %2504 = vmatpush1.msra.mxu0 %v2475
        %2505 = vmatprep.subr.mxu0 0.0
        %2506 = vmatpush1.msra.mxu0 %v2476
        %2507 = vmatprep.subr.mxu0 0.0
        %2508 = vmatpush1.msra.mxu0 %v2477
        %2509 = vmatprep.subr.mxu0 0.0
        %2510 = vmatpush1.msra.mxu0 %v2478
        %2511 = vmatprep.subr.mxu0 0.0
        %2512 = vmatpush1.msra.mxu0 %v2479
        %2513 = vmatprep.subr.mxu0 0.0
        %2514 = vmatpush1.msra.mxu0 %v2480
        %2515 = vmatprep.subr.mxu0 0.0
        %2516 = vmatpush1.msra.mxu0 %v2481
        %2517 = vmatprep.subr.mxu0 0.0
        %2518 = vmatpush1.msra.mxu0 %v2482
        %2519 = vmatprep.subr.mxu0 0.0
        %2520 = vmatpush1.msra.mxu0 %v2483
        %2521 = vmatprep.subr.mxu0 0.0
        %2522 = vmatpush1.msra.mxu0 %v2484
        %2523 = vmatprep.subr.mxu0 0.0
        %2524 = vmatpush1.msra.mxu0 %v2485
        %2525 = vmatprep.subr.mxu0 0.0
        %2526 = vmatpush1.msra.mxu0 %v2486
        %2527 = vmatprep.subr.mxu0 0.0
        %2528 = vmatpush1.msra.mxu0 %v2487
        %2529 = vmatprep.subr.mxu0 0.0
        %2530 = vmatpush1.msra.mxu0 %v2488
        %2531 = vmatprep.subr.mxu0 0.0
        %2532 = vmatpush1.msra.mxu0 %v2489
        %2533 = vmatprep.subr.mxu0 0.0
        %2534 = vmatpush1.msra.mxu0 %v2490
        %2535 = vmatprep.subr.mxu0 0.0
        %2536 = vmatpush1.msra.mxu0 %v2491
        %2537 = vmatprep.subr.mxu0 0.0
        %2538 = vmatpush1.msra.mxu0 %v2492
        %2539 = vmatprep.subr.mxu0 0.0
        %2540 = vmatpush1.msra.mxu0 %v2493
        %2541 = vmatprep.subr.mxu0 0.0
        %2542 = vmatpush1.msra.mxu0 %v2494
        %2543 = vmatprep.subr.mxu0 0.0
        %2544 = vmatpush1.msra.mxu0 0.0
        %2545 = vmatprep.subr.mxu0 0.0
        %2546 = vmatpush1.msra.mxu0 0.0
        %2547 = vmatprep.subr.mxu0 0.0
        %2548 = vmatpush1.msra.mxu0 0.0
        %2549 = vmatprep.subr.mxu0 0.0
        %2550 = vmatpush1.msra.mxu0 0.0
        %2551 = vmatprep.subr.mxu0 0.0
        %2552 = vmatpush1.msra.mxu0 0.0
        %2553 = vmatprep.subr.mxu0 0.0
        %2554 = vmatpush1.msra.mxu0 0.0
        %2555 = vmatprep.subr.mxu0 0.0
        %2556 = vmatpush1.msra.mxu0 0.0
        %2557 = vmatprep.subr.mxu0 0.0
        %2558 = vmatpush1.msra.mxu0 0.0
        %2559 = vmatprep.mubr.f32.mxu0 %v2399
        %2560 = vmatmul.mubr.f32.gmra.mrb[0].mxu0 %v2370
        %v2561 = vpop.f32.mrb[0].mxu0
        %v2562 = vadd.f32 0.0, %v2561
        %v2563 = vpop.f32.mrb[0].mxu0
        %2564 = vdwg.mxu0
        %v2565 = vmax.f32 %v2468, %v2562
        %v2566 = vld [vmem:[%s12] sm:$0x1]
        %v2567 = vld [vmem:[#allocation16] sm:$0xff]
        %v2568 = vld [vmem:[#allocation16 + $0x8] sm:$0xff]
        %v2569 = vld [vmem:[#allocation16 + $0x10] sm:$0xff]
        %v2570 = vld [vmem:[#allocation16 + $0x18] sm:$0xff]
        %v2571 = vld [vmem:[#allocation16 + $0x20] sm:$0xff]
        %v2572 = vld [vmem:[#allocation16 + $0x28] sm:$0xff]
        %v2573 = vld [vmem:[#allocation16 + $0x30] sm:$0xff]
        %v2574 = vld [vmem:[#allocation16 + $0x38] sm:$0xff]
        %v2575 = vld [vmem:[#allocation16 + $0x40] sm:$0xff]
        %v2576 = vld [vmem:[#allocation16 + $0x48] sm:$0xff]
        %v2577 = vld [vmem:[#allocation16 + $0x50] sm:$0xff]
        %v2578 = vld [vmem:[#allocation16 + $0x58] sm:$0xff]
        %v2580 = vsel %vm1751, %v2565, 0
        %2582 = vmatprep.subr.mxu0 0.0
        %2583 = vmatpush1.msra.mxu0 %v2567
        %2584 = vmatprep.subr.mxu0 0.0
        %2585 = vmatpush1.msra.mxu0 %v2568
        %2586 = vmatprep.subr.mxu0 0.0
        %2587 = vmatpush1.msra.mxu0 %v2569
        %2588 = vmatprep.subr.mxu0 0.0
        %2589 = vmatpush1.msra.mxu0 %v2570
        %2590 = vmatprep.subr.mxu0 0.0
        %2591 = vmatpush1.msra.mxu0 %v2571
        %2592 = vmatprep.subr.mxu0 0.0
        %2593 = vmatpush1.msra.mxu0 %v2572
        %2594 = vmatprep.subr.mxu0 0.0
        %2595 = vmatpush1.msra.mxu0 %v2573
        %2596 = vmatprep.subr.mxu0 0.0
        %2597 = vmatpush1.msra.mxu0 %v2574
        %2598 = vmatprep.subr.mxu0 0.0
        %2599 = vmatpush1.msra.mxu0 %v2575
        %2600 = vmatprep.subr.mxu0 0.0
        %2601 = vmatpush1.msra.mxu0 %v2576
        %2602 = vmatprep.subr.mxu0 0.0
        %2603 = vmatpush1.msra.mxu0 %v2577
        %2604 = vmatprep.subr.mxu0 0.0
        %2605 = vmatpush1.msra.mxu0 %v2578
        %2606 = vmatprep.subr.mxu0 0.0
        %2607 = vmatpush1.msra.mxu0 0.0
        %2608 = vmatprep.subr.mxu0 0.0
        %2609 = vmatpush1.msra.mxu0 0.0
        %2610 = vmatprep.subr.mxu0 0.0
        %2611 = vmatpush1.msra.mxu0 0.0
        %2612 = vmatprep.subr.mxu0 0.0
        %2613 = vmatpush1.msra.mxu0 0.0
        %2614 = vmatprep.subr.mxu0 0.0
        %2615 = vmatpush1.msra.mxu0 0.0
        %2616 = vmatprep.subr.mxu0 0.0
        %2617 = vmatpush1.msra.mxu0 0.0
        %2618 = vmatprep.subr.mxu0 0.0
        %2619 = vmatpush1.msra.mxu0 0.0
        %2620 = vmatprep.subr.mxu0 0.0
        %2621 = vmatpush1.msra.mxu0 0.0
        %2622 = vmatprep.subr.mxu0 0.0
        %2623 = vmatpush1.msra.mxu0 0.0
        %2624 = vmatprep.subr.mxu0 0.0
        %2625 = vmatpush1.msra.mxu0 0.0
        %2626 = vmatprep.subr.mxu0 0.0
        %2627 = vmatpush1.msra.mxu0 0.0
        %2628 = vmatprep.subr.mxu0 0.0
        %2629 = vmatpush1.msra.mxu0 0.0
        %2630 = vmatprep.subr.mxu0 0.0
        %2631 = vmatpush1.msra.mxu0 0.0
        %2632 = vmatprep.subr.mxu0 0.0
        %2633 = vmatpush1.msra.mxu0 0.0
        %2634 = vmatprep.subr.mxu0 0.0
        %2635 = vmatpush1.msra.mxu0 0.0
        %2636 = vmatprep.subr.mxu0 0.0
        %2637 = vmatpush1.msra.mxu0 0.0
        %2638 = vmatprep.subr.mxu0 0.0
        %2639 = vmatpush1.msra.mxu0 0.0
        %2640 = vmatprep.subr.mxu0 0.0
        %2641 = vmatpush1.msra.mxu0 0.0
        %2642 = vmatprep.subr.mxu0 0.0
        %2643 = vmatpush1.msra.mxu0 0.0
        %2644 = vmatprep.subr.mxu0 0.0
        %2645 = vmatpush1.msra.mxu0 0.0
        %2646 = vmatprep.mubr.f32.mxu0 0.0
        %2647 = vmatmul.mubr.f32.gmra.mrb[0].mxu0 %v2580
        %v2648 = vpop.f32.mrb[0].mxu0
        %v2649 = vadd.f32 0.0, %v2648
        %v2650 = vpop.f32.mrb[0].mxu0
        %2651 = vdwg.mxu0
        %v2652 = vadd.f32 %v2566, %v2649
        %s2653 = scalar_lea.vmem [#allocation16], 96
        %v2654 = vld [vmem:[%s2653] sm:$0xff]
        %v2655 = vld [vmem:[%s2653 + $0x8] sm:$0xff]
        %v2656 = vld [vmem:[%s2653 + $0x10] sm:$0xff]
        %v2657 = vld [vmem:[%s2653 + $0x18] sm:$0xff]
        %v2658 = vld [vmem:[%s2653 + $0x20] sm:$0xff]
        %v2659 = vld [vmem:[%s2653 + $0x28] sm:$0xff]
        %v2660 = vld [vmem:[%s2653 + $0x30] sm:$0xff]
        %v2661 = vld [vmem:[%s2653 + $0x38] sm:$0xff]
        %v2662 = vld [vmem:[%s2653 + $0x40] sm:$0xff]
        %v2663 = vld [vmem:[%s2653 + $0x48] sm:$0xff]
        %v2664 = vld [vmem:[%s2653 + $0x50] sm:$0xff]
        %v2665 = vld [vmem:[%s2653 + $0x58] sm:$0xff]
        %v2666 = vrot.slane %v2565, 1
        %v2667 = vsel %vm1751, %v2666, 0
        %2669 = vmatprep.subr.mxu0 0.0
        %2670 = vmatpush1.msra.mxu0 %v2654
        %2671 = vmatprep.subr.mxu0 0.0
        %2672 = vmatpush1.msra.mxu0 %v2655
        %2673 = vmatprep.subr.mxu0 0.0
        %2674 = vmatpush1.msra.mxu0 %v2656
        %2675 = vmatprep.subr.mxu0 0.0
        %2676 = vmatpush1.msra.mxu0 %v2657
        %2677 = vmatprep.subr.mxu0 0.0
        %2678 = vmatpush1.msra.mxu0 %v2658
        %2679 = vmatprep.subr.mxu0 0.0
        %2680 = vmatpush1.msra.mxu0 %v2659
        %2681 = vmatprep.subr.mxu0 0.0
        %2682 = vmatpush1.msra.mxu0 %v2660
        %2683 = vmatprep.subr.mxu0 0.0
        %2684 = vmatpush1.msra.mxu0 %v2661
        %2685 = vmatprep.subr.mxu0 0.0
        %2686 = vmatpush1.msra.mxu0 %v2662
        %2687 = vmatprep.subr.mxu0 0.0
        %2688 = vmatpush1.msra.mxu0 %v2663
        %2689 = vmatprep.subr.mxu0 0.0
        %2690 = vmatpush1.msra.mxu0 %v2664
        %2691 = vmatprep.subr.mxu0 0.0
        %2692 = vmatpush1.msra.mxu0 %v2665
        %2693 = vmatprep.subr.mxu0 0.0
        %2694 = vmatpush1.msra.mxu0 0.0
        %2695 = vmatprep.subr.mxu0 0.0
        %2696 = vmatpush1.msra.mxu0 0.0
        %2697 = vmatprep.subr.mxu0 0.0
        %2698 = vmatpush1.msra.mxu0 0.0
        %2699 = vmatprep.subr.mxu0 0.0
        %2700 = vmatpush1.msra.mxu0 0.0
        %2701 = vmatprep.subr.mxu0 0.0
        %2702 = vmatpush1.msra.mxu0 0.0
        %2703 = vmatprep.subr.mxu0 0.0
        %2704 = vmatpush1.msra.mxu0 0.0
        %2705 = vmatprep.subr.mxu0 0.0
        %2706 = vmatpush1.msra.mxu0 0.0
        %2707 = vmatprep.subr.mxu0 0.0
        %2708 = vmatpush1.msra.mxu0 0.0
        %2709 = vmatprep.subr.mxu0 0.0
        %2710 = vmatpush1.msra.mxu0 0.0
        %2711 = vmatprep.subr.mxu0 0.0
        %2712 = vmatpush1.msra.mxu0 0.0
        %2713 = vmatprep.subr.mxu0 0.0
        %2714 = vmatpush1.msra.mxu0 0.0
        %2715 = vmatprep.subr.mxu0 0.0
        %2716 = vmatpush1.msra.mxu0 0.0
        %2717 = vmatprep.subr.mxu0 0.0
        %2718 = vmatpush1.msra.mxu0 0.0
        %2719 = vmatprep.subr.mxu0 0.0
        %2720 = vmatpush1.msra.mxu0 0.0
        %2721 = vmatprep.subr.mxu0 0.0
        %2722 = vmatpush1.msra.mxu0 0.0
        %2723 = vmatprep.subr.mxu0 0.0
        %2724 = vmatpush1.msra.mxu0 0.0
        %2725 = vmatprep.subr.mxu0 0.0
        %2726 = vmatpush1.msra.mxu0 0.0
        %2727 = vmatprep.subr.mxu0 0.0
        %2728 = vmatpush1.msra.mxu0 0.0
        %2729 = vmatprep.subr.mxu0 0.0
        %2730 = vmatpush1.msra.mxu0 0.0
        %2731 = vmatprep.subr.mxu0 0.0
        %2732 = vmatpush1.msra.mxu0 0.0
        %2733 = vmatprep.mubr.f32.mxu0 0.0
        %2734 = vmatmul.mubr.f32.gmra.mrb[0].mxu0 %v2667
        %v2735 = vpop.f32.mrb[0].mxu0
        %v2736 = vadd.f32 0.0, %v2735
        %v2737 = vpop.f32.mrb[0].mxu0
        %2738 = vdwg.mxu0
        %v2739 = vadd.f32 %v2652, %v2736
        %s2740 = scalar_lea.vmem [#allocation16], 192
        %v2741 = vld [vmem:[%s2740] sm:$0xff]
        %v2742 = vld [vmem:[%s2740 + $0x8] sm:$0xff]
        %v2743 = vld [vmem:[%s2740 + $0x10] sm:$0xff]
        %v2744 = vld [vmem:[%s2740 + $0x18] sm:$0xff]
        %v2745 = vld [vmem:[%s2740 + $0x20] sm:$0xff]
        %v2746 = vld [vmem:[%s2740 + $0x28] sm:$0xff]
        %v2747 = vld [vmem:[%s2740 + $0x30] sm:$0xff]
        %v2748 = vld [vmem:[%s2740 + $0x38] sm:$0xff]
        %v2749 = vld [vmem:[%s2740 + $0x40] sm:$0xff]
        %v2750 = vld [vmem:[%s2740 + $0x48] sm:$0xff]
        %v2751 = vld [vmem:[%s2740 + $0x50] sm:$0xff]
        %v2752 = vld [vmem:[%s2740 + $0x58] sm:$0xff]
        %v2753 = vrot.slane %v2565, 2
        %v2754 = vsel %vm1751, %v2753, 0
        %2756 = vmatprep.subr.mxu0 0.0
        %2757 = vmatpush1.msra.mxu0 %v2741
        %2758 = vmatprep.subr.mxu0 0.0
        %2759 = vmatpush1.msra.mxu0 %v2742
        %2760 = vmatprep.subr.mxu0 0.0
        %2761 = vmatpush1.msra.mxu0 %v2743
        %2762 = vmatprep.subr.mxu0 0.0
        %2763 = vmatpush1.msra.mxu0 %v2744
        %2764 = vmatprep.subr.mxu0 0.0
        %2765 = vmatpush1.msra.mxu0 %v2745
        %2766 = vmatprep.subr.mxu0 0.0
        %2767 = vmatpush1.msra.mxu0 %v2746
        %2768 = vmatprep.subr.mxu0 0.0
        %2769 = vmatpush1.msra.mxu0 %v2747
        %2770 = vmatprep.subr.mxu0 0.0
        %2771 = vmatpush1.msra.mxu0 %v2748
        %2772 = vmatprep.subr.mxu0 0.0
        %2773 = vmatpush1.msra.mxu0 %v2749
        %2774 = vmatprep.subr.mxu0 0.0
        %2775 = vmatpush1.msra.mxu0 %v2750
        %2776 = vmatprep.subr.mxu0 0.0
        %2777 = vmatpush1.msra.mxu0 %v2751
        %2778 = vmatprep.subr.mxu0 0.0
        %2779 = vmatpush1.msra.mxu0 %v2752
        %2780 = vmatprep.subr.mxu0 0.0
        %2781 = vmatpush1.msra.mxu0 0.0
        %2782 = vmatprep.subr.mxu0 0.0
        %2783 = vmatpush1.msra.mxu0 0.0
        %2784 = vmatprep.subr.mxu0 0.0
        %2785 = vmatpush1.msra.mxu0 0.0
        %2786 = vmatprep.subr.mxu0 0.0
        %2787 = vmatpush1.msra.mxu0 0.0
        %2788 = vmatprep.subr.mxu0 0.0
        %2789 = vmatpush1.msra.mxu0 0.0
        %2790 = vmatprep.subr.mxu0 0.0
        %2791 = vmatpush1.msra.mxu0 0.0
        %2792 = vmatprep.subr.mxu0 0.0
        %2793 = vmatpush1.msra.mxu0 0.0
        %2794 = vmatprep.subr.mxu0 0.0
        %2795 = vmatpush1.msra.mxu0 0.0
        %2796 = vmatprep.subr.mxu0 0.0
        %2797 = vmatpush1.msra.mxu0 0.0
        %2798 = vmatprep.subr.mxu0 0.0
        %2799 = vmatpush1.msra.mxu0 0.0
        %2800 = vmatprep.subr.mxu0 0.0
        %2801 = vmatpush1.msra.mxu0 0.0
        %2802 = vmatprep.subr.mxu0 0.0
        %2803 = vmatpush1.msra.mxu0 0.0
        %2804 = vmatprep.subr.mxu0 0.0
        %2805 = vmatpush1.msra.mxu0 0.0
        %2806 = vmatprep.subr.mxu0 0.0
        %2807 = vmatpush1.msra.mxu0 0.0
        %2808 = vmatprep.subr.mxu0 0.0
        %2809 = vmatpush1.msra.mxu0 0.0
        %2810 = vmatprep.subr.mxu0 0.0
        %2811 = vmatpush1.msra.mxu0 0.0
        %2812 = vmatprep.subr.mxu0 0.0
        %2813 = vmatpush1.msra.mxu0 0.0
        %2814 = vmatprep.subr.mxu0 0.0
        %2815 = vmatpush1.msra.mxu0 0.0
        %2816 = vmatprep.subr.mxu0 0.0
        %2817 = vmatpush1.msra.mxu0 0.0
        %2818 = vmatprep.subr.mxu0 0.0
        %2819 = vmatpush1.msra.mxu0 0.0
        %2820 = vmatprep.mubr.f32.mxu0 0.0
        %2821 = vmatmul.mubr.f32.gmra.mrb[0].mxu0 %v2754
        %v2822 = vpop.f32.mrb[0].mxu0
        %v2823 = vadd.f32 0.0, %v2822
        %v2824 = vpop.f32.mrb[0].mxu0
        %2825 = vdwg.mxu0
        %v2826 = vadd.f32 %v2739, %v2823
        %s2827 = scalar_lea.vmem [#allocation16], 288
        %v2828 = vld [vmem:[%s2827] sm:$0xff]
        %v2829 = vld [vmem:[%s2827 + $0x8] sm:$0xff]
        %v2830 = vld [vmem:[%s2827 + $0x10] sm:$0xff]
        %v2831 = vld [vmem:[%s2827 + $0x18] sm:$0xff]
        %v2832 = vld [vmem:[%s2827 + $0x20] sm:$0xff]
        %v2833 = vld [vmem:[%s2827 + $0x28] sm:$0xff]
        %v2834 = vld [vmem:[%s2827 + $0x30] sm:$0xff]
        %v2835 = vld [vmem:[%s2827 + $0x38] sm:$0xff]
        %v2836 = vld [vmem:[%s2827 + $0x40] sm:$0xff]
        %v2837 = vld [vmem:[%s2827 + $0x48] sm:$0xff]
        %v2838 = vld [vmem:[%s2827 + $0x50] sm:$0xff]
        %v2839 = vld [vmem:[%s2827 + $0x58] sm:$0xff]
        %v2840 = vrot.slane %v2565, 3
        %v2841 = vsel %vm1751, %v2840, 0
        %2843 = vmatprep.subr.mxu0 0.0
        %2844 = vmatpush1.msra.mxu0 %v2828
        %2845 = vmatprep.subr.mxu0 0.0
        %2846 = vmatpush1.msra.mxu0 %v2829
        %2847 = vmatprep.subr.mxu0 0.0
        %2848 = vmatpush1.msra.mxu0 %v2830
        %2849 = vmatprep.subr.mxu0 0.0
        %2850 = vmatpush1.msra.mxu0 %v2831
        %2851 = vmatprep.subr.mxu0 0.0
        %2852 = vmatpush1.msra.mxu0 %v2832
        %2853 = vmatprep.subr.mxu0 0.0
        %2854 = vmatpush1.msra.mxu0 %v2833
        %2855 = vmatprep.subr.mxu0 0.0
        %2856 = vmatpush1.msra.mxu0 %v2834
        %2857 = vmatprep.subr.mxu0 0.0
        %2858 = vmatpush1.msra.mxu0 %v2835
        %2859 = vmatprep.subr.mxu0 0.0
        %2860 = vmatpush1.msra.mxu0 %v2836
        %2861 = vmatprep.subr.mxu0 0.0
        %2862 = vmatpush1.msra.mxu0 %v2837
        %2863 = vmatprep.subr.mxu0 0.0
        %2864 = vmatpush1.msra.mxu0 %v2838
        %2865 = vmatprep.subr.mxu0 0.0
        %2866 = vmatpush1.msra.mxu0 %v2839
        %2867 = vmatprep.subr.mxu0 0.0
        %2868 = vmatpush1.msra.mxu0 0.0
        %2869 = vmatprep.subr.mxu0 0.0
        %2870 = vmatpush1.msra.mxu0 0.0
        %2871 = vmatprep.subr.mxu0 0.0
        %2872 = vmatpush1.msra.mxu0 0.0
        %2873 = vmatprep.subr.mxu0 0.0
        %2874 = vmatpush1.msra.mxu0 0.0
        %2875 = vmatprep.subr.mxu0 0.0
        %2876 = vmatpush1.msra.mxu0 0.0
        %2877 = vmatprep.subr.mxu0 0.0
        %2878 = vmatpush1.msra.mxu0 0.0
        %2879 = vmatprep.subr.mxu0 0.0
        %2880 = vmatpush1.msra.mxu0 0.0
        %2881 = vmatprep.subr.mxu0 0.0
        %2882 = vmatpush1.msra.mxu0 0.0
        %2883 = vmatprep.subr.mxu0 0.0
        %2884 = vmatpush1.msra.mxu0 0.0
        %2885 = vmatprep.subr.mxu0 0.0
        %2886 = vmatpush1.msra.mxu0 0.0
        %2887 = vmatprep.subr.mxu0 0.0
        %2888 = vmatpush1.msra.mxu0 0.0
        %2889 = vmatprep.subr.mxu0 0.0
        %2890 = vmatpush1.msra.mxu0 0.0
        %2891 = vmatprep.subr.mxu0 0.0
        %2892 = vmatpush1.msra.mxu0 0.0
        %2893 = vmatprep.subr.mxu0 0.0
        %2894 = vmatpush1.msra.mxu0 0.0
        %2895 = vmatprep.subr.mxu0 0.0
        %2896 = vmatpush1.msra.mxu0 0.0
        %2897 = vmatprep.subr.mxu0 0.0
        %2898 = vmatpush1.msra.mxu0 0.0
        %2899 = vmatprep.subr.mxu0 0.0
        %2900 = vmatpush1.msra.mxu0 0.0
        %2901 = vmatprep.subr.mxu0 0.0
        %2902 = vmatpush1.msra.mxu0 0.0
        %2903 = vmatprep.subr.mxu0 0.0
        %2904 = vmatpush1.msra.mxu0 0.0
        %2905 = vmatprep.subr.mxu0 0.0
        %2906 = vmatpush1.msra.mxu0 0.0
        %2907 = vmatprep.mubr.f32.mxu0 0.0
        %2908 = vmatmul.mubr.f32.gmra.mrb[0].mxu0 %v2841
        %v2909 = vpop.f32.mrb[0].mxu0
        %v2910 = vadd.f32 0.0, %v2909
        %v2911 = vpop.f32.mrb[0].mxu0
        %2912 = vdwg.mxu0
        %v2913 = vadd.f32 %v2826, %v2910
        %s2914 = scalar_lea.vmem [#allocation16], 384
        %v2915 = vld [vmem:[%s2914] sm:$0xff]
        %v2916 = vld [vmem:[%s2914 + $0x8] sm:$0xff]
        %v2917 = vld [vmem:[%s2914 + $0x10] sm:$0xff]
        %v2918 = vld [vmem:[%s2914 + $0x18] sm:$0xff]
        %v2919 = vld [vmem:[%s2914 + $0x20] sm:$0xff]
        %v2920 = vld [vmem:[%s2914 + $0x28] sm:$0xff]
        %v2921 = vld [vmem:[%s2914 + $0x30] sm:$0xff]
        %v2922 = vld [vmem:[%s2914 + $0x38] sm:$0xff]
        %v2923 = vld [vmem:[%s2914 + $0x40] sm:$0xff]
        %v2924 = vld [vmem:[%s2914 + $0x48] sm:$0xff]
        %v2925 = vld [vmem:[%s2914 + $0x50] sm:$0xff]
        %v2926 = vld [vmem:[%s2914 + $0x58] sm:$0xff]
        %v2927 = vrot.slane %v2565, 4
        %v2928 = vsel %vm1751, %v2927, 0
        %2930 = vmatprep.subr.mxu0 0.0
        %2931 = vmatpush1.msra.mxu0 %v2915
        %2932 = vmatprep.subr.mxu0 0.0
        %2933 = vmatpush1.msra.mxu0 %v2916
        %2934 = vmatprep.subr.mxu0 0.0
        %2935 = vmatpush1.msra.mxu0 %v2917
        %2936 = vmatprep.subr.mxu0 0.0
        %2937 = vmatpush1.msra.mxu0 %v2918
        %2938 = vmatprep.subr.mxu0 0.0
        %2939 = vmatpush1.msra.mxu0 %v2919
        %2940 = vmatprep.subr.mxu0 0.0
        %2941 = vmatpush1.msra.mxu0 %v2920
        %2942 = vmatprep.subr.mxu0 0.0
        %2943 = vmatpush1.msra.mxu0 %v2921
        %2944 = vmatprep.subr.mxu0 0.0
        %2945 = vmatpush1.msra.mxu0 %v2922
        %2946 = vmatprep.subr.mxu0 0.0
        %2947 = vmatpush1.msra.mxu0 %v2923
        %2948 = vmatprep.subr.mxu0 0.0
        %2949 = vmatpush1.msra.mxu0 %v2924
        %2950 = vmatprep.subr.mxu0 0.0
        %2951 = vmatpush1.msra.mxu0 %v2925
        %2952 = vmatprep.subr.mxu0 0.0
        %2953 = vmatpush1.msra.mxu0 %v2926
        %2954 = vmatprep.subr.mxu0 0.0
        %2955 = vmatpush1.msra.mxu0 0.0
        %2956 = vmatprep.subr.mxu0 0.0
        %2957 = vmatpush1.msra.mxu0 0.0
        %2958 = vmatprep.subr.mxu0 0.0
        %2959 = vmatpush1.msra.mxu0 0.0
        %2960 = vmatprep.subr.mxu0 0.0
        %2961 = vmatpush1.msra.mxu0 0.0
        %2962 = vmatprep.subr.mxu0 0.0
        %2963 = vmatpush1.msra.mxu0 0.0
        %2964 = vmatprep.subr.mxu0 0.0
        %2965 = vmatpush1.msra.mxu0 0.0
        %2966 = vmatprep.subr.mxu0 0.0
        %2967 = vmatpush1.msra.mxu0 0.0
        %2968 = vmatprep.subr.mxu0 0.0
        %2969 = vmatpush1.msra.mxu0 0.0
        %2970 = vmatprep.subr.mxu0 0.0
        %2971 = vmatpush1.msra.mxu0 0.0
        %2972 = vmatprep.subr.mxu0 0.0
        %2973 = vmatpush1.msra.mxu0 0.0
        %2974 = vmatprep.subr.mxu0 0.0
        %2975 = vmatpush1.msra.mxu0 0.0
        %2976 = vmatprep.subr.mxu0 0.0
        %2977 = vmatpush1.msra.mxu0 0.0
        %2978 = vmatprep.subr.mxu0 0.0
        %2979 = vmatpush1.msra.mxu0 0.0
        %2980 = vmatprep.subr.mxu0 0.0
        %2981 = vmatpush1.msra.mxu0 0.0
        %2982 = vmatprep.subr.mxu0 0.0
        %2983 = vmatpush1.msra.mxu0 0.0
        %2984 = vmatprep.subr.mxu0 0.0
        %2985 = vmatpush1.msra.mxu0 0.0
        %2986 = vmatprep.subr.mxu0 0.0
        %2987 = vmatpush1.msra.mxu0 0.0
        %2988 = vmatprep.subr.mxu0 0.0
        %2989 = vmatpush1.msra.mxu0 0.0
        %2990 = vmatprep.subr.mxu0 0.0
        %2991 = vmatpush1.msra.mxu0 0.0
        %2992 = vmatprep.subr.mxu0 0.0
        %2993 = vmatpush1.msra.mxu0 0.0
        %2994 = vmatprep.mubr.f32.mxu0 0.0
        %2995 = vmatmul.mubr.f32.gmra.mrb[0].mxu0 %v2928
        %v2996 = vpop.f32.mrb[0].mxu0
        %v2997 = vadd.f32 0.0, %v2996
        %v2998 = vpop.f32.mrb[0].mxu0
        %2999 = vdwg.mxu0
        %v3000 = vadd.f32 %v2913, %v2997
        %s3001 = scalar_lea.vmem [#allocation16], 480
        %v3002 = vld [vmem:[%s3001] sm:$0xff]
        %v3003 = vld [vmem:[%s3001 + $0x8] sm:$0xff]
        %v3004 = vld [vmem:[%s3001 + $0x10] sm:$0xff]
        %v3005 = vld [vmem:[%s3001 + $0x18] sm:$0xff]
        %v3006 = vld [vmem:[%s3001 + $0x20] sm:$0xff]
        %v3007 = vld [vmem:[%s3001 + $0x28] sm:$0xff]
        %v3008 = vld [vmem:[%s3001 + $0x30] sm:$0xff]
        %v3009 = vld [vmem:[%s3001 + $0x38] sm:$0xff]
        %v3010 = vld [vmem:[%s3001 + $0x40] sm:$0xff]
        %v3011 = vld [vmem:[%s3001 + $0x48] sm:$0xff]
        %v3012 = vld [vmem:[%s3001 + $0x50] sm:$0xff]
        %v3013 = vld [vmem:[%s3001 + $0x58] sm:$0xff]
        %v3014 = vrot.slane %v2565, 5
        %v3015 = vsel %vm1751, %v3014, 0
        %3017 = vmatprep.subr.mxu0 0.0
        %3018 = vmatpush1.msra.mxu0 %v3002
        %3019 = vmatprep.subr.mxu0 0.0
        %3020 = vmatpush1.msra.mxu0 %v3003
        %3021 = vmatprep.subr.mxu0 0.0
        %3022 = vmatpush1.msra.mxu0 %v3004
        %3023 = vmatprep.subr.mxu0 0.0
        %3024 = vmatpush1.msra.mxu0 %v3005
        %3025 = vmatprep.subr.mxu0 0.0
        %3026 = vmatpush1.msra.mxu0 %v3006
        %3027 = vmatprep.subr.mxu0 0.0
        %3028 = vmatpush1.msra.mxu0 %v3007
        %3029 = vmatprep.subr.mxu0 0.0
        %3030 = vmatpush1.msra.mxu0 %v3008
        %3031 = vmatprep.subr.mxu0 0.0
        %3032 = vmatpush1.msra.mxu0 %v3009
        %3033 = vmatprep.subr.mxu0 0.0
        %3034 = vmatpush1.msra.mxu0 %v3010
        %3035 = vmatprep.subr.mxu0 0.0
        %3036 = vmatpush1.msra.mxu0 %v3011
        %3037 = vmatprep.subr.mxu0 0.0
        %3038 = vmatpush1.msra.mxu0 %v3012
        %3039 = vmatprep.subr.mxu0 0.0
        %3040 = vmatpush1.msra.mxu0 %v3013
        %3041 = vmatprep.subr.mxu0 0.0
        %3042 = vmatpush1.msra.mxu0 0.0
        %3043 = vmatprep.subr.mxu0 0.0
        %3044 = vmatpush1.msra.mxu0 0.0
        %3045 = vmatprep.subr.mxu0 0.0
        %3046 = vmatpush1.msra.mxu0 0.0
        %3047 = vmatprep.subr.mxu0 0.0
        %3048 = vmatpush1.msra.mxu0 0.0
        %3049 = vmatprep.subr.mxu0 0.0
        %3050 = vmatpush1.msra.mxu0 0.0
        %3051 = vmatprep.subr.mxu0 0.0
        %3052 = vmatpush1.msra.mxu0 0.0
        %3053 = vmatprep.subr.mxu0 0.0
        %3054 = vmatpush1.msra.mxu0 0.0
        %3055 = vmatprep.subr.mxu0 0.0
        %3056 = vmatpush1.msra.mxu0 0.0
        %3057 = vmatprep.subr.mxu0 0.0
        %3058 = vmatpush1.msra.mxu0 0.0
        %3059 = vmatprep.subr.mxu0 0.0
        %3060 = vmatpush1.msra.mxu0 0.0
        %3061 = vmatprep.subr.mxu0 0.0
        %3062 = vmatpush1.msra.mxu0 0.0
        %3063 = vmatprep.subr.mxu0 0.0
        %3064 = vmatpush1.msra.mxu0 0.0
        %3065 = vmatprep.subr.mxu0 0.0
        %3066 = vmatpush1.msra.mxu0 0.0
        %3067 = vmatprep.subr.mxu0 0.0
        %3068 = vmatpush1.msra.mxu0 0.0
        %3069 = vmatprep.subr.mxu0 0.0
        %3070 = vmatpush1.msra.mxu0 0.0
        %3071 = vmatprep.subr.mxu0 0.0
        %3072 = vmatpush1.msra.mxu0 0.0
        %3073 = vmatprep.subr.mxu0 0.0
        %3074 = vmatpush1.msra.mxu0 0.0
        %3075 = vmatprep.subr.mxu0 0.0
        %3076 = vmatpush1.msra.mxu0 0.0
        %3077 = vmatprep.subr.mxu0 0.0
        %3078 = vmatpush1.msra.mxu0 0.0
        %3079 = vmatprep.subr.mxu0 0.0
        %3080 = vmatpush1.msra.mxu0 0.0
        %3081 = vmatprep.mubr.f32.mxu0 0.0
        %3082 = vmatmul.mubr.f32.gmra.mrb[0].mxu0 %v3015
        %v3083 = vpop.f32.mrb[0].mxu0
        %v3084 = vadd.f32 0.0, %v3083
        %v3085 = vpop.f32.mrb[0].mxu0
        %3086 = vdwg.mxu0
        %v3087 = vadd.f32 %v3000, %v3084
        %v3088 = vmax.f32 %v3087, 0.0
        %v3089 = vld [vmem:[#allocation17] sm:$0xff]
        %v3090 = vld [vmem:[#allocation17 + $0x8] sm:$0xff]
        %v3091 = vld [vmem:[#allocation17 + $0x10] sm:$0xff]
        %v3092 = vld [vmem:[#allocation17 + $0x18] sm:$0xff]
        %v3093 = vld [vmem:[#allocation17 + $0x20] sm:$0xff]
        %v3094 = vld [vmem:[#allocation17 + $0x28] sm:$0xff]
        %v3095 = vld [vmem:[#allocation17 + $0x30] sm:$0xff]
        %v3096 = vld [vmem:[#allocation17 + $0x38] sm:$0xff]
        %v3097 = vld [vmem:[#allocation17 + $0x40] sm:$0xff]
        %v3098 = vld [vmem:[#allocation17 + $0x48] sm:$0xff]
        %v3099 = vld [vmem:[#allocation17 + $0x50] sm:$0xff]
        %v3100 = vld [vmem:[#allocation17 + $0x58] sm:$0xff]
        %v3101 = vld [vmem:[#allocation17 + $0x60] sm:$0xff]
        %v3102 = vld [vmem:[#allocation17 + $0x68] sm:$0xff]
        %v3103 = vld [vmem:[#allocation17 + $0x70] sm:$0xff]
        %v3104 = vld [vmem:[%s14] sm:$0x1]
        %vm3105 = vcmask 982016
        %v3107 = vsel %vm3105, %v3088, 0
        %3109 = vmatprep.subr.mxu0 0.0
        %3110 = vmatpush1.msra.mxu0 %v3089
        %3111 = vmatprep.subr.mxu0 0.0
        %3112 = vmatpush1.msra.mxu0 %v3090
        %3113 = vmatprep.subr.mxu0 0.0
        %3114 = vmatpush1.msra.mxu0 %v3091
        %3115 = vmatprep.subr.mxu0 0.0
        %3116 = vmatpush1.msra.mxu0 %v3092
        %3117 = vmatprep.subr.mxu0 0.0
        %3118 = vmatpush1.msra.mxu0 %v3093
        %3119 = vmatprep.subr.mxu0 0.0
        %3120 = vmatpush1.msra.mxu0 %v3094
        %3121 = vmatprep.subr.mxu0 0.0
        %3122 = vmatpush1.msra.mxu0 %v3095
        %3123 = vmatprep.subr.mxu0 0.0
        %3124 = vmatpush1.msra.mxu0 %v3096
        %3125 = vmatprep.subr.mxu0 0.0
        %3126 = vmatpush1.msra.mxu0 %v3097
        %3127 = vmatprep.subr.mxu0 0.0
        %3128 = vmatpush1.msra.mxu0 %v3098
        %3129 = vmatprep.subr.mxu0 0.0
        %3130 = vmatpush1.msra.mxu0 %v3099
        %3131 = vmatprep.subr.mxu0 0.0
        %3132 = vmatpush1.msra.mxu0 %v3100
        %3133 = vmatprep.subr.mxu0 0.0
        %3134 = vmatpush1.msra.mxu0 %v3101
        %3135 = vmatprep.subr.mxu0 0.0
        %3136 = vmatpush1.msra.mxu0 %v3102
        %3137 = vmatprep.subr.mxu0 0.0
        %3138 = vmatpush1.msra.mxu0 %v3103
        %3139 = vmatprep.subr.mxu0 0.0
        %3140 = vmatpush1.msra.mxu0 0.0
        %3141 = vmatprep.subr.mxu0 0.0
        %3142 = vmatpush1.msra.mxu0 0.0
        %3143 = vmatprep.subr.mxu0 0.0
        %3144 = vmatpush1.msra.mxu0 0.0
        %3145 = vmatprep.subr.mxu0 0.0
        %3146 = vmatpush1.msra.mxu0 0.0
        %3147 = vmatprep.subr.mxu0 0.0
        %3148 = vmatpush1.msra.mxu0 0.0
        %3149 = vmatprep.subr.mxu0 0.0
        %3150 = vmatpush1.msra.mxu0 0.0
        %3151 = vmatprep.subr.mxu0 0.0
        %3152 = vmatpush1.msra.mxu0 0.0
        %3153 = vmatprep.subr.mxu0 0.0
        %3154 = vmatpush1.msra.mxu0 0.0
        %3155 = vmatprep.subr.mxu0 0.0
        %3156 = vmatpush1.msra.mxu0 0.0
        %3157 = vmatprep.subr.mxu0 0.0
        %3158 = vmatpush1.msra.mxu0 0.0
        %3159 = vmatprep.subr.mxu0 0.0
        %3160 = vmatpush1.msra.mxu0 0.0
        %3161 = vmatprep.subr.mxu0 0.0
        %3162 = vmatpush1.msra.mxu0 0.0
        %3163 = vmatprep.subr.mxu0 0.0
        %3164 = vmatpush1.msra.mxu0 0.0
        %3165 = vmatprep.subr.mxu0 0.0
        %3166 = vmatpush1.msra.mxu0 0.0
        %3167 = vmatprep.subr.mxu0 0.0
        %3168 = vmatpush1.msra.mxu0 0.0
        %3169 = vmatprep.subr.mxu0 0.0
        %3170 = vmatpush1.msra.mxu0 0.0
        %3171 = vmatprep.subr.mxu0 0.0
        %3172 = vmatpush1.msra.mxu0 0.0
        %3173 = vmatprep.mubr.f32.mxu0 0.0
        %3174 = vmatmul.mubr.f32.gmra.mrb[0].mxu0 %v3107
        %v3175 = vpop.f32.mrb[0].mxu0
        %v3176 = vadd.f32 %v3104, %v3175
        %v3177 = vpop.f32.mrb[0].mxu0
        %3178 = vdwg.mxu0
        %v3179 = vmax.f32 %v3176, 0.0
        %v3180 = vld [vmem:[%s15] sm:$0xff]
        %v3181 = vld [vmem:[%s15 + $0x8] sm:$0xff]
        %v3182 = vld [vmem:[%s15 + $0x10] sm:$0xff]
        %v3183 = vld [vmem:[%s15 + $0x18] sm:$0xff]
        %v3184 = vld [vmem:[%s15 + $0x20] sm:$0xff]
        %v3185 = vld [vmem:[%s15 + $0x28] sm:$0xff]
        %v3186 = vld [vmem:[%s15 + $0x30] sm:$0xff]
        %v3187 = vld [vmem:[%s15 + $0x38] sm:$0xff]
        %v3188 = vld [vmem:[%s15 + $0x40] sm:$0xff]
        %v3189 = vld [vmem:[%s15 + $0x48] sm:$0xff]
        %v3190 = vld [vmem:[%s15 + $0x50] sm:$0xff]
        %v3191 = vld [vmem:[%s15 + $0x58] sm:$0xff]
        %v3192 = vld [vmem:[%s15 + $0x60] sm:$0xff]
        %v3193 = vld [vmem:[%s15 + $0x68] sm:$0xff]
        %v3194 = vld [vmem:[%s15 + $0x70] sm:$0xff]
        %v3195 = vld [vmem:[%s15 + $0x78] sm:$0xff]
        %v3196 = vld [vmem:[%s16] sm:$0x1]
        %3197 = vmatprep.subr.mxu0 0.0
        %3198 = vmatpush1.msra.mxu0 %v3180
        %3199 = vmatprep.subr.mxu0 0.0
        %3200 = vmatpush1.msra.mxu0 %v3181
        %3201 = vmatprep.subr.mxu0 0.0
        %3202 = vmatpush1.msra.mxu0 %v3182
        %3203 = vmatprep.subr.mxu0 0.0
        %3204 = vmatpush1.msra.mxu0 %v3183
        %3205 = vmatprep.subr.mxu0 0.0
        %3206 = vmatpush1.msra.mxu0 %v3184
        %3207 = vmatprep.subr.mxu0 0.0
        %3208 = vmatpush1.msra.mxu0 %v3185
        %3209 = vmatprep.subr.mxu0 0.0
        %3210 = vmatpush1.msra.mxu0 %v3186
        %3211 = vmatprep.subr.mxu0 0.0
        %3212 = vmatpush1.msra.mxu0 %v3187
        %3213 = vmatprep.subr.mxu0 0.0
        %3214 = vmatpush1.msra.mxu0 %v3188
        %3215 = vmatprep.subr.mxu0 0.0
        %3216 = vmatpush1.msra.mxu0 %v3189
        %3217 = vmatprep.subr.mxu0 0.0
        %3218 = vmatpush1.msra.mxu0 %v3190
        %3219 = vmatprep.subr.mxu0 0.0
        %3220 = vmatpush1.msra.mxu0 %v3191
        %3221 = vmatprep.subr.mxu0 0.0
        %3222 = vmatpush1.msra.mxu0 %v3192
        %3223 = vmatprep.subr.mxu0 0.0
        %3224 = vmatpush1.msra.mxu0 %v3193
        %3225 = vmatprep.subr.mxu0 0.0
        %3226 = vmatpush1.msra.mxu0 %v3194
        %3227 = vmatprep.subr.mxu0 0.0
        %3228 = vmatpush1.msra.mxu0 %v3195
        %3229 = vmatprep.subr.mxu0 0.0
        %3230 = vmatpush1.msra.mxu0 0.0
        %3231 = vmatprep.subr.mxu0 0.0
        %3232 = vmatpush1.msra.mxu0 0.0
        %3233 = vmatprep.subr.mxu0 0.0
        %3234 = vmatpush1.msra.mxu0 0.0
        %3235 = vmatprep.subr.mxu0 0.0
        %3236 = vmatpush1.msra.mxu0 0.0
        %3237 = vmatprep.subr.mxu0 0.0
        %3238 = vmatpush1.msra.mxu0 0.0
        %3239 = vmatprep.subr.mxu0 0.0
        %3240 = vmatpush1.msra.mxu0 0.0
        %3241 = vmatprep.subr.mxu0 0.0
        %3242 = vmatpush1.msra.mxu0 0.0
        %3243 = vmatprep.subr.mxu0 0.0
        %3244 = vmatpush1.msra.mxu0 0.0
        %3245 = vmatprep.subr.mxu0 0.0
        %3246 = vmatpush1.msra.mxu0 0.0
        %3247 = vmatprep.subr.mxu0 0.0
        %3248 = vmatpush1.msra.mxu0 0.0
        %3249 = vmatprep.subr.mxu0 0.0
        %3250 = vmatpush1.msra.mxu0 0.0
        %3251 = vmatprep.subr.mxu0 0.0
        %3252 = vmatpush1.msra.mxu0 0.0
        %3253 = vmatprep.subr.mxu0 0.0
        %3254 = vmatpush1.msra.mxu0 0.0
        %3255 = vmatprep.subr.mxu0 0.0
        %3256 = vmatpush1.msra.mxu0 0.0
        %3257 = vmatprep.subr.mxu0 0.0
        %3258 = vmatpush1.msra.mxu0 0.0
        %3259 = vmatprep.subr.mxu0 0.0
        %3260 = vmatpush1.msra.mxu0 0.0
        %3261 = vmatprep.mubr.f32.mxu0 0.0
        %3262 = vmatmul.mubr.f32.gmra.mrb[0].mxu0 %v3179
        %v3263 = vpop.f32.mrb[0].mxu0
        %v3264 = vadd.f32 %v3196, %v3263
        %v3265 = vpop.f32.mrb[0].mxu0
        %3266 = vdwg.mxu0
        %3267 = vst [vmem:[%s682] sm:$0x1] %v3264
        %s3268 = sand.u32 %s407, 1
        %s3269 = scalar_lea.sflag [#allocation4], %s3268
        %s3270 = sand.u32 %s407, 1
        %s3271 = scalar_lea.vmem [#allocation19], %s3270
        // Predicated region
        $region129: #{net_forward.1} parent=87 // pred_check
          %p3272 = pneg %p417
        $region130: #{net_forward.1} parent=87 // pred_check_branch
          %3274 = sbr.rel (%p3272) target = $region132
        $region131: #{net_forward.1} parent=87 // pred_region
          %s3276 = ssub.s32 16, 16
          %3277 = vsyncadd %s3269, %s3276
          %s3278 = smul.addr %s37, 16
          %s3279 = scalar_lea.hbm %s17, %s3278
          %s3281 = sshll.u32 %s3271, 4
          %s3282 = int_to_ptr.vmem [resolvable:$true] %s3281
          %3284 = dma.vmem_to_hbm [thread:$0]  %s3282, 16, %s3279, %s3269
        $region132: #{net_forward.1} parent=87 // pred_fallthru
          _
      $region88: #{net_forward.1} parent=5 // pred_fallthru
        _
      %p3285 = scmp.le.s32.totalorder 2, %s32
      // Predicated region
      $region133: #{net_forward.1} parent=5 // pred_check
        %p3286 = pneg %p3285
      $region134: #{net_forward.1} parent=5 // pred_check_branch
        %3288 = sbr.rel (%p3286) target = $region136
      $region135: #{net_forward.1} parent=5 // pred_region
        %s3289 = ssub.s32 %s32, 2
        // Predicated region
        $region137: #{net_forward.1} parent=135 // pred_check
          %p3290 = pneg %p423
        $region138: #{net_forward.1} parent=135 // pred_check_branch
          %3292 = sbr.rel (%p3290) target = $region140
        $region139: #{net_forward.1} parent=135 // pred_region
          %s3293 = sand.u32 %s408, 1
          %s3294 = scalar_lea.sflag [#allocation4], %s3293
          %s3295 = sand.u32 %s408, 1
          %s3296 = scalar_lea.vmem [#allocation19], %s3295
          %3297 = dma.done %s3294, 16
        $region140: #{net_forward.1} parent=135 // pred_fallthru
          _
      $region136: #{net_forward.1} parent=5 // pred_fallthru
        _
    $region6: #{net_forward.1} parent=1 // loop_footer
      %s36 = sadd.s32 1, %s32
    $region7: #{net_forward.1} parent=1 // loop_footer_branch
      %31 = sbr.rel target = $region3
    $region8: #{net_forward.1} parent=1 // loop_exit
      _
    %3298 = vsyncpa [#allocation3], 1
    %s3299 = scalar_lea.sflag [#allocation3], 1
    %3300 = vsyncpa %s3299, 1
    %3301 = vsyncpa [#allocation6], 1
    %3302 = vsyncpa [#allocation9], 1
    %3303 = vsyncpa [#allocation12], 1
    %3304 = vsyncpa [#allocation15], 1
    %3305 = vsyncpa [#allocation18], 1
    %3306 = vsyncpa [#allocation4], 1
    %s3307 = scalar_lea.sflag [#allocation4], 1
    %3308 = vsyncpa %s3307, 1

</llo_original>
